<compile_context>
chip_gen: v5e
topology: v5e:2x2
jax: 0.10.0
libtpu: 0.0.40
codegen_flags: <defaults>
</compile_context>

<pallas_src>
import jax
import jax.numpy as jnp
from jax import lax
from jax.experimental import pallas as pl
from jax.experimental.pallas import tpu as pltpu

BN_EPS = 1e-5
LANE = 128
SUB = 8
GUARD = 8     # zero guard rows in front of h1 (for the "dw - 1" tap offset)
TAIL = 8      # finite tail rows behind h1 (read only by discarded wide cols)


def _round_up(x, m):
    return (x + m - 1) // m * m


def _pad_axis(a, axis, new_size):
    if a.shape[axis] == new_size:
        return a
    pad = [(0, 0)] * a.ndim
    pad[axis] = (0, new_size - a.shape[axis])
    return jnp.pad(a, pad)


# ---------------- fused kernel ----------------

def _make_kernel(*, W, TH, Wp, OW, CIN, WID, COUT, NB, cdt, xdt):
    RB = (TH + 2) * Wp            # flattened rows of one band (incl. halos)
    LAST_SLOT = (NB - 1) & 1      # slot used by the last band of every image
    # chunk sizes (in rows of the band) targeting ~256 "wide" rows per matmul
    CR1 = max(1, min(TH + 2, 256 // Wp))
    CR2 = max(1, min(TH, 256 // Wp))

    def kernel(x_hbm,                          # (N, H, W, CIN) in HBM (pl.ANY)
               w1_ref, s1_ref, b1_ref,
               w2_ref, s2_ref, b2_ref,
               w3_ref, s3_ref, b3_ref,
               o_ref,                          # (TH*OW, COUT)
               xbuf, dma_sem, h1_buf):
        n = pl.program_id(0)
        b = pl.program_id(1)
        nb = pl.num_programs(1)
        slot = b & 1

        def fetch(band, s, start):
            def go(cp):
                if start:
                    cp.start()
                else:
                    cp.wait()
            # main TH image rows -> buffer rows 1..TH, columns 0..W-1
            go(pltpu.make_async_copy(
                x_hbm.at[n, pl.ds(band * TH, TH)],
                xbuf.at[s, pl.ds(1, TH), pl.ds(0, W)],
                dma_sem.at[s, 0]))

            @pl.when(band > 0)                 # top halo row (absent at top)
            def _():
                go(pltpu.make_async_copy(
                    x_hbm.at[n, pl.ds(band * TH - 1, 1)],
                    xbuf.at[s, pl.ds(0, 1), pl.ds(0, W)],
                    dma_sem.at[s, 1]))

            @pl.when(band < nb - 1)            # bottom halo row (absent at bottom)
            def _():
                go(pltpu.make_async_copy(
                    x_hbm.at[n, pl.ds(band * TH + TH, 1)],
                    xbuf.at[s, pl.ds(TH + 1, 1), pl.ds(0, W)],
                    dma_sem.at[s, 2]))

        # Prime the double-buffer at the first band of every image (safe under
        # megacore splitting of the batch axis).
        @pl.when(b == 0)
        def _():
            fetch(b, slot, True)

        fetch(b, slot, False)                  # wait for this band's slab

        # Synthesize the spatial zero padding in VMEM.  Pad columns (>= W) are
        # never DMA targets, so zeroing both slots once per image suffices.
        @pl.when(b == 0)
        def _():
            xbuf[:, :, W:Wp, :] = jnp.zeros((2, TH + 2, Wp - W, CIN), xdt)
            xbuf[0, 0:1] = jnp.zeros((1, Wp, CIN), xdt)         # image-top halo

        @pl.when(b == nb - 1)
        def _():
            xbuf[LAST_SLOT, TH + 1:TH + 2] = jnp.zeros((1, Wp, CIN), xdt)

        # Prefetch the next band while computing on this one.
        # TODO(synk): the first band of every image is an exposed DMA; a
        # cross-image prefetch would hide it but is only safe if the batch
        # axis is not megacore-split.
        @pl.when(b + 1 < nb)
        def _():
            fetch(b + 1, 1 - slot, True)

        xband = xbuf.at[slot]                  # (TH+2, Wp, CIN) ref view

        # Guard / tail rows of h1 (reached by the shifted conv2 taps) = zero.
        h1_buf[0:GUARD, :] = jnp.zeros((GUARD, WID), cdt)
        h1_buf[GUARD + RB:GUARD + RB + TAIL, :] = jnp.zeros((TAIL, WID), cdt)

        # ---- conv1 (1x1) + bn1 + relu over the whole padded band, chunked ----
        for bi0 in range(0, TH + 2, CR1):
            nbr = min(CR1, TH + 2 - bi0)
            xa = xband[bi0:bi0 + nbr].astype(cdt).reshape(nbr * Wp, CIN)
            y1 = jnp.dot(xa, w1_ref[...], preferred_element_type=jnp.float32)
            y1 = jnp.maximum(y1 * s1_ref[...] + b1_ref[...], 0.0)
            # zero the pad columns (they stand in for conv2's zero padding;
            # the folded BN bias would otherwise leak into the border).
            col = lax.broadcasted_iota(jnp.int32, (nbr, Wp, 1), 1)
            y1 = jnp.where(col < W, y1.reshape(nbr, Wp, WID), 0.0)
            h1_buf[GUARD + bi0 * Wp:GUARD + (bi0 + nbr) * Wp, :] = (
                y1.reshape(nbr * Wp, WID).astype(cdt))

        # zero the halo rows of h1 at the image borders
        @pl.when(b == 0)
        def _():
            h1_buf[GUARD:GUARD + Wp, :] = jnp.zeros((Wp, WID), cdt)

        @pl.when(b == nb - 1)
        def _():
            h1_buf[GUARD + RB - Wp:GUARD + RB, :] = jnp.zeros((Wp, WID), cdt)

        # ---- conv2 (3x3) + bn2 + relu -> conv3 (1x1) + bn3 + id + relu ------
        # Chunked over image rows; the 9 taps are a chained f32 sum (no VMEM
        # accumulator RMW) and conv3 consumes each chunk directly.
        for ri0 in range(0, TH, CR2):
            nr = min(CR2, TH - ri0)
            cw = nr * Wp
            r0 = ri0 * Wp
            acc = None
            for dh in range(3):
                for dw in range(3):
                    off = GUARD + r0 + dh * Wp + dw - 1
                    # TODO(synk): dw != 1 slices start sublane-unaligned; if
                    # the bundle dump shows relayouts, pre-materialize +/-1-row
                    # shifted copies of h1 once per band instead.
                    t = jnp.dot(h1_buf[off:off + cw, :], w2_ref[dh, dw],
                                preferred_element_type=jnp.float32)
                    acc = t if acc is None else acc + t
            h2 = jnp.maximum(acc * s2_ref[...] + b2_ref[...], 0.0)
            h2 = h2.reshape(nr, Wp, WID)[:, :OW, :].reshape(nr * OW, WID)
            y3 = jnp.dot(h2.astype(cdt), w3_ref[...],
                         preferred_element_type=jnp.float32)
            ident = xband[1 + ri0:1 + ri0 + nr, 0:OW, :]
            ident = ident.reshape(nr * OW, CIN).astype(jnp.float32)
            out = jnp.maximum(y3 * s3_ref[...] + b3_ref[...] + ident, 0.0)
            o_ref[ri0 * OW:(ri0 + nr) * OW, :] = out.astype(o_ref.dtype)

    return kernel


# ---------------- wrapper ----------------

def _pick_band_rows(H, Wp, OW, CIN, WID, COUT, xbytes, cbytes, obytes, budget):
    def est(th):
        rb = (th + 2) * Wp
        return (2 * (th + 2) * Wp * CIN * xbytes            # double-buffered band
                + (rb + GUARD + TAIL) * WID * cbytes        # h1
                + 2 * th * OW * COUT * obytes               # pipelined out block
                + 2 * (CIN * WID + 9 * WID * WID + WID * COUT) * cbytes  # weights
                + 4 * 512 * max(CIN, WID, COUT) * 4         # chunk temporaries
                + (1 << 20))
    divs = [d for d in range(1, H + 1) if H % d == 0]
    fit = [d for d in divs if est(d) <= budget] or [1]
    pref = [d for d in fit if H // d >= 2]                   # keep DMA overlap
    return max(pref or fit)


def bottleneck_pallas_nhwc(x_nhwc, params, *, compute_dtype=jnp.bfloat16,
                           out_dtype=None, band_rows=None):
    """Fused Bottleneck forward on NHWC activations: (N,H,W,Cin)->(N,H,W,Cout)."""
    w1, s1, b1, w2, s2, b2, w3, s3, b3 = params
    N, H, W, Cin = x_nhwc.shape
    width = w1.shape[1]
    Cout = w3.shape[1]
    assert Cin == Cout, "identity residual requires inplanes == planes * expansion"

    cdt = compute_dtype
    odt = compute_dtype if out_dtype is None else out_dtype
    xdt = x_nhwc.dtype

    CIN = _round_up(Cin, LANE)
    WID = _round_up(width, LANE)
    COUT = _round_up(Cout, LANE)

    # padded row width: >= W+1 zero columns on the right provide the right
    # halo and (via row wrap-around) the left halo of the 3x3 conv.
    Wp = _round_up(W + 1, SUB)
    # output row width: compact when layout-preserving, else "wide".
    OW = W if W % SUB == 0 else Wp

    # channel padding to lane width (a no-op for standard ResNet channels)
    xp = _pad_axis(x_nhwc, 3, CIN)

    xbytes = jnp.dtype(xdt).itemsize
    cbytes = jnp.dtype(cdt).itemsize
    obytes = jnp.dtype(odt).itemsize

    try:
        phys_vmem = int(pltpu.get_tpu_info().vmem_capacity_bytes)
    except Exception:
        phys_vmem = 128 << 20
    # cap well under v7x's 64 MiB per-core VMEM; plenty for any sensible band
    vmem_limit = max(32 << 20, min(phys_vmem * 3 // 4, 64 << 20))

    if band_rows is None:
        TH = _pick_band_rows(H, Wp, OW, CIN, WID, COUT, xbytes, cbytes, obytes,
                             budget=vmem_limit * 7 // 10)
    else:
        TH = band_rows
    assert H % TH == 0
    NB = H // TH
    RB = (TH + 2) * Wp
    RW = TH * Wp

    w1p = _pad_axis(_pad_axis(w1, 0, CIN), 1, WID).astype(cdt)
    w2p = _pad_axis(_pad_axis(w2, 2, WID), 3, WID).astype(cdt)
    w3p = _pad_axis(_pad_axis(w3, 0, WID), 1, COUT).astype(cdt)
    s1p = _pad_axis(s1, 1, WID)
    b1p = _pad_axis(b1, 1, WID)
    s2p = _pad_axis(s2, 1, WID)
    b2p = _pad_axis(b2, 1, WID)
    s3p = _pad_axis(s3, 1, COUT)
    b3p = _pad_axis(b3, 1, COUT)

    kernel = _make_kernel(W=W, TH=TH, Wp=Wp, OW=OW, CIN=CIN, WID=WID,
                          COUT=COUT, NB=NB, cdt=cdt, xdt=xdt)

    const2 = lambda n, b: (0, 0)
    in_specs = [
        pl.BlockSpec(memory_space=pl.ANY),                # x stays in HBM
        pl.BlockSpec((CIN, WID), const2),
        pl.BlockSpec((1, WID), const2), pl.BlockSpec((1, WID), const2),
        pl.BlockSpec((3, 3, WID, WID), lambda n, b: (0, 0, 0, 0)),
        pl.BlockSpec((1, WID), const2), pl.BlockSpec((1, WID), const2),
        pl.BlockSpec((WID, COUT), const2),
        pl.BlockSpec((1, COUT), const2), pl.BlockSpec((1, COUT), const2),
    ]
    out_specs = pl.BlockSpec((TH * OW, COUT), lambda n, b: (n * NB + b, 0))

    flops = 2 * N * NB * (RB * CIN * WID + 9 * RW * WID * WID
                          + TH * OW * WID * COUT)
    bytes_accessed = (N * NB * (TH + 2) * W * CIN * xbytes
                      + N * H * OW * COUT * obytes
                      + (CIN * WID + 9 * WID * WID + WID * COUT) * cbytes)

    out_flat = pl.pallas_call(
        kernel,
        out_shape=jax.ShapeDtypeStruct((N * H * OW, COUT), odt),
        grid=(N, NB),
        in_specs=in_specs,
        out_specs=out_specs,
        scratch_shapes=[
            pltpu.VMEM((2, TH + 2, Wp, CIN), xdt),        # double-buffered band
            pltpu.SemaphoreType.DMA((2, 3)),              # [slot, main/top/bot]
            pltpu.VMEM((GUARD + RB + TAIL, WID), cdt),    # conv1 output (band)
        ],
        compiler_params=pltpu.CompilerParams(
            dimension_semantics=("parallel", "arbitrary"),
            vmem_limit_bytes=int(vmem_limit)),
        cost_estimate=pl.CostEstimate(flops=int(flops), transcendentals=0,
                                      bytes_accessed=int(bytes_accessed)),
    )(xp, w1p, s1p, b1p, w2p, s2p, b2p, w3p, s3p, b3p)

    out = out_flat.reshape(N, H, OW, COUT)
    return out[:, :, :W, :Cout]


def bottleneck_pallas(x_nchw, params, *, compute_dtype=jnp.bfloat16,
                      out_dtype=None, band_rows=None):
    """NCHW (PyTorch-layout) convenience wrapper.

    TODO(synk): in a full network keep activations NHWC (+channel-padded,
    bf16) end-to-end and call bottleneck_pallas_nhwc directly; the NCHW<->NHWC
    transposes here are layout plumbing for the PyTorch-shaped interface.
    """
    x_nhwc = jnp.transpose(x_nchw, (0, 2, 3, 1))
    out = bottleneck_pallas_nhwc(x_nhwc, params, compute_dtype=compute_dtype,
                                 out_dtype=out_dtype, band_rows=band_rows)
    return jnp.transpose(out, (0, 3, 1, 2))


# ---------------- reference (plain JAX, for self-check) ----------------

def bottleneck_reference(x_nchw, raw):
    dn = ('NHWC', 'HWIO', 'NHWC')
    x = jnp.transpose(x_nchw, (0, 2, 3, 1))

    def bn(y, p):
        g, b, m, v = p
        return (y - m) / jnp.sqrt(v + BN_EPS) * g + b

    h = lax.conv_general_dilated(x, raw['w1'][None, None], (1, 1), 'VALID',
                                 dimension_numbers=dn)
    h = jax.nn.relu(bn(h, raw['bn1']))
    h = lax.conv_general_dilated(h, raw['w2'], (1, 1), ((1, 1), (1, 1)),
                                 dimension_numbers=dn)
    h = jax.nn.relu(bn(h, raw['bn2']))
    h = lax.conv_general_dilated(h, raw['w3'][None, None], (1, 1), 'VALID',
                                 dimension_numbers=dn)
    h = bn(h, raw['bn3'])
    out = jax.nn.relu(h + x)
    return jnp.transpose(out, (0, 3, 1, 2))


# ---------------- parameter construction ----------------

def fold_bn(p):
    g, b, m, v = p
    scale = g / jnp.sqrt(v + BN_EPS)
    bias = b - m * scale
    return scale[None, :], bias[None, :]


def make_params(key, inplanes, planes, base_width=64, groups=1):
    width = int(planes * (base_width / 64.0)) * groups
    cout = planes * 4  # expansion
    ks = jax.random.split(key, 8)

    def bn_params(k, c):
        k1, k2, k3, k4 = jax.random.split(k, 4)
        gamma = 1.0 + 0.1 * jax.random.normal(k1, (c,), jnp.float32)
        beta = 0.1 * jax.random.normal(k2, (c,), jnp.float32)
        mean = 0.1 * jax.random.normal(k3, (c,), jnp.float32)
        var = jax.random.uniform(k4, (c,), jnp.float32, 0.5, 1.5)
        return (gamma, beta, mean, var)

    raw = {
        'w1': 0.2 * jax.random.normal(ks[0], (inplanes, width), jnp.float32),
        'w2': 0.2 * jax.random.normal(ks[1], (3, 3, width, width), jnp.float32),
        'w3': 0.2 * jax.random.normal(ks[2], (width, cout), jnp.float32),
        'bn1': bn_params(ks[3], width),
        'bn2': bn_params(ks[4], width),
        'bn3': bn_params(ks[5], cout),
    }
    s1, b1 = fold_bn(raw['bn1'])
    s2, b2 = fold_bn(raw['bn2'])
    s3, b3 = fold_bn(raw['bn3'])
    params = (raw['w1'], s1, b1, raw['w2'], s2, b2, raw['w3'], s3, b3)
    return params, raw


if __name__ == "__main__":
    key = jax.random.PRNGKey(0)
    k_x, k_p = jax.random.split(key)

    # Small shapes: N=2, planes=4 -> width=4, Cout=16; inplanes must equal
    # planes*expansion=16 (identity residual, downsample=None), H=W=16.
    N, H, W = 2, 16, 16
    planes = 4
    inplanes = planes * 4

    x = jax.random.normal(k_x, (N, inplanes, H, W), jnp.float32)  # NCHW
    params, raw = make_params(k_p, inplanes, planes)

    ref = jax.block_until_ready(bottleneck_reference(x, raw))

    run = jax.jit(bottleneck_pallas,
                  static_argnames=("compute_dtype", "out_dtype", "band_rows"))

    # exact-precision path (strict correctness check)
    out_f32 = jax.block_until_ready(
        run(x, params, compute_dtype=jnp.float32, out_dtype=jnp.float32))
    assert out_f32.shape == (N, planes * 4, H, W), out_f32.shape
    err32 = float(jnp.max(jnp.abs(out_f32 - ref)))
    assert jnp.allclose(out_f32, ref, rtol=1e-4, atol=1e-4), err32

    # performance configuration: bf16 matmul operands + bf16 output
    out_bf16 = jax.block_until_ready(
        run(x, params, compute_dtype=jnp.bfloat16, out_dtype=jnp.bfloat16))
    errbf = float(jnp.max(jnp.abs(out_bf16.astype(jnp.float32) - ref)))
    assert jnp.allclose(out_bf16.astype(jnp.float32), ref,
                        rtol=1e-1, atol=1e-1), errbf

    # TODO(synk): training-mode BatchNorm (batch statistics + running-stat
    # updates), stride != 1, groups != 1 and the downsample path are not
    # implemented; BN is folded inference-mode scale/bias.
    print("KERNEL_OK")
</pallas_src>

<mosaic_0001>
module attributes {stable_mosaic.version = 11 : i64} {
  func.func @kernel(%arg0: i32, %arg1: i32, %arg2: memref<2x16x16x128xf32, #tpu.memory_space<any>>, %arg3: memref<128x128xf32, #tpu.memory_space<vmem>>, %arg4: memref<1x128xf32, #tpu.memory_space<vmem>>, %arg5: memref<1x128xf32, #tpu.memory_space<vmem>>, %arg6: memref<3x3x128x128xf32, #tpu.memory_space<vmem>>, %arg7: memref<1x128xf32, #tpu.memory_space<vmem>>, %arg8: memref<1x128xf32, #tpu.memory_space<vmem>>, %arg9: memref<128x128xf32, #tpu.memory_space<vmem>>, %arg10: memref<1x128xf32, #tpu.memory_space<vmem>>, %arg11: memref<1x128xf32, #tpu.memory_space<vmem>>, %arg12: memref<128x128xf32, #tpu.memory_space<vmem>>, %arg13: memref<2x10x24x128xf32, #tpu.memory_space<vmem>>, %arg14: memref<2x3x!tpu.dma_semaphore, #tpu.memory_space<semaphore_mem>>, %arg15: memref<256x128xf32, #tpu.memory_space<vmem>>) attributes {dimension_semantics = [#tpu.dimension_semantics<parallel>, #tpu.dimension_semantics<arbitrary>], iteration_bounds = array<i64: 2, 2>, scalar_prefetch = 0 : i64, scratch_operands = 3 : i64, tpu.core_type = #tpu.core_type<tc>, window_params = [{}, {pipeline_mode = #tpu.pipeline_mode<synchronous>, transform_indices = @transform_1, window_bounds = array<i64: 128, 128>}, {pipeline_mode = #tpu.pipeline_mode<synchronous>, transform_indices = @transform_2, window_bounds = array<i64: 1, 128>}, {pipeline_mode = #tpu.pipeline_mode<synchronous>, transform_indices = @transform_3, window_bounds = array<i64: 1, 128>}, {pipeline_mode = #tpu.pipeline_mode<synchronous>, transform_indices = @transform_4, window_bounds = array<i64: 3, 3, 128, 128>}, {pipeline_mode = #tpu.pipeline_mode<synchronous>, transform_indices = @transform_5, window_bounds = array<i64: 1, 128>}, {pipeline_mode = #tpu.pipeline_mode<synchronous>, transform_indices = @transform_6, window_bounds = array<i64: 1, 128>}, {pipeline_mode = #tpu.pipeline_mode<synchronous>, transform_indices = @transform_7, window_bounds = array<i64: 128, 128>}, {pipeline_mode = #tpu.pipeline_mode<synchronous>, transform_indices = @transform_8, window_bounds = array<i64: 1, 128>}, {pipeline_mode = #tpu.pipeline_mode<synchronous>, transform_indices = @transform_9, window_bounds = array<i64: 1, 128>}, {transform_indices = @transform_10, window_bounds = array<i64: 128, 128>}]} {
    %c1_i32 = arith.constant 1 : i32
    %0 = arith.andi %arg1, %c1_i32 : i32
    %c0_i32 = arith.constant 0 : i32
    %1 = arith.cmpi eq, %arg1, %c0_i32 : i32
    %2 = arith.extui %1 : i1 to i32
    %c0_i32_0 = arith.constant 0 : i32
    %3 = arith.cmpi ne, %2, %c0_i32_0 : i32
    scf.if %3 {
      %c8_i32_114 = arith.constant 8 : i32
      %132 = arith.muli %arg1, %c8_i32_114 : i32
      %c0_i32_115 = arith.constant 0 : i32
      %c0_i32_116 = arith.constant 0 : i32
      %c0_i32_117 = arith.constant 0 : i32
      %133 = tpu.memref_slice %arg2[%arg0, %132, %c0_i32_116, %c0_i32_117] : memref<2x16x16x128xf32, #tpu.memory_space<any>> -> memref<1x8x16x128xf32, #tpu.memory_space<any>>
      %134 = tpu.memref_squeeze %133 : memref<1x8x16x128xf32, #tpu.memory_space<any>> -> memref<8x16x128xf32, #tpu.memory_space<any>>
      %c1_i32_118 = arith.constant 1 : i32
      %c0_i32_119 = arith.constant 0 : i32
      %c0_i32_120 = arith.constant 0 : i32
      %135 = tpu.memref_slice %arg13[%0, %c1_i32_118, %c0_i32_119, %c0_i32_120] : memref<2x10x24x128xf32, #tpu.memory_space<vmem>> -> memref<1x8x16x128xf32, #tpu.memory_space<vmem>>
      %136 = tpu.memref_squeeze %135 : memref<1x8x16x128xf32, #tpu.memory_space<vmem>> -> memref<8x16x128xf32, #tpu.memory_space<vmem>>
      %137 = tpu.memref_slice %arg14[%0, %c0_i32_115] : memref<2x3x!tpu.dma_semaphore, #tpu.memory_space<semaphore_mem>> -> memref<1x1x!tpu.dma_semaphore, #tpu.memory_space<semaphore_mem>>
      %138 = tpu.memref_squeeze %137 : memref<1x1x!tpu.dma_semaphore, #tpu.memory_space<semaphore_mem>> -> memref<!tpu.dma_semaphore, #tpu.memory_space<semaphore_mem>>
      tpu.enqueue_dma source(%134 : memref<8x16x128xf32, #tpu.memory_space<any>>) target(%136 : memref<8x16x128xf32, #tpu.memory_space<vmem>>) target_semaphore(%138 : memref<!tpu.dma_semaphore, #tpu.memory_space<semaphore_mem>>)
      %c0_i32_121 = arith.constant 0 : i32
      %139 = arith.cmpi sgt, %arg1, %c0_i32_121 : i32
      %140 = arith.extui %139 : i1 to i32
      %c0_i32_122 = arith.constant 0 : i32
      %141 = arith.cmpi ne, %140, %c0_i32_122 : i32
      scf.if %141 {
        %c8_i32_125 = arith.constant 8 : i32
        %145 = arith.muli %arg1, %c8_i32_125 : i32
        %c1_i32_126 = arith.constant 1 : i32
        %146 = arith.subi %145, %c1_i32_126 : i32
        %c1_i32_127 = arith.constant 1 : i32
        %c0_i32_128 = arith.constant 0 : i32
        %c0_i32_129 = arith.constant 0 : i32
        %147 = tpu.memref_slice %arg2[%arg0, %146, %c0_i32_128, %c0_i32_129] : memref<2x16x16x128xf32, #tpu.memory_space<any>> -> memref<1x1x16x128xf32, #tpu.memory_space<any>>
        %148 = tpu.memref_squeeze %147 : memref<1x1x16x128xf32, #tpu.memory_space<any>> -> memref<1x16x128xf32, #tpu.memory_space<any>>
        %c0_i32_130 = arith.constant 0 : i32
        %c0_i32_131 = arith.constant 0 : i32
        %c0_i32_132 = arith.constant 0 : i32
        %149 = tpu.memref_slice %arg13[%0, %c0_i32_130, %c0_i32_131, %c0_i32_132] : memref<2x10x24x128xf32, #tpu.memory_space<vmem>> -> memref<1x1x16x128xf32, #tpu.memory_space<vmem>>
        %150 = tpu.memref_squeeze %149 : memref<1x1x16x128xf32, #tpu.memory_space<vmem>> -> memref<1x16x128xf32, #tpu.memory_space<vmem>>
        %151 = tpu.memref_slice %arg14[%0, %c1_i32_127] : memref<2x3x!tpu.dma_semaphore, #tpu.memory_space<semaphore_mem>> -> memref<1x1x!tpu.dma_semaphore, #tpu.memory_space<semaphore_mem>>
        %152 = tpu.memref_squeeze %151 : memref<1x1x!tpu.dma_semaphore, #tpu.memory_space<semaphore_mem>> -> memref<!tpu.dma_semaphore, #tpu.memory_space<semaphore_mem>>
        tpu.enqueue_dma source(%148 : memref<1x16x128xf32, #tpu.memory_space<any>>) target(%150 : memref<1x16x128xf32, #tpu.memory_space<vmem>>) target_semaphore(%152 : memref<!tpu.dma_semaphore, #tpu.memory_space<semaphore_mem>>)
      } else {
      }
      %c1_i32_123 = arith.constant 1 : i32
      %142 = arith.cmpi slt, %arg1, %c1_i32_123 : i32
      %143 = arith.extui %142 : i1 to i32
      %c0_i32_124 = arith.constant 0 : i32
      %144 = arith.cmpi ne, %143, %c0_i32_124 : i32
      scf.if %144 {
        %c8_i32_125 = arith.constant 8 : i32
        %145 = arith.muli %arg1, %c8_i32_125 : i32
        %c8_i32_126 = arith.constant 8 : i32
        %146 = arith.addi %145, %c8_i32_126 : i32
        %c2_i32_127 = arith.constant 2 : i32
        %c0_i32_128 = arith.constant 0 : i32
        %c0_i32_129 = arith.constant 0 : i32
        %147 = tpu.memref_slice %arg2[%arg0, %146, %c0_i32_128, %c0_i32_129] : memref<2x16x16x128xf32, #tpu.memory_space<any>> -> memref<1x1x16x128xf32, #tpu.memory_space<any>>
        %148 = tpu.memref_squeeze %147 : memref<1x1x16x128xf32, #tpu.memory_space<any>> -> memref<1x16x128xf32, #tpu.memory_space<any>>
        %c9_i32 = arith.constant 9 : i32
        %c0_i32_130 = arith.constant 0 : i32
        %c0_i32_131 = arith.constant 0 : i32
        %149 = tpu.memref_slice %arg13[%0, %c9_i32, %c0_i32_130, %c0_i32_131] : memref<2x10x24x128xf32, #tpu.memory_space<vmem>> -> memref<1x1x16x128xf32, #tpu.memory_space<vmem>>
        %150 = tpu.memref_squeeze %149 : memref<1x1x16x128xf32, #tpu.memory_space<vmem>> -> memref<1x16x128xf32, #tpu.memory_space<vmem>>
        %151 = tpu.memref_slice %arg14[%0, %c2_i32_127] : memref<2x3x!tpu.dma_semaphore, #tpu.memory_space<semaphore_mem>> -> memref<1x1x!tpu.dma_semaphore, #tpu.memory_space<semaphore_mem>>
        %152 = tpu.memref_squeeze %151 : memref<1x1x!tpu.dma_semaphore, #tpu.memory_space<semaphore_mem>> -> memref<!tpu.dma_semaphore, #tpu.memory_space<semaphore_mem>>
        tpu.enqueue_dma source(%148 : memref<1x16x128xf32, #tpu.memory_space<any>>) target(%150 : memref<1x16x128xf32, #tpu.memory_space<vmem>>) target_semaphore(%152 : memref<!tpu.dma_semaphore, #tpu.memory_space<semaphore_mem>>)
      } else {
      }
    } else {
    }
    %c8_i32 = arith.constant 8 : i32
    %4 = arith.muli %arg1, %c8_i32 : i32
    %c0_i32_1 = arith.constant 0 : i32
    %c0_i32_2 = arith.constant 0 : i32
    %c0_i32_3 = arith.constant 0 : i32
    %5 = tpu.memref_slice %arg2[%arg0, %4, %c0_i32_2, %c0_i32_3] : memref<2x16x16x128xf32, #tpu.memory_space<any>> -> memref<1x8x16x128xf32, #tpu.memory_space<any>>
    %6 = tpu.memref_squeeze %5 : memref<1x8x16x128xf32, #tpu.memory_space<any>> -> memref<8x16x128xf32, #tpu.memory_space<any>>
    %c1_i32_4 = arith.constant 1 : i32
    %c0_i32_5 = arith.constant 0 : i32
    %c0_i32_6 = arith.constant 0 : i32
    %7 = tpu.memref_slice %arg13[%0, %c1_i32_4, %c0_i32_5, %c0_i32_6] : memref<2x10x24x128xf32, #tpu.memory_space<vmem>> -> memref<1x8x16x128xf32, #tpu.memory_space<vmem>>
    %8 = tpu.memref_squeeze %7 : memref<1x8x16x128xf32, #tpu.memory_space<vmem>> -> memref<8x16x128xf32, #tpu.memory_space<vmem>>
    %9 = tpu.memref_slice %arg14[%0, %c0_i32_1] : memref<2x3x!tpu.dma_semaphore, #tpu.memory_space<semaphore_mem>> -> memref<1x1x!tpu.dma_semaphore, #tpu.memory_space<semaphore_mem>>
    %10 = tpu.memref_squeeze %9 : memref<1x1x!tpu.dma_semaphore, #tpu.memory_space<semaphore_mem>> -> memref<!tpu.dma_semaphore, #tpu.memory_space<semaphore_mem>>
    tpu.wait_dma2 semaphore(%10 : memref<!tpu.dma_semaphore, #tpu.memory_space<semaphore_mem>>) src(%6 : memref<8x16x128xf32, #tpu.memory_space<any>>) dst(%8 : memref<8x16x128xf32, #tpu.memory_space<vmem>>)
    %c0_i32_7 = arith.constant 0 : i32
    %11 = arith.cmpi sgt, %arg1, %c0_i32_7 : i32
    %12 = arith.extui %11 : i1 to i32
    %c0_i32_8 = arith.constant 0 : i32
    %13 = arith.cmpi ne, %12, %c0_i32_8 : i32
    scf.if %13 {
      %c8_i32_114 = arith.constant 8 : i32
      %132 = arith.muli %arg1, %c8_i32_114 : i32
      %c1_i32_115 = arith.constant 1 : i32
      %133 = arith.subi %132, %c1_i32_115 : i32
      %c1_i32_116 = arith.constant 1 : i32
      %c0_i32_117 = arith.constant 0 : i32
      %c0_i32_118 = arith.constant 0 : i32
      %134 = tpu.memref_slice %arg2[%arg0, %133, %c0_i32_117, %c0_i32_118] : memref<2x16x16x128xf32, #tpu.memory_space<any>> -> memref<1x1x16x128xf32, #tpu.memory_space<any>>
      %135 = tpu.memref_squeeze %134 : memref<1x1x16x128xf32, #tpu.memory_space<any>> -> memref<1x16x128xf32, #tpu.memory_space<any>>
      %c0_i32_119 = arith.constant 0 : i32
      %c0_i32_120 = arith.constant 0 : i32
      %c0_i32_121 = arith.constant 0 : i32
      %136 = tpu.memref_slice %arg13[%0, %c0_i32_119, %c0_i32_120, %c0_i32_121] : memref<2x10x24x128xf32, #tpu.memory_space<vmem>> -> memref<1x1x16x128xf32, #tpu.memory_space<vmem>>
      %137 = tpu.memref_squeeze %136 : memref<1x1x16x128xf32, #tpu.memory_space<vmem>> -> memref<1x16x128xf32, #tpu.memory_space<vmem>>
      %138 = tpu.memref_slice %arg14[%0, %c1_i32_116] : memref<2x3x!tpu.dma_semaphore, #tpu.memory_space<semaphore_mem>> -> memref<1x1x!tpu.dma_semaphore, #tpu.memory_space<semaphore_mem>>
      %139 = tpu.memref_squeeze %138 : memref<1x1x!tpu.dma_semaphore, #tpu.memory_space<semaphore_mem>> -> memref<!tpu.dma_semaphore, #tpu.memory_space<semaphore_mem>>
      tpu.wait_dma2 semaphore(%139 : memref<!tpu.dma_semaphore, #tpu.memory_space<semaphore_mem>>) src(%135 : memref<1x16x128xf32, #tpu.memory_space<any>>) dst(%137 : memref<1x16x128xf32, #tpu.memory_space<vmem>>)
    } else {
    }
    %c1_i32_9 = arith.constant 1 : i32
    %14 = arith.cmpi slt, %arg1, %c1_i32_9 : i32
    %15 = arith.extui %14 : i1 to i32
    %c0_i32_10 = arith.constant 0 : i32
    %16 = arith.cmpi ne, %15, %c0_i32_10 : i32
    scf.if %16 {
      %c8_i32_114 = arith.constant 8 : i32
      %132 = arith.muli %arg1, %c8_i32_114 : i32
      %c8_i32_115 = arith.constant 8 : i32
      %133 = arith.addi %132, %c8_i32_115 : i32
      %c2_i32_116 = arith.constant 2 : i32
      %c0_i32_117 = arith.constant 0 : i32
      %c0_i32_118 = arith.constant 0 : i32
      %134 = tpu.memref_slice %arg2[%arg0, %133, %c0_i32_117, %c0_i32_118] : memref<2x16x16x128xf32, #tpu.memory_space<any>> -> memref<1x1x16x128xf32, #tpu.memory_space<any>>
      %135 = tpu.memref_squeeze %134 : memref<1x1x16x128xf32, #tpu.memory_space<any>> -> memref<1x16x128xf32, #tpu.memory_space<any>>
      %c9_i32 = arith.constant 9 : i32
      %c0_i32_119 = arith.constant 0 : i32
      %c0_i32_120 = arith.constant 0 : i32
      %136 = tpu.memref_slice %arg13[%0, %c9_i32, %c0_i32_119, %c0_i32_120] : memref<2x10x24x128xf32, #tpu.memory_space<vmem>> -> memref<1x1x16x128xf32, #tpu.memory_space<vmem>>
      %137 = tpu.memref_squeeze %136 : memref<1x1x16x128xf32, #tpu.memory_space<vmem>> -> memref<1x16x128xf32, #tpu.memory_space<vmem>>
      %138 = tpu.memref_slice %arg14[%0, %c2_i32_116] : memref<2x3x!tpu.dma_semaphore, #tpu.memory_space<semaphore_mem>> -> memref<1x1x!tpu.dma_semaphore, #tpu.memory_space<semaphore_mem>>
      %139 = tpu.memref_squeeze %138 : memref<1x1x!tpu.dma_semaphore, #tpu.memory_space<semaphore_mem>> -> memref<!tpu.dma_semaphore, #tpu.memory_space<semaphore_mem>>
      tpu.wait_dma2 semaphore(%139 : memref<!tpu.dma_semaphore, #tpu.memory_space<semaphore_mem>>) src(%135 : memref<1x16x128xf32, #tpu.memory_space<any>>) dst(%137 : memref<1x16x128xf32, #tpu.memory_space<vmem>>)
    } else {
    }
    %c0_i32_11 = arith.constant 0 : i32
    %17 = arith.cmpi eq, %arg1, %c0_i32_11 : i32
    %18 = arith.extui %17 : i1 to i32
    %c0_i32_12 = arith.constant 0 : i32
    %19 = arith.cmpi ne, %18, %c0_i32_12 : i32
    scf.if %19 {
      %cst_114 = arith.constant 0.000000e+00 : f32
      %132 = vector.broadcast %cst_114 : f32 to vector<2x10x8x128xf32>
      %c0_115 = arith.constant 0 : index
      %c0_116 = arith.constant 0 : index
      %c16 = arith.constant 16 : index
      %c0_117 = arith.constant 0 : index
      %133 = vector.load %arg13[%c0_115, %c0_116, %c16, %c0_117] : memref<2x10x24x128xf32, #tpu.memory_space<vmem>>, vector<2x10x8x128xf32>
      tpu.vector_store %arg13[%c0_115, %c0_116, %c16, %c0_117], %132 {strides = array<i32>} : memref<2x10x24x128xf32, #tpu.memory_space<vmem>>, vector<2x10x8x128xf32>,
      %cst_118 = arith.constant 0.000000e+00 : f32
      %134 = vector.broadcast %cst_118 : f32 to vector<1x24x128xf32>
      %c0_119 = arith.constant 0 : index
      %c0_120 = arith.constant 0 : index
      %c0_121 = arith.constant 0 : index
      %c0_122 = arith.constant 0 : index
      %135 = vector.load %arg13[%c0_119, %c0_120, %c0_121, %c0_122] : memref<2x10x24x128xf32, #tpu.memory_space<vmem>>, vector<1x1x24x128xf32>
      %136 = vector.shape_cast %135 : vector<1x1x24x128xf32> to vector<1x24x128xf32>
      %137 = vector.shape_cast %134 : vector<1x24x128xf32> to vector<1x1x24x128xf32>
      tpu.vector_store %arg13[%c0_119, %c0_120, %c0_121, %c0_122], %137 {strides = array<i32>} : memref<2x10x24x128xf32, #tpu.memory_space<vmem>>, vector<1x1x24x128xf32>,
    } else {
    }
    %c1_i32_13 = arith.constant 1 : i32
    %20 = arith.cmpi eq, %arg1, %c1_i32_13 : i32
    %21 = arith.extui %20 : i1 to i32
    %c0_i32_14 = arith.constant 0 : i32
    %22 = arith.cmpi ne, %21, %c0_i32_14 : i32
    scf.if %22 {
      %cst_114 = arith.constant 0.000000e+00 : f32
      %132 = vector.broadcast %cst_114 : f32 to vector<1x24x128xf32>
      %c1_115 = arith.constant 1 : index
      %c9_116 = arith.constant 9 : index
      %c0_117 = arith.constant 0 : index
      %c0_118 = arith.constant 0 : index
      %133 = vector.load %arg13[%c1_115, %c9_116, %c0_117, %c0_118] : memref<2x10x24x128xf32, #tpu.memory_space<vmem>>, vector<1x1x24x128xf32>
      %134 = vector.shape_cast %133 : vector<1x1x24x128xf32> to vector<1x24x128xf32>
      %135 = vector.shape_cast %132 : vector<1x24x128xf32> to vector<1x1x24x128xf32>
      tpu.vector_store %arg13[%c1_115, %c9_116, %c0_117, %c0_118], %135 {strides = array<i32>} : memref<2x10x24x128xf32, #tpu.memory_space<vmem>>, vector<1x1x24x128xf32>,
    } else {
    }
    %c1_i32_15 = arith.constant 1 : i32
    %23 = arith.addi %arg1, %c1_i32_15 : i32
    %c2_i32 = arith.constant 2 : i32
    %24 = arith.cmpi slt, %23, %c2_i32 : i32
    %25 = arith.extui %24 : i1 to i32
    %c0_i32_16 = arith.constant 0 : i32
    %26 = arith.cmpi ne, %25, %c0_i32_16 : i32
    scf.if %26 {
      %c1_i32_114 = arith.constant 1 : i32
      %132 = arith.addi %arg1, %c1_i32_114 : i32
      %c1_i32_115 = arith.constant 1 : i32
      %133 = arith.subi %c1_i32_115, %0 : i32
      %c8_i32_116 = arith.constant 8 : i32
      %134 = arith.muli %132, %c8_i32_116 : i32
      %c0_i32_117 = arith.constant 0 : i32
      %c0_i32_118 = arith.constant 0 : i32
      %c0_i32_119 = arith.constant 0 : i32
      %135 = tpu.memref_slice %arg2[%arg0, %134, %c0_i32_118, %c0_i32_119] : memref<2x16x16x128xf32, #tpu.memory_space<any>> -> memref<1x8x16x128xf32, #tpu.memory_space<any>>
      %136 = tpu.memref_squeeze %135 : memref<1x8x16x128xf32, #tpu.memory_space<any>> -> memref<8x16x128xf32, #tpu.memory_space<any>>
      %c1_i32_120 = arith.constant 1 : i32
      %c0_i32_121 = arith.constant 0 : i32
      %c0_i32_122 = arith.constant 0 : i32
      %137 = tpu.memref_slice %arg13[%133, %c1_i32_120, %c0_i32_121, %c0_i32_122] : memref<2x10x24x128xf32, #tpu.memory_space<vmem>> -> memref<1x8x16x128xf32, #tpu.memory_space<vmem>>
      %138 = tpu.memref_squeeze %137 : memref<1x8x16x128xf32, #tpu.memory_space<vmem>> -> memref<8x16x128xf32, #tpu.memory_space<vmem>>
      %139 = tpu.memref_slice %arg14[%133, %c0_i32_117] : memref<2x3x!tpu.dma_semaphore, #tpu.memory_space<semaphore_mem>> -> memref<1x1x!tpu.dma_semaphore, #tpu.memory_space<semaphore_mem>>
      %140 = tpu.memref_squeeze %139 : memref<1x1x!tpu.dma_semaphore, #tpu.memory_space<semaphore_mem>> -> memref<!tpu.dma_semaphore, #tpu.memory_space<semaphore_mem>>
      tpu.enqueue_dma source(%136 : memref<8x16x128xf32, #tpu.memory_space<any>>) target(%138 : memref<8x16x128xf32, #tpu.memory_space<vmem>>) target_semaphore(%140 : memref<!tpu.dma_semaphore, #tpu.memory_space<semaphore_mem>>)
      %c0_i32_123 = arith.constant 0 : i32
      %141 = arith.cmpi sgt, %132, %c0_i32_123 : i32
      %142 = arith.extui %141 : i1 to i32
      %c0_i32_124 = arith.constant 0 : i32
      %143 = arith.cmpi ne, %142, %c0_i32_124 : i32
      scf.if %143 {
        %c8_i32_127 = arith.constant 8 : i32
        %147 = arith.muli %132, %c8_i32_127 : i32
        %c1_i32_128 = arith.constant 1 : i32
        %148 = arith.subi %147, %c1_i32_128 : i32
        %c1_i32_129 = arith.constant 1 : i32
        %c0_i32_130 = arith.constant 0 : i32
        %c0_i32_131 = arith.constant 0 : i32
        %149 = tpu.memref_slice %arg2[%arg0, %148, %c0_i32_130, %c0_i32_131] : memref<2x16x16x128xf32, #tpu.memory_space<any>> -> memref<1x1x16x128xf32, #tpu.memory_space<any>>
        %150 = tpu.memref_squeeze %149 : memref<1x1x16x128xf32, #tpu.memory_space<any>> -> memref<1x16x128xf32, #tpu.memory_space<any>>
        %c0_i32_132 = arith.constant 0 : i32
        %c0_i32_133 = arith.constant 0 : i32
        %c0_i32_134 = arith.constant 0 : i32
        %151 = tpu.memref_slice %arg13[%133, %c0_i32_132, %c0_i32_133, %c0_i32_134] : memref<2x10x24x128xf32, #tpu.memory_space<vmem>> -> memref<1x1x16x128xf32, #tpu.memory_space<vmem>>
        %152 = tpu.memref_squeeze %151 : memref<1x1x16x128xf32, #tpu.memory_space<vmem>> -> memref<1x16x128xf32, #tpu.memory_space<vmem>>
        %153 = tpu.memref_slice %arg14[%133, %c1_i32_129] : memref<2x3x!tpu.dma_semaphore, #tpu.memory_space<semaphore_mem>> -> memref<1x1x!tpu.dma_semaphore, #tpu.memory_space<semaphore_mem>>
        %154 = tpu.memref_squeeze %153 : memref<1x1x!tpu.dma_semaphore, #tpu.memory_space<semaphore_mem>> -> memref<!tpu.dma_semaphore, #tpu.memory_space<semaphore_mem>>
        tpu.enqueue_dma source(%150 : memref<1x16x128xf32, #tpu.memory_space<any>>) target(%152 : memref<1x16x128xf32, #tpu.memory_space<vmem>>) target_semaphore(%154 : memref<!tpu.dma_semaphore, #tpu.memory_space<semaphore_mem>>)
      } else {
      }
      %c1_i32_125 = arith.constant 1 : i32
      %144 = arith.cmpi slt, %132, %c1_i32_125 : i32
      %145 = arith.extui %144 : i1 to i32
      %c0_i32_126 = arith.constant 0 : i32
      %146 = arith.cmpi ne, %145, %c0_i32_126 : i32
      scf.if %146 {
        %c8_i32_127 = arith.constant 8 : i32
        %147 = arith.muli %132, %c8_i32_127 : i32
        %c8_i32_128 = arith.constant 8 : i32
        %148 = arith.addi %147, %c8_i32_128 : i32
        %c2_i32_129 = arith.constant 2 : i32
        %c0_i32_130 = arith.constant 0 : i32
        %c0_i32_131 = arith.constant 0 : i32
        %149 = tpu.memref_slice %arg2[%arg0, %148, %c0_i32_130, %c0_i32_131] : memref<2x16x16x128xf32, #tpu.memory_space<any>> -> memref<1x1x16x128xf32, #tpu.memory_space<any>>
        %150 = tpu.memref_squeeze %149 : memref<1x1x16x128xf32, #tpu.memory_space<any>> -> memref<1x16x128xf32, #tpu.memory_space<any>>
        %c9_i32 = arith.constant 9 : i32
        %c0_i32_132 = arith.constant 0 : i32
        %c0_i32_133 = arith.constant 0 : i32
        %151 = tpu.memref_slice %arg13[%133, %c9_i32, %c0_i32_132, %c0_i32_133] : memref<2x10x24x128xf32, #tpu.memory_space<vmem>> -> memref<1x1x16x128xf32, #tpu.memory_space<vmem>>
        %152 = tpu.memref_squeeze %151 : memref<1x1x16x128xf32, #tpu.memory_space<vmem>> -> memref<1x16x128xf32, #tpu.memory_space<vmem>>
        %153 = tpu.memref_slice %arg14[%133, %c2_i32_129] : memref<2x3x!tpu.dma_semaphore, #tpu.memory_space<semaphore_mem>> -> memref<1x1x!tpu.dma_semaphore, #tpu.memory_space<semaphore_mem>>
        %154 = tpu.memref_squeeze %153 : memref<1x1x!tpu.dma_semaphore, #tpu.memory_space<semaphore_mem>> -> memref<!tpu.dma_semaphore, #tpu.memory_space<semaphore_mem>>
        tpu.enqueue_dma source(%150 : memref<1x16x128xf32, #tpu.memory_space<any>>) target(%152 : memref<1x16x128xf32, #tpu.memory_space<vmem>>) target_semaphore(%154 : memref<!tpu.dma_semaphore, #tpu.memory_space<semaphore_mem>>)
      } else {
      }
    } else {
    }
    %cst = arith.constant 0.000000e+00 : f32
    %27 = vector.broadcast %cst : f32 to vector<8x128xf32>
    %c0 = arith.constant 0 : index
    %c0_17 = arith.constant 0 : index
    %28 = vector.load %arg15[%c0, %c0_17] : memref<256x128xf32, #tpu.memory_space<vmem>>, vector<8x128xf32>
    tpu.vector_store %arg15[%c0, %c0_17], %27 {strides = array<i32>} : memref<256x128xf32, #tpu.memory_space<vmem>>, vector<8x128xf32>,
    %cst_18 = arith.constant 0.000000e+00 : f32
    %29 = vector.broadcast %cst_18 : f32 to vector<8x128xf32>
    %c248 = arith.constant 248 : index
    %c0_19 = arith.constant 0 : index
    %30 = vector.load %arg15[%c248, %c0_19] : memref<256x128xf32, #tpu.memory_space<vmem>>, vector<8x128xf32>
    tpu.vector_store %arg15[%c248, %c0_19], %29 {strides = array<i32>} : memref<256x128xf32, #tpu.memory_space<vmem>>, vector<8x128xf32>,
    %c0_i32_20 = arith.constant 0 : i32
    %c0_i32_21 = arith.constant 0 : i32
    %c0_i32_22 = arith.constant 0 : i32
    %31 = tpu.memref_slice %arg13[%0, %c0_i32_20, %c0_i32_21, %c0_i32_22] : memref<2x10x24x128xf32, #tpu.memory_space<vmem>> -> memref<1x10x24x128xf32, #tpu.memory_space<vmem>>
    %32 = tpu.memref_squeeze %31 : memref<1x10x24x128xf32, #tpu.memory_space<vmem>> -> memref<10x24x128xf32, #tpu.memory_space<vmem>>
    %c0_23 = arith.constant 0 : index
    %c0_24 = arith.constant 0 : index
    %c0_25 = arith.constant 0 : index
    %33 = vector.load %32[%c0_23, %c0_24, %c0_25] : memref<10x24x128xf32, #tpu.memory_space<vmem>>, vector<10x24x128xf32>
    %34 = vector.shape_cast %33 : vector<10x24x128xf32> to vector<240x128xf32>
    %c0_26 = arith.constant 0 : index
    %c0_27 = arith.constant 0 : index
    %35 = vector.load %arg3[%c0_26, %c0_27] : memref<128x128xf32, #tpu.memory_space<vmem>>, vector<128x128xf32>
    %cst_28 = arith.constant dense<0.000000e+00> : vector<240x128xf32>
    %36 = tpu.matmul %34, %35, %cst_28 {dimension_numbers = #tpu.dot_dimension_numbers<[1], [0], [0], [1], [0, 0, 1, 1], [], []>} : vector<240x128xf32>, vector<128x128xf32>, vector<240x128xf32> -> vector<240x128xf32>
    %c0_29 = arith.constant 0 : index
    %c0_30 = arith.constant 0 : index
    %37 = vector.load %arg4[%c0_29, %c0_30] : memref<1x128xf32, #tpu.memory_space<vmem>>, vector<1x128xf32>
    %38 = vector.broadcast %37 : vector<1x128xf32> to vector<240x128xf32>
    %39 = arith.mulf %36, %38 : vector<240x128xf32>
    %c0_31 = arith.constant 0 : index
    %c0_32 = arith.constant 0 : index
    %40 = vector.load %arg5[%c0_31, %c0_32] : memref<1x128xf32, #tpu.memory_space<vmem>>, vector<1x128xf32>
    %41 = vector.broadcast %40 : vector<1x128xf32> to vector<240x128xf32>
    %42 = arith.addf %39, %41 : vector<240x128xf32>
    %cst_33 = arith.constant 0.000000e+00 : f32
    %43 = vector.broadcast %cst_33 : f32 to vector<240x128xf32>
    %44 = arith.maximumf %42, %43 : vector<240x128xf32>
    %45 = tpu.iota {dimensions = array<i32: 1>} : vector<10x24x1xi32>
    %c16_i32 = arith.constant 16 : i32
    %46 = vector.broadcast %c16_i32 : i32 to vector<10x24x1xi32>
    %47 = arith.cmpi slt, %45, %46 : vector<10x24x1xi32>
    %48 = vector.shape_cast %44 : vector<240x128xf32> to vector<10x24x128xf32>
    %cst_34 = arith.constant 0.000000e+00 : f32
    %49 = vector.shape_cast %47 : vector<10x24x1xi1> to vector<10x24x1xi1>
    %50 = vector.broadcast %49 : vector<10x24x1xi1> to vector<10x24x128xi1>
    %51 = vector.broadcast %cst_34 : f32 to vector<10x24x128xf32>
    %52 = arith.select %50, %48, %51 : vector<10x24x128xi1>, vector<10x24x128xf32>
    %53 = vector.shape_cast %52 : vector<10x24x128xf32> to vector<240x128xf32>
    %c8 = arith.constant 8 : index
    %c0_35 = arith.constant 0 : index
    %54 = vector.load %arg15[%c8, %c0_35] : memref<256x128xf32, #tpu.memory_space<vmem>>, vector<240x128xf32>
    tpu.vector_store %arg15[%c8, %c0_35], %53 {strides = array<i32>} : memref<256x128xf32, #tpu.memory_space<vmem>>, vector<240x128xf32>,
    %c0_i32_36 = arith.constant 0 : i32
    %55 = arith.cmpi eq, %arg1, %c0_i32_36 : i32
    %56 = arith.extui %55 : i1 to i32
    %c0_i32_37 = arith.constant 0 : i32
    %57 = arith.cmpi ne, %56, %c0_i32_37 : i32
    scf.if %57 {
      %cst_114 = arith.constant 0.000000e+00 : f32
      %132 = vector.broadcast %cst_114 : f32 to vector<24x128xf32>
      %c8_115 = arith.constant 8 : index
      %c0_116 = arith.constant 0 : index
      %133 = vector.load %arg15[%c8_115, %c0_116] : memref<256x128xf32, #tpu.memory_space<vmem>>, vector<24x128xf32>
      tpu.vector_store %arg15[%c8_115, %c0_116], %132 {strides = array<i32>} : memref<256x128xf32, #tpu.memory_space<vmem>>, vector<24x128xf32>,
    } else {
    }
    %c1_i32_38 = arith.constant 1 : i32
    %58 = arith.cmpi eq, %arg1, %c1_i32_38 : i32
    %59 = arith.extui %58 : i1 to i32
    %c0_i32_39 = arith.constant 0 : i32
    %60 = arith.cmpi ne, %59, %c0_i32_39 : i32
    scf.if %60 {
      %cst_114 = arith.constant 0.000000e+00 : f32
      %132 = vector.broadcast %cst_114 : f32 to vector<24x128xf32>
      %c224 = arith.constant 224 : index
      %c0_115 = arith.constant 0 : index
      %133 = vector.load %arg15[%c224, %c0_115] : memref<256x128xf32, #tpu.memory_space<vmem>>, vector<24x128xf32>
      tpu.vector_store %arg15[%c224, %c0_115], %132 {strides = array<i32>} : memref<256x128xf32, #tpu.memory_space<vmem>>, vector<24x128xf32>,
    } else {
    }
    %c7 = arith.constant 7 : index
    %c0_40 = arith.constant 0 : index
    %61 = vector.load %arg15[%c7, %c0_40] : memref<256x128xf32, #tpu.memory_space<vmem>>, vector<192x128xf32>
    %c0_41 = arith.constant 0 : index
    %c0_42 = arith.constant 0 : index
    %c0_43 = arith.constant 0 : index
    %c0_44 = arith.constant 0 : index
    %62 = vector.load %arg6[%c0_41, %c0_42, %c0_43, %c0_44] : memref<3x3x128x128xf32, #tpu.memory_space<vmem>>, vector<1x1x128x128xf32>
    %63 = vector.shape_cast %62 : vector<1x1x128x128xf32> to vector<128x128xf32>
    %cst_45 = arith.constant dense<0.000000e+00> : vector<192x128xf32>
    %64 = tpu.matmul %61, %63, %cst_45 {dimension_numbers = #tpu.dot_dimension_numbers<[1], [0], [0], [1], [0, 0, 1, 1], [], []>} : vector<192x128xf32>, vector<128x128xf32>, vector<192x128xf32> -> vector<192x128xf32>
    %c8_46 = arith.constant 8 : index
    %c0_47 = arith.constant 0 : index
    %65 = vector.load %arg15[%c8_46, %c0_47] : memref<256x128xf32, #tpu.memory_space<vmem>>, vector<192x128xf32>
    %c0_48 = arith.constant 0 : index
    %c1 = arith.constant 1 : index
    %c0_49 = arith.constant 0 : index
    %c0_50 = arith.constant 0 : index
    %66 = vector.load %arg6[%c0_48, %c1, %c0_49, %c0_50] : memref<3x3x128x128xf32, #tpu.memory_space<vmem>>, vector<1x1x128x128xf32>
    %67 = vector.shape_cast %66 : vector<1x1x128x128xf32> to vector<128x128xf32>
    %cst_51 = arith.constant dense<0.000000e+00> : vector<192x128xf32>
    %68 = tpu.matmul %65, %67, %cst_51 {dimension_numbers = #tpu.dot_dimension_numbers<[1], [0], [0], [1], [0, 0, 1, 1], [], []>} : vector<192x128xf32>, vector<128x128xf32>, vector<192x128xf32> -> vector<192x128xf32>
    %69 = arith.addf %64, %68 : vector<192x128xf32>
    %c9 = arith.constant 9 : index
    %c0_52 = arith.constant 0 : index
    %70 = vector.load %arg15[%c9, %c0_52] : memref<256x128xf32, #tpu.memory_space<vmem>>, vector<192x128xf32>
    %c0_53 = arith.constant 0 : index
    %c2 = arith.constant 2 : index
    %c0_54 = arith.constant 0 : index
    %c0_55 = arith.constant 0 : index
    %71 = vector.load %arg6[%c0_53, %c2, %c0_54, %c0_55] : memref<3x3x128x128xf32, #tpu.memory_space<vmem>>, vector<1x1x128x128xf32>
    %72 = vector.shape_cast %71 : vector<1x1x128x128xf32> to vector<128x128xf32>
    %cst_56 = arith.constant dense<0.000000e+00> : vector<192x128xf32>
    %73 = tpu.matmul %70, %72, %cst_56 {dimension_numbers = #tpu.dot_dimension_numbers<[1], [0], [0], [1], [0, 0, 1, 1], [], []>} : vector<192x128xf32>, vector<128x128xf32>, vector<192x128xf32> -> vector<192x128xf32>
    %74 = arith.addf %69, %73 : vector<192x128xf32>
    %c31 = arith.constant 31 : index
    %c0_57 = arith.constant 0 : index
    %75 = vector.load %arg15[%c31, %c0_57] : memref<256x128xf32, #tpu.memory_space<vmem>>, vector<192x128xf32>
    %c1_58 = arith.constant 1 : index
    %c0_59 = arith.constant 0 : index
    %c0_60 = arith.constant 0 : index
    %c0_61 = arith.constant 0 : index
    %76 = vector.load %arg6[%c1_58, %c0_59, %c0_60, %c0_61] : memref<3x3x128x128xf32, #tpu.memory_space<vmem>>, vector<1x1x128x128xf32>
    %77 = vector.shape_cast %76 : vector<1x1x128x128xf32> to vector<128x128xf32>
    %cst_62 = arith.constant dense<0.000000e+00> : vector<192x128xf32>
    %78 = tpu.matmul %75, %77, %cst_62 {dimension_numbers = #tpu.dot_dimension_numbers<[1], [0], [0], [1], [0, 0, 1, 1], [], []>} : vector<192x128xf32>, vector<128x128xf32>, vector<192x128xf32> -> vector<192x128xf32>
    %79 = arith.addf %74, %78 : vector<192x128xf32>
    %c32 = arith.constant 32 : index
    %c0_63 = arith.constant 0 : index
    %80 = vector.load %arg15[%c32, %c0_63] : memref<256x128xf32, #tpu.memory_space<vmem>>, vector<192x128xf32>
    %c1_64 = arith.constant 1 : index
    %c1_65 = arith.constant 1 : index
    %c0_66 = arith.constant 0 : index
    %c0_67 = arith.constant 0 : index
    %81 = vector.load %arg6[%c1_64, %c1_65, %c0_66, %c0_67] : memref<3x3x128x128xf32, #tpu.memory_space<vmem>>, vector<1x1x128x128xf32>
    %82 = vector.shape_cast %81 : vector<1x1x128x128xf32> to vector<128x128xf32>
    %cst_68 = arith.constant dense<0.000000e+00> : vector<192x128xf32>
    %83 = tpu.matmul %80, %82, %cst_68 {dimension_numbers = #tpu.dot_dimension_numbers<[1], [0], [0], [1], [0, 0, 1, 1], [], []>} : vector<192x128xf32>, vector<128x128xf32>, vector<192x128xf32> -> vector<192x128xf32>
    %84 = arith.addf %79, %83 : vector<192x128xf32>
    %c33 = arith.constant 33 : index
    %c0_69 = arith.constant 0 : index
    %85 = vector.load %arg15[%c33, %c0_69] : memref<256x128xf32, #tpu.memory_space<vmem>>, vector<192x128xf32>
    %c1_70 = arith.constant 1 : index
    %c2_71 = arith.constant 2 : index
    %c0_72 = arith.constant 0 : index
    %c0_73 = arith.constant 0 : index
    %86 = vector.load %arg6[%c1_70, %c2_71, %c0_72, %c0_73] : memref<3x3x128x128xf32, #tpu.memory_space<vmem>>, vector<1x1x128x128xf32>
    %87 = vector.shape_cast %86 : vector<1x1x128x128xf32> to vector<128x128xf32>
    %cst_74 = arith.constant dense<0.000000e+00> : vector<192x128xf32>
    %88 = tpu.matmul %85, %87, %cst_74 {dimension_numbers = #tpu.dot_dimension_numbers<[1], [0], [0], [1], [0, 0, 1, 1], [], []>} : vector<192x128xf32>, vector<128x128xf32>, vector<192x128xf32> -> vector<192x128xf32>
    %89 = arith.addf %84, %88 : vector<192x128xf32>
    %c55 = arith.constant 55 : index
    %c0_75 = arith.constant 0 : index
    %90 = vector.load %arg15[%c55, %c0_75] : memref<256x128xf32, #tpu.memory_space<vmem>>, vector<192x128xf32>
    %c2_76 = arith.constant 2 : index
    %c0_77 = arith.constant 0 : index
    %c0_78 = arith.constant 0 : index
    %c0_79 = arith.constant 0 : index
    %91 = vector.load %arg6[%c2_76, %c0_77, %c0_78, %c0_79] : memref<3x3x128x128xf32, #tpu.memory_space<vmem>>, vector<1x1x128x128xf32>
    %92 = vector.shape_cast %91 : vector<1x1x128x128xf32> to vector<128x128xf32>
    %cst_80 = arith.constant dense<0.000000e+00> : vector<192x128xf32>
    %93 = tpu.matmul %90, %92, %cst_80 {dimension_numbers = #tpu.dot_dimension_numbers<[1], [0], [0], [1], [0, 0, 1, 1], [], []>} : vector<192x128xf32>, vector<128x128xf32>, vector<192x128xf32> -> vector<192x128xf32>
    %94 = arith.addf %89, %93 : vector<192x128xf32>
    %c56 = arith.constant 56 : index
    %c0_81 = arith.constant 0 : index
    %95 = vector.load %arg15[%c56, %c0_81] : memref<256x128xf32, #tpu.memory_space<vmem>>, vector<192x128xf32>
    %c2_82 = arith.constant 2 : index
    %c1_83 = arith.constant 1 : index
    %c0_84 = arith.constant 0 : index
    %c0_85 = arith.constant 0 : index
    %96 = vector.load %arg6[%c2_82, %c1_83, %c0_84, %c0_85] : memref<3x3x128x128xf32, #tpu.memory_space<vmem>>, vector<1x1x128x128xf32>
    %97 = vector.shape_cast %96 : vector<1x1x128x128xf32> to vector<128x128xf32>
    %cst_86 = arith.constant dense<0.000000e+00> : vector<192x128xf32>
    %98 = tpu.matmul %95, %97, %cst_86 {dimension_numbers = #tpu.dot_dimension_numbers<[1], [0], [0], [1], [0, 0, 1, 1], [], []>} : vector<192x128xf32>, vector<128x128xf32>, vector<192x128xf32> -> vector<192x128xf32>
    %99 = arith.addf %94, %98 : vector<192x128xf32>
    %c57 = arith.constant 57 : index
    %c0_87 = arith.constant 0 : index
    %100 = vector.load %arg15[%c57, %c0_87] : memref<256x128xf32, #tpu.memory_space<vmem>>, vector<192x128xf32>
    %c2_88 = arith.constant 2 : index
    %c2_89 = arith.constant 2 : index
    %c0_90 = arith.constant 0 : index
    %c0_91 = arith.constant 0 : index
    %101 = vector.load %arg6[%c2_88, %c2_89, %c0_90, %c0_91] : memref<3x3x128x128xf32, #tpu.memory_space<vmem>>, vector<1x1x128x128xf32>
    %102 = vector.shape_cast %101 : vector<1x1x128x128xf32> to vector<128x128xf32>
    %cst_92 = arith.constant dense<0.000000e+00> : vector<192x128xf32>
    %103 = tpu.matmul %100, %102, %cst_92 {dimension_numbers = #tpu.dot_dimension_numbers<[1], [0], [0], [1], [0, 0, 1, 1], [], []>} : vector<192x128xf32>, vector<128x128xf32>, vector<192x128xf32> -> vector<192x128xf32>
    %104 = arith.addf %99, %103 : vector<192x128xf32>
    %c0_93 = arith.constant 0 : index
    %c0_94 = arith.constant 0 : index
    %105 = vector.load %arg7[%c0_93, %c0_94] : memref<1x128xf32, #tpu.memory_space<vmem>>, vector<1x128xf32>
    %106 = vector.broadcast %105 : vector<1x128xf32> to vector<192x128xf32>
    %107 = arith.mulf %104, %106 : vector<192x128xf32>
    %c0_95 = arith.constant 0 : index
    %c0_96 = arith.constant 0 : index
    %108 = vector.load %arg8[%c0_95, %c0_96] : memref<1x128xf32, #tpu.memory_space<vmem>>, vector<1x128xf32>
    %109 = vector.broadcast %108 : vector<1x128xf32> to vector<192x128xf32>
    %110 = arith.addf %107, %109 : vector<192x128xf32>
    %cst_97 = arith.constant 0.000000e+00 : f32
    %111 = vector.broadcast %cst_97 : f32 to vector<192x128xf32>
    %112 = arith.maximumf %110, %111 : vector<192x128xf32>
    %113 = vector.shape_cast %112 : vector<192x128xf32> to vector<8x24x128xf32>
    %114 = vector.extract_strided_slice %113 {offsets = [0, 0, 0], sizes = [8, 16, 128], strides = [1, 1, 1]} : vector<8x24x128xf32> to vector<8x16x128xf32>
    %115 = vector.shape_cast %114 : vector<8x16x128xf32> to vector<128x128xf32>
    %c0_98 = arith.constant 0 : index
    %c0_99 = arith.constant 0 : index
    %116 = vector.load %arg9[%c0_98, %c0_99] : memref<128x128xf32, #tpu.memory_space<vmem>>, vector<128x128xf32>
    %cst_100 = arith.constant dense<0.000000e+00> : vector<128x128xf32>
    %117 = tpu.matmul %115, %116, %cst_100 {dimension_numbers = #tpu.dot_dimension_numbers<[1], [0], [0], [1], [0, 0, 1, 1], [], []>} : vector<128x128xf32>, vector<128x128xf32>, vector<128x128xf32> -> vector<128x128xf32>
    %c0_i32_101 = arith.constant 0 : i32
    %c0_i32_102 = arith.constant 0 : i32
    %c0_i32_103 = arith.constant 0 : i32
    %118 = tpu.memref_slice %arg13[%0, %c0_i32_101, %c0_i32_102, %c0_i32_103] : memref<2x10x24x128xf32, #tpu.memory_space<vmem>> -> memref<1x10x24x128xf32, #tpu.memory_space<vmem>>
    %119 = tpu.memref_squeeze %118 : memref<1x10x24x128xf32, #tpu.memory_space<vmem>> -> memref<10x24x128xf32, #tpu.memory_space<vmem>>
    %c1_104 = arith.constant 1 : index
    %c0_105 = arith.constant 0 : index
    %c0_106 = arith.constant 0 : index
    %120 = vector.load %119[%c1_104, %c0_105, %c0_106] : memref<10x24x128xf32, #tpu.memory_space<vmem>>, vector<8x16x128xf32>
    %121 = vector.shape_cast %120 : vector<8x16x128xf32> to vector<128x128xf32>
    %c0_107 = arith.constant 0 : index
    %c0_108 = arith.constant 0 : index
    %122 = vector.load %arg10[%c0_107, %c0_108] : memref<1x128xf32, #tpu.memory_space<vmem>>, vector<1x128xf32>
    %123 = vector.broadcast %122 : vector<1x128xf32> to vector<128x128xf32>
    %124 = arith.mulf %117, %123 : vector<128x128xf32>
    %c0_109 = arith.constant 0 : index
    %c0_110 = arith.constant 0 : index
    %125 = vector.load %arg11[%c0_109, %c0_110] : memref<1x128xf32, #tpu.memory_space<vmem>>, vector<1x128xf32>
    %126 = vector.broadcast %125 : vector<1x128xf32> to vector<128x128xf32>
    %127 = arith.addf %124, %126 : vector<128x128xf32>
    %128 = arith.addf %127, %121 : vector<128x128xf32>
    %cst_111 = arith.constant 0.000000e+00 : f32
    %129 = vector.broadcast %cst_111 : f32 to vector<128x128xf32>
    %130 = arith.maximumf %128, %129 : vector<128x128xf32>
    %c0_112 = arith.constant 0 : index
    %c0_113 = arith.constant 0 : index
    %131 = vector.load %arg12[%c0_112, %c0_113] : memref<128x128xf32, #tpu.memory_space<vmem>>, vector<128x128xf32>
    tpu.vector_store %arg12[%c0_112, %c0_113], %130 {strides = array<i32>} : memref<128x128xf32, #tpu.memory_space<vmem>>, vector<128x128xf32>,
    return
  }
  func.func @transform_1(%arg0: i32, %arg1: i32) -> (i32, i32) {
    %c0_i32 = arith.constant 0 : i32
    %c0_i32_0 = arith.constant 0 : i32
    %c0_i32_1 = arith.constant 0 : i32
    return %c0_i32, %c0_i32_0 : i32, i32
  }
  func.func @transform_2(%arg0: i32, %arg1: i32) -> (i32, i32) {
    %c0_i32 = arith.constant 0 : i32
    %c0_i32_0 = arith.constant 0 : i32
    %c0_i32_1 = arith.constant 0 : i32
    return %c0_i32, %c0_i32_0 : i32, i32
  }
  func.func @transform_3(%arg0: i32, %arg1: i32) -> (i32, i32) {
    %c0_i32 = arith.constant 0 : i32
    %c0_i32_0 = arith.constant 0 : i32
    %c0_i32_1 = arith.constant 0 : i32
    return %c0_i32, %c0_i32_0 : i32, i32
  }
  func.func @transform_4(%arg0: i32, %arg1: i32) -> (i32, i32, i32, i32) {
    %c0_i32 = arith.constant 0 : i32
    %c0_i32_0 = arith.constant 0 : i32
    %c0_i32_1 = arith.constant 0 : i32
    %c0_i32_2 = arith.constant 0 : i32
    %c0_i32_3 = arith.constant 0 : i32
    return %c0_i32, %c0_i32_0, %c0_i32_1, %c0_i32_2 : i32, i32, i32, i32
  }
  func.func @transform_5(%arg0: i32, %arg1: i32) -> (i32, i32) {
    %c0_i32 = arith.constant 0 : i32
    %c0_i32_0 = arith.constant 0 : i32
    %c0_i32_1 = arith.constant 0 : i32
    return %c0_i32, %c0_i32_0 : i32, i32
  }
  func.func @transform_6(%arg0: i32, %arg1: i32) -> (i32, i32) {
    %c0_i32 = arith.constant 0 : i32
    %c0_i32_0 = arith.constant 0 : i32
    %c0_i32_1 = arith.constant 0 : i32
    return %c0_i32, %c0_i32_0 : i32, i32
  }
  func.func @transform_7(%arg0: i32, %arg1: i32) -> (i32, i32) {
    %c0_i32 = arith.constant 0 : i32
    %c0_i32_0 = arith.constant 0 : i32
    %c0_i32_1 = arith.constant 0 : i32
    return %c0_i32, %c0_i32_0 : i32, i32
  }
  func.func @transform_8(%arg0: i32, %arg1: i32) -> (i32, i32) {
    %c0_i32 = arith.constant 0 : i32
    %c0_i32_0 = arith.constant 0 : i32
    %c0_i32_1 = arith.constant 0 : i32
    return %c0_i32, %c0_i32_0 : i32, i32
  }
  func.func @transform_9(%arg0: i32, %arg1: i32) -> (i32, i32) {
    %c0_i32 = arith.constant 0 : i32
    %c0_i32_0 = arith.constant 0 : i32
    %c0_i32_1 = arith.constant 0 : i32
    return %c0_i32, %c0_i32_0 : i32, i32
  }
  func.func @transform_10(%arg0: i32, %arg1: i32) -> (i32, i32) {
    %c2_i32 = arith.constant 2 : i32
    %0 = arith.muli %arg0, %c2_i32 : i32
    %1 = arith.addi %0, %arg1 : i32
    %c0_i32 = arith.constant 0 : i32
    %c0_i32_0 = arith.constant 0 : i32
    return %1, %c0_i32 : i32, i32
  }
}

</mosaic_0001>

<llo_original>
// kernel: bottleneck_pallas.1
$region0: #{bottleneck_pallas.1}
  #allocation0 [shape = 'u32[]', space=smem, size = 0x4, offset = 0x4, fixed_abs, tag = 'smem constant byte address 0x4 - core index']
  #allocation1 [shape = 'u32[72,128]{1,0:T(1,128)}', space=vmem, size = 0x9000, scoped, tag = 'internal scratch']
  #allocation2 [shape = 'f32[2,10,24,128]{3,2,1,0:T(8,128)}', space=vmem, size = 0x3c000, scoped, tag = 'scratch operand']
  #allocation3 [shape = 's32[6]{0}', space=sflag, size = 0x18, scoped, tag = 'scratch operand']
  #allocation4 [shape = 'f32[256,128]{1,0:T(8,128)}', space=vmem, size = 0x20000, scoped, tag = 'scratch operand']
  #allocation5 [shape = 's32[]', space=sflag, size = 0x4, offset = 0, fixed_abs, tag = 'sflag constant byte address 0x0 - dummy sync flag']
  #allocation6 [shape = 's32[]', space=sflag, size = 0x4, offset = 0, fixed_abs, tag = 'sflag constant byte address 0x0 - dummy sync flag']
  #allocation7 [shape = 's32[]', space=sflag, size = 0x4, offset = 0, fixed_abs, tag = 'sflag constant byte address 0x0 - dummy sync flag']
  #allocation8 [shape = 's32[]', space=sflag, size = 0x4, offset = 0, fixed_abs, tag = 'sflag constant byte address 0x0 - dummy sync flag']
  #allocation9 [shape = 's32[]', space=sflag, size = 0x4, offset = 0, fixed_abs, tag = 'sflag constant byte address 0x0 - dummy sync flag']
  #allocation10 [shape = 's32[]', space=sflag, size = 0x4, offset = 0, fixed_abs, tag = 'sflag constant byte address 0x0 - dummy sync flag']
  %s0 = inlined_call_operand.vmem [shape: f32[2,16,16,128], index: 0, kind: input, shape index: {}]
  %s1 = inlined_call_operand.vmem [shape: f32[128,128], index: 1, kind: input, shape index: {}]
  %s2 = inlined_call_operand.vmem [shape: f32[1,128], index: 2, kind: input, shape index: {}]
  %s3 = inlined_call_operand.vmem [shape: f32[1,128], index: 3, kind: input, shape index: {}]
  %s4 = inlined_call_operand.vmem [shape: f32[3,3,128,128], index: 4, kind: input, shape index: {}]
  %s5 = inlined_call_operand.vmem [shape: f32[1,128], index: 5, kind: input, shape index: {}]
  %s6 = inlined_call_operand.vmem [shape: f32[1,128], index: 6, kind: input, shape index: {}]
  %s7 = inlined_call_operand.vmem [shape: f32[128,128], index: 7, kind: input, shape index: {}]
  %s8 = inlined_call_operand.vmem [shape: f32[1,128], index: 8, kind: input, shape index: {}]
  %s9 = inlined_call_operand.vmem [shape: f32[1,128], index: 9, kind: input, shape index: {}]
  %s10 = inlined_call_operand.vmem [shape: f32[512,128], index: 10, kind: output, shape index: {}]
  %s11 = sld [smem:[#allocation0]]
  $region231: #{bottleneck_pallas.1} parent=0
    _
  %s13 = ssub.s32 1, %s11
  %s14 = scalar_select 0, %s13, %s11
  loop: start=0, step=1, limit=6
  $region2: #{bottleneck_pallas.1} parent=0 // loop_pre_header
    _
  $region3: #{bottleneck_pallas.1} parent=0 // loop_header
    %s16 = sphi 0, %s20
    %p17 = scmp.ge.s32.totalorder %s16, 6
    %s23 = sphi 0, %s35
    %s24 = sphi 0, %s31
    %s25 = sphi 0, %s23
    %s26 = sphi 0, %s24
    %s27 = sphi 0, %s25
    %s28 = sphi 0, %s26
    %s36 = sphi 0, %s36
    %s38 = sphi 0, %s36
    %s39 = sphi 0, %s38
    %s53 = sphi 0, %s39
    %s57 = sphi 0, %s57
    %s59 = sphi 0, %s57
    %s60 = sphi 0, %s59
    %s74 = sphi 0, %s60
    %s78 = sphi 0, %s78
    %s80 = sphi 0, %s78
    %s81 = sphi 0, %s80
    %s95 = sphi 0, %s81
    %s99 = sphi 0, %s99
    %s101 = sphi 0, %s99
    %s102 = sphi 0, %s101
    %s116 = sphi 0, %s102
    %s120 = sphi 0, %s120
    %s122 = sphi 0, %s120
    %s123 = sphi 0, %s122
    %s137 = sphi 0, %s123
    %s141 = sphi 0, %s141
    %s143 = sphi 0, %s141
    %s144 = sphi 0, %s143
    %s158 = sphi 0, %s144
    %s162 = sphi 0, %s162
    %s164 = sphi 0, %s162
    %s165 = sphi 0, %s164
    %s179 = sphi 0, %s165
    %s183 = sphi 0, %s183
    %s185 = sphi 0, %s183
    %s186 = sphi 0, %s185
    %s200 = sphi 0, %s186
    %s204 = sphi 0, %s204
    %s206 = sphi 0, %s204
    %s207 = sphi 0, %s206
    %s221 = sphi 0, %s207
    %s231 = sphi 0, %s233
    %s234 = sphi 0, %s231
    %s235 = sphi 0, %s234
    %s251 = sphi 0, %s235
  $region4: #{bottleneck_pallas.1} parent=0 // loop_header_branch
    %19 = sbr.rel (%p17) target = $region8
  $region5: #{bottleneck_pallas.1} parent=0 // loop_body
    %s21 = ssub.s32 %s16, 1
    %s22 = ssub.s32 %s16, 2
    %s29 = sadd.s32 1, %s24
    %p30 = scmp.ge.s32.totalorder %s29, 2
    %s31 = scalar_select %p30, 0, %s29
    %s32 = sadd.s32 1, %s23
    %s33 = scalar_select %p30, %s32, %s23
    %p34 = scmp.ge.s32.totalorder %s33, 2
    %s35 = scalar_select %p34, 0, %s33
    %s37 = sadd.s32 %s36, 1
    %p40 = scmp.eq.s32.totalorder %s16, 3
    %p41 = scmp.ne.s32.totalorder %s36, %s38
    %p42 = scmp.eq.s32.totalorder %s16, 0
    %p43 = por %p41, %p42
    %p44 = scmp.ne.s32.totalorder %s36, %s38
    %p45 = scmp.eq.s32.totalorder %s21, 3
    %p46 = por %p44, %p45
    %p47 = scmp.ne.s32.totalorder %s38, %s39
    %p48 = scmp.eq.s32.totalorder %s21, 0
    %p49 = por %p47, %p48
    %p50 = scmp.ne.s32.totalorder %s38, %s39
    %p51 = scmp.eq.s32.totalorder %s22, 3
    %p52 = por %p50, %p51
    %p54 = scmp.ne.s32.totalorder %s39, %s53
    %p55 = scmp.eq.s32.totalorder %s22, 0
    %p56 = por %p54, %p55
    %s58 = sadd.s32 %s57, 1
    %p61 = scmp.eq.s32.totalorder %s16, 3
    %p62 = scmp.ne.s32.totalorder %s57, %s59
    %p63 = scmp.eq.s32.totalorder %s16, 0
    %p64 = por %p62, %p63
    %p65 = scmp.ne.s32.totalorder %s57, %s59
    %p66 = scmp.eq.s32.totalorder %s21, 3
    %p67 = por %p65, %p66
    %p68 = scmp.ne.s32.totalorder %s59, %s60
    %p69 = scmp.eq.s32.totalorder %s21, 0
    %p70 = por %p68, %p69
    %p71 = scmp.ne.s32.totalorder %s59, %s60
    %p72 = scmp.eq.s32.totalorder %s22, 3
    %p73 = por %p71, %p72
    %p75 = scmp.ne.s32.totalorder %s60, %s74
    %p76 = scmp.eq.s32.totalorder %s22, 0
    %p77 = por %p75, %p76
    %s79 = sadd.s32 %s78, 1
    %p82 = scmp.eq.s32.totalorder %s16, 3
    %p83 = scmp.ne.s32.totalorder %s78, %s80
    %p84 = scmp.eq.s32.totalorder %s16, 0
    %p85 = por %p83, %p84
    %p86 = scmp.ne.s32.totalorder %s78, %s80
    %p87 = scmp.eq.s32.totalorder %s21, 3
    %p88 = por %p86, %p87
    %p89 = scmp.ne.s32.totalorder %s80, %s81
    %p90 = scmp.eq.s32.totalorder %s21, 0
    %p91 = por %p89, %p90
    %p92 = scmp.ne.s32.totalorder %s80, %s81
    %p93 = scmp.eq.s32.totalorder %s22, 3
    %p94 = por %p92, %p93
    %p96 = scmp.ne.s32.totalorder %s81, %s95
    %p97 = scmp.eq.s32.totalorder %s22, 0
    %p98 = por %p96, %p97
    %s100 = sadd.s32 %s99, 1
    %p103 = scmp.eq.s32.totalorder %s16, 3
    %p104 = scmp.ne.s32.totalorder %s99, %s101
    %p105 = scmp.eq.s32.totalorder %s16, 0
    %p106 = por %p104, %p105
    %p107 = scmp.ne.s32.totalorder %s99, %s101
    %p108 = scmp.eq.s32.totalorder %s21, 3
    %p109 = por %p107, %p108
    %p110 = scmp.ne.s32.totalorder %s101, %s102
    %p111 = scmp.eq.s32.totalorder %s21, 0
    %p112 = por %p110, %p111
    %p113 = scmp.ne.s32.totalorder %s101, %s102
    %p114 = scmp.eq.s32.totalorder %s22, 3
    %p115 = por %p113, %p114
    %p117 = scmp.ne.s32.totalorder %s102, %s116
    %p118 = scmp.eq.s32.totalorder %s22, 0
    %p119 = por %p117, %p118
    %s121 = sadd.s32 %s120, 1
    %p124 = scmp.eq.s32.totalorder %s16, 3
    %p125 = scmp.ne.s32.totalorder %s120, %s122
    %p126 = scmp.eq.s32.totalorder %s16, 0
    %p127 = por %p125, %p126
    %p128 = scmp.ne.s32.totalorder %s120, %s122
    %p129 = scmp.eq.s32.totalorder %s21, 3
    %p130 = por %p128, %p129
    %p131 = scmp.ne.s32.totalorder %s122, %s123
    %p132 = scmp.eq.s32.totalorder %s21, 0
    %p133 = por %p131, %p132
    %p134 = scmp.ne.s32.totalorder %s122, %s123
    %p135 = scmp.eq.s32.totalorder %s22, 3
    %p136 = por %p134, %p135
    %p138 = scmp.ne.s32.totalorder %s123, %s137
    %p139 = scmp.eq.s32.totalorder %s22, 0
    %p140 = por %p138, %p139
    %s142 = sadd.s32 %s141, 1
    %p145 = scmp.eq.s32.totalorder %s16, 3
    %p146 = scmp.ne.s32.totalorder %s141, %s143
    %p147 = scmp.eq.s32.totalorder %s16, 0
    %p148 = por %p146, %p147
    %p149 = scmp.ne.s32.totalorder %s141, %s143
    %p150 = scmp.eq.s32.totalorder %s21, 3
    %p151 = por %p149, %p150
    %p152 = scmp.ne.s32.totalorder %s143, %s144
    %p153 = scmp.eq.s32.totalorder %s21, 0
    %p154 = por %p152, %p153
    %p155 = scmp.ne.s32.totalorder %s143, %s144
    %p156 = scmp.eq.s32.totalorder %s22, 3
    %p157 = por %p155, %p156
    %p159 = scmp.ne.s32.totalorder %s144, %s158
    %p160 = scmp.eq.s32.totalorder %s22, 0
    %p161 = por %p159, %p160
    %s163 = sadd.s32 %s162, 1
    %p166 = scmp.eq.s32.totalorder %s16, 3
    %p167 = scmp.ne.s32.totalorder %s162, %s164
    %p168 = scmp.eq.s32.totalorder %s16, 0
    %p169 = por %p167, %p168
    %p170 = scmp.ne.s32.totalorder %s162, %s164
    %p171 = scmp.eq.s32.totalorder %s21, 3
    %p172 = por %p170, %p171
    %p173 = scmp.ne.s32.totalorder %s164, %s165
    %p174 = scmp.eq.s32.totalorder %s21, 0
    %p175 = por %p173, %p174
    %p176 = scmp.ne.s32.totalorder %s164, %s165
    %p177 = scmp.eq.s32.totalorder %s22, 3
    %p178 = por %p176, %p177
    %p180 = scmp.ne.s32.totalorder %s165, %s179
    %p181 = scmp.eq.s32.totalorder %s22, 0
    %p182 = por %p180, %p181
    %s184 = sadd.s32 %s183, 1
    %p187 = scmp.eq.s32.totalorder %s16, 3
    %p188 = scmp.ne.s32.totalorder %s183, %s185
    %p189 = scmp.eq.s32.totalorder %s16, 0
    %p190 = por %p188, %p189
    %p191 = scmp.ne.s32.totalorder %s183, %s185
    %p192 = scmp.eq.s32.totalorder %s21, 3
    %p193 = por %p191, %p192
    %p194 = scmp.ne.s32.totalorder %s185, %s186
    %p195 = scmp.eq.s32.totalorder %s21, 0
    %p196 = por %p194, %p195
    %p197 = scmp.ne.s32.totalorder %s185, %s186
    %p198 = scmp.eq.s32.totalorder %s22, 3
    %p199 = por %p197, %p198
    %p201 = scmp.ne.s32.totalorder %s186, %s200
    %p202 = scmp.eq.s32.totalorder %s22, 0
    %p203 = por %p201, %p202
    %s205 = sadd.s32 %s204, 1
    %p208 = scmp.eq.s32.totalorder %s16, 3
    %p209 = scmp.ne.s32.totalorder %s204, %s206
    %p210 = scmp.eq.s32.totalorder %s16, 0
    %p211 = por %p209, %p210
    %p212 = scmp.ne.s32.totalorder %s204, %s206
    %p213 = scmp.eq.s32.totalorder %s21, 3
    %p214 = por %p212, %p213
    %p215 = scmp.ne.s32.totalorder %s206, %s207
    %p216 = scmp.eq.s32.totalorder %s21, 0
    %p217 = por %p215, %p216
    %p218 = scmp.ne.s32.totalorder %s206, %s207
    %p219 = scmp.eq.s32.totalorder %s22, 3
    %p220 = por %p218, %p219
    %p222 = scmp.ne.s32.totalorder %s207, %s221
    %p223 = scmp.eq.s32.totalorder %s22, 0
    %p224 = por %p222, %p223
    %s225 = smul.u32 %s23, 2
    %s226 = sadd.s32 %s225, %s24
    %s227 = smul.u32 %s35, 2
    %s228 = sadd.s32 %s227, %s31
    %s229 = ssub.s32 %s226, %s228
    %p230 = scmp.eq.s32.totalorder %s229, 0
    %s232 = sadd.s32 %s231, 1
    %s233 = scalar_select %p230, %s231, %s232
    %p236 = pneg %p230
    %p237 = scmp.eq.s32.totalorder %s16, 3
    %p238 = por %p236, %p237
    %p239 = scmp.ne.s32.totalorder %s231, %s234
    %p240 = scmp.eq.s32.totalorder %s16, 0
    %p241 = por %p239, %p240
    %p242 = scmp.ne.s32.totalorder %s231, %s234
    %p243 = scmp.eq.s32.totalorder %s21, 3
    %p244 = por %p242, %p243
    %p245 = scmp.ne.s32.totalorder %s234, %s235
    %p246 = scmp.eq.s32.totalorder %s21, 0
    %p247 = por %p245, %p246
    %p248 = scmp.ne.s32.totalorder %s234, %s235
    %p249 = scmp.eq.s32.totalorder %s22, 3
    %p250 = por %p248, %p249
    %p252 = scmp.ne.s32.totalorder %s235, %s251
    %p253 = scmp.eq.s32.totalorder %s22, 0
    %p254 = por %p252, %p253
    %p255 = scmp.le.s32.totalorder 1, %s16
    %p256 = scmp.lt.s32.totalorder %s16, 5
    %p257 = pnand %p255, %p256
    %p258 = pneg %p257
    // Predicated region
    $region9: #{bottleneck_pallas.1} parent=5 // pred_check
      _
    $region10: #{bottleneck_pallas.1} parent=5 // pred_check_branch
      %260 = sbr.rel (%p257) target = $region12
    $region11: #{bottleneck_pallas.1} parent=5 // pred_region
      %s261 = ssub.s32 %s16, 1
      // Predicated region
      $region13: #{bottleneck_pallas.1} parent=11 // pred_check
        %p262 = pneg %p49
      $region14: #{bottleneck_pallas.1} parent=11 // pred_check_branch
        %264 = sbr.rel (%p262) target = $region16
      $region15: #{bottleneck_pallas.1} parent=11 // pred_region
        _
      $region16: #{bottleneck_pallas.1} parent=11 // pred_fallthru
        _
      // Predicated region
      $region17: #{bottleneck_pallas.1} parent=11 // pred_check
        %p265 = pneg %p70
      $region18: #{bottleneck_pallas.1} parent=11 // pred_check_branch
        %267 = sbr.rel (%p265) target = $region20
      $region19: #{bottleneck_pallas.1} parent=11 // pred_region
        _
      $region20: #{bottleneck_pallas.1} parent=11 // pred_fallthru
        _
      // Predicated region
      $region21: #{bottleneck_pallas.1} parent=11 // pred_check
        %p268 = pneg %p91
      $region22: #{bottleneck_pallas.1} parent=11 // pred_check_branch
        %270 = sbr.rel (%p268) target = $region24
      $region23: #{bottleneck_pallas.1} parent=11 // pred_region
        _
      $region24: #{bottleneck_pallas.1} parent=11 // pred_fallthru
        _
      // Predicated region
      $region25: #{bottleneck_pallas.1} parent=11 // pred_check
        %p271 = pneg %p112
      $region26: #{bottleneck_pallas.1} parent=11 // pred_check_branch
        %273 = sbr.rel (%p271) target = $region28
      $region27: #{bottleneck_pallas.1} parent=11 // pred_region
        _
      $region28: #{bottleneck_pallas.1} parent=11 // pred_fallthru
        _
      // Predicated region
      $region29: #{bottleneck_pallas.1} parent=11 // pred_check
        %p274 = pneg %p133
      $region30: #{bottleneck_pallas.1} parent=11 // pred_check_branch
        %276 = sbr.rel (%p274) target = $region32
      $region31: #{bottleneck_pallas.1} parent=11 // pred_region
        _
      $region32: #{bottleneck_pallas.1} parent=11 // pred_fallthru
        _
      // Predicated region
      $region33: #{bottleneck_pallas.1} parent=11 // pred_check
        %p277 = pneg %p154
      $region34: #{bottleneck_pallas.1} parent=11 // pred_check_branch
        %279 = sbr.rel (%p277) target = $region36
      $region35: #{bottleneck_pallas.1} parent=11 // pred_region
        _
      $region36: #{bottleneck_pallas.1} parent=11 // pred_fallthru
        _
      // Predicated region
      $region37: #{bottleneck_pallas.1} parent=11 // pred_check
        %p280 = pneg %p175
      $region38: #{bottleneck_pallas.1} parent=11 // pred_check_branch
        %282 = sbr.rel (%p280) target = $region40
      $region39: #{bottleneck_pallas.1} parent=11 // pred_region
        _
      $region40: #{bottleneck_pallas.1} parent=11 // pred_fallthru
        _
      // Predicated region
      $region41: #{bottleneck_pallas.1} parent=11 // pred_check
        %p283 = pneg %p196
      $region42: #{bottleneck_pallas.1} parent=11 // pred_check_branch
        %285 = sbr.rel (%p283) target = $region44
      $region43: #{bottleneck_pallas.1} parent=11 // pred_region
        _
      $region44: #{bottleneck_pallas.1} parent=11 // pred_fallthru
        _
      // Predicated region
      $region45: #{bottleneck_pallas.1} parent=11 // pred_check
        %p286 = pneg %p217
      $region46: #{bottleneck_pallas.1} parent=11 // pred_check_branch
        %288 = sbr.rel (%p286) target = $region48
      $region47: #{bottleneck_pallas.1} parent=11 // pred_region
        _
      $region48: #{bottleneck_pallas.1} parent=11 // pred_fallthru
        _
    $region12: #{bottleneck_pallas.1} parent=5 // pred_fallthru
      _
    %p289 = scmp.lt.s32.totalorder %s16, 4
    // Predicated region
    $region49: #{bottleneck_pallas.1} parent=5 // pred_check
      %p290 = pneg %p289
    $region50: #{bottleneck_pallas.1} parent=5 // pred_check_branch
      %292 = sbr.rel (%p290) target = $region52
    $region51: #{bottleneck_pallas.1} parent=5 // pred_region
      _
    $region52: #{bottleneck_pallas.1} parent=5 // pred_fallthru
      _
    %p293 = scmp.le.s32.totalorder 1, %s16
    %p294 = scmp.lt.s32.totalorder %s16, 5
    %p295 = pnand %p293, %p294
    %p296 = pneg %p295
    // Predicated region
    $region53: #{bottleneck_pallas.1} parent=5 // pred_check
      _
    $region54: #{bottleneck_pallas.1} parent=5 // pred_check_branch
      %298 = sbr.rel (%p295) target = $region56
    $region55: #{bottleneck_pallas.1} parent=5 // pred_region
      %s299 = ssub.s32 %s16, 1
      %p300 = pneg %p49
      %p301 = pneg %p46
      %p302 = pneg %p70
      %p303 = pneg %p67
      %p304 = pneg %p91
      %p305 = pneg %p88
      %p306 = pneg %p112
      %p307 = pneg %p109
      %p308 = pneg %p133
      %p309 = pneg %p130
      %p310 = pneg %p154
      %p311 = pneg %p151
      %p312 = pneg %p175
      %p313 = pneg %p172
      %p314 = pneg %p196
      %p315 = pneg %p193
      %p316 = pneg %p217
      %p317 = pneg %p214
      %p318 = pneg %p247
      %p319 = pneg %p244
      %s320 = smul.u32 %s25, 2
      %s321 = sadd.s32 %s320, %s26
      %s322 = smul.u32 16, %s321
      %p323 = scmp.lt.s32.totalorder %s322, 63
      %s324 = scalar_select %p323, %s322, 63
      %s325 = smul.addr %s324, 8
      %s326 = scalar_lea.vmem %s10, %s325
      %s327 = smul.u32 %s25, 2
      %s328 = sadd.s32 %s327, %s26
      %s329 = smul.u32 16, %s328
      %p330 = scmp.lt.s32.totalorder %s329, 63
      %s331 = scalar_select %p330, %s329, 63
      %s332 = smul.addr %s331, 8
      %s333 = scalar_lea.vmem %s10, %s332
      %s334 = smul.u32 %s25, 2
      %s335 = sadd.s32 %s334, %s26
      %s336 = smul.u32 16, %s335
      %s337 = sand.u32 %s26, 1
      %p338 = scmp.eq.s32.totalorder %s26, 0
      // Predicated region
      $region57: #{bottleneck_pallas.1} parent=55 // pred_check
        %p339 = pneg %p338
      $region58: #{bottleneck_pallas.1} parent=55 // pred_check_branch
        %341 = sbr.rel (%p339) target = $region60
      $region59: #{bottleneck_pallas.1} parent=55 // pred_region
        %s342 = smul.u32 %s26, 8
        %s343 = smul.u32 %s342, 16
        %s344 = smul.u32 %s25, 256
        %s345 = sadd.s32 %s343, %s344
        %s346 = scalar_lea.vmem %s0, %s345
        %s347 = smul.u32 %s337, 240
        %s348 = sadd.s32 24, %s347
        %s349 = scalar_lea.vmem [#allocation2], %s348
        %s350 = smul.u32 %s337, 3
        %s351 = scalar_lea.sflag [#allocation3], %s350
        // Predicated region
        $region61: #{bottleneck_pallas.1} parent=59 // pred_check
          _
        $region62: #{bottleneck_pallas.1} parent=59 // pred_check_branch
          %353 = sbr.rel (0) target = $region64
        $region63: #{bottleneck_pallas.1} parent=59 // pred_region
          loop: start=0, step=1, limit=1
          $region65: #{bottleneck_pallas.1} parent=63 // loop_pre_header
            _
          $region66: #{bottleneck_pallas.1} parent=63 // loop_header
            %s355 = sphi 0, %s359
            %p356 = scmp.ge.s32.totalorder %s355, 1
            %s360 = sphi %s346, %s346
            %s361 = sphi %s349, %s349
          $region67: #{bottleneck_pallas.1} parent=63 // loop_header_branch
            %358 = sbr.rel (%p356) target = $region71
          $region68: #{bottleneck_pallas.1} parent=63 // loop_body
            %v362 = vld [vmem:[%s360] sm:$0xff]
            %363 = vst [vmem:[%s361] sm:$0xff] %v362
            %v364 = vld [vmem:[%s360 + $0x8] sm:$0xff]
            %365 = vst [vmem:[%s361 + $0x8] sm:$0xff] %v364
            %v366 = vld [vmem:[%s360 + $0x10] sm:$0xff]
            %367 = vst [vmem:[%s361 + $0x18] sm:$0xff] %v366
            %v368 = vld [vmem:[%s360 + $0x18] sm:$0xff]
            %369 = vst [vmem:[%s361 + $0x20] sm:$0xff] %v368
            %v370 = vld [vmem:[%s360 + $0x20] sm:$0xff]
            %371 = vst [vmem:[%s361 + $0x30] sm:$0xff] %v370
            %v372 = vld [vmem:[%s360 + $0x28] sm:$0xff]
            %373 = vst [vmem:[%s361 + $0x38] sm:$0xff] %v372
            %v374 = vld [vmem:[%s360 + $0x30] sm:$0xff]
            %375 = vst [vmem:[%s361 + $0x48] sm:$0xff] %v374
            %v376 = vld [vmem:[%s360 + $0x38] sm:$0xff]
            %377 = vst [vmem:[%s361 + $0x50] sm:$0xff] %v376
            %v378 = vld [vmem:[%s360 + $0x40] sm:$0xff]
            %379 = vst [vmem:[%s361 + $0x60] sm:$0xff] %v378
            %v380 = vld [vmem:[%s360 + $0x48] sm:$0xff]
            %381 = vst [vmem:[%s361 + $0x68] sm:$0xff] %v380
            %v382 = vld [vmem:[%s360 + $0x50] sm:$0xff]
            %383 = vst [vmem:[%s361 + $0x78] sm:$0xff] %v382
            %v384 = vld [vmem:[%s360 + $0x58] sm:$0xff]
            %385 = vst [vmem:[%s361 + $0x80] sm:$0xff] %v384
            %v386 = vld [vmem:[%s360 + $0x60] sm:$0xff]
            %387 = vst [vmem:[%s361 + $0x90] sm:$0xff] %v386
            %v388 = vld [vmem:[%s360 + $0x68] sm:$0xff]
            %389 = vst [vmem:[%s361 + $0x98] sm:$0xff] %v388
            %v390 = vld [vmem:[%s360 + $0x70] sm:$0xff]
            %391 = vst [vmem:[%s361 + $0xa8] sm:$0xff] %v390
            %v392 = vld [vmem:[%s360 + $0x78] sm:$0xff]
            %393 = vst [vmem:[%s361 + $0xb0] sm:$0xff] %v392
          $region69: #{bottleneck_pallas.1} parent=63 // loop_footer
            %s359 = sadd.s32 1, %s355
          $region70: #{bottleneck_pallas.1} parent=63 // loop_footer_branch
            %354 = sbr.rel target = $region66
          $region71: #{bottleneck_pallas.1} parent=63 // loop_exit
            _
        $region64: #{bottleneck_pallas.1} parent=59 // pred_fallthru
          _
        // Predicated region
        $region72: #{bottleneck_pallas.1} parent=59 // pred_check
          _
        $region73: #{bottleneck_pallas.1} parent=59 // pred_check_branch
          %395 = sbr.rel target = $region75
        $region74: #{bottleneck_pallas.1} parent=59 // pred_region
          _
        $region75: #{bottleneck_pallas.1} parent=59 // pred_fallthru
          _
        // Predicated region
        $region76: #{bottleneck_pallas.1} parent=59 // pred_check
          _
        $region77: #{bottleneck_pallas.1} parent=59 // pred_check_branch
          %398 = sbr.rel (0) target = $region79
        $region78: #{bottleneck_pallas.1} parent=59 // pred_region
          %399 = vsyncadd %s351, 2048
        $region79: #{bottleneck_pallas.1} parent=59 // pred_fallthru
          _
        %p400 = scmp.gt.s32.totalorder %s26, 0
        // Predicated region
        $region80: #{bottleneck_pallas.1} parent=59 // pred_check
          %p401 = pneg %p400
        $region81: #{bottleneck_pallas.1} parent=59 // pred_check_branch
          %403 = sbr.rel (%p401) target = $region83
        $region82: #{bottleneck_pallas.1} parent=59 // pred_region
          %s404 = ssub.s32 %s342, 1
          %s405 = smul.u32 %s404, 16
          %s406 = sadd.s32 %s405, %s344
          %s407 = scalar_lea.vmem %s0, %s406
          %s408 = scalar_lea.vmem [#allocation2], %s347
          %s409 = sadd.s32 1, %s350
          %s410 = scalar_lea.sflag [#allocation3], %s409
          // Predicated region
          $region84: #{bottleneck_pallas.1} parent=82 // pred_check
            _
          $region85: #{bottleneck_pallas.1} parent=82 // pred_check_branch
            %412 = sbr.rel (0) target = $region87
          $region86: #{bottleneck_pallas.1} parent=82 // pred_region
            loop: start=0, step=1, limit=1
            $region88: #{bottleneck_pallas.1} parent=86 // loop_pre_header
              _
            $region89: #{bottleneck_pallas.1} parent=86 // loop_header
              %s414 = sphi 0, %s418
              %p415 = scmp.ge.s32.totalorder %s414, 1
              %s419 = sphi %s407, %s407
              %s420 = sphi %s408, %s408
            $region90: #{bottleneck_pallas.1} parent=86 // loop_header_branch
              %417 = sbr.rel (%p415) target = $region94
            $region91: #{bottleneck_pallas.1} parent=86 // loop_body
              %v421 = vld [vmem:[%s419] sm:$0xff]
              %422 = vst [vmem:[%s420] sm:$0xff] %v421
              %v423 = vld [vmem:[%s419 + $0x8] sm:$0xff]
              %424 = vst [vmem:[%s420 + $0x8] sm:$0xff] %v423
            $region92: #{bottleneck_pallas.1} parent=86 // loop_footer
              %s418 = sadd.s32 1, %s414
            $region93: #{bottleneck_pallas.1} parent=86 // loop_footer_branch
              %413 = sbr.rel target = $region89
            $region94: #{bottleneck_pallas.1} parent=86 // loop_exit
              _
          $region87: #{bottleneck_pallas.1} parent=82 // pred_fallthru
            _
          // Predicated region
          $region95: #{bottleneck_pallas.1} parent=82 // pred_check
            _
          $region96: #{bottleneck_pallas.1} parent=82 // pred_check_branch
            %426 = sbr.rel target = $region98
          $region97: #{bottleneck_pallas.1} parent=82 // pred_region
            _
          $region98: #{bottleneck_pallas.1} parent=82 // pred_fallthru
            _
          // Predicated region
          $region99: #{bottleneck_pallas.1} parent=82 // pred_check
            _
          $region100: #{bottleneck_pallas.1} parent=82 // pred_check_branch
            %429 = sbr.rel (0) target = $region102
          $region101: #{bottleneck_pallas.1} parent=82 // pred_region
            %430 = vsyncadd %s410, 256
          $region102: #{bottleneck_pallas.1} parent=82 // pred_fallthru
            _
        $region83: #{bottleneck_pallas.1} parent=59 // pred_fallthru
          _
        %p431 = scmp.lt.s32.totalorder %s26, 1
        // Predicated region
        $region103: #{bottleneck_pallas.1} parent=59 // pred_check
          %p432 = pneg %p431
        $region104: #{bottleneck_pallas.1} parent=59 // pred_check_branch
          %434 = sbr.rel (%p432) target = $region106
        $region105: #{bottleneck_pallas.1} parent=59 // pred_region
          %s435 = sadd.s32 %s342, 8
          %s436 = smul.u32 %s435, 16
          %s437 = sadd.s32 %s436, %s344
          %s438 = scalar_lea.vmem %s0, %s437
          %s439 = sadd.s32 216, %s347
          %s440 = scalar_lea.vmem [#allocation2], %s439
          %s441 = sadd.s32 2, %s350
          %s442 = scalar_lea.sflag [#allocation3], %s441
          // Predicated region
          $region107: #{bottleneck_pallas.1} parent=105 // pred_check
            _
          $region108: #{bottleneck_pallas.1} parent=105 // pred_check_branch
            %444 = sbr.rel (0) target = $region110
          $region109: #{bottleneck_pallas.1} parent=105 // pred_region
            loop: start=0, step=1, limit=1
            $region111: #{bottleneck_pallas.1} parent=109 // loop_pre_header
              _
            $region112: #{bottleneck_pallas.1} parent=109 // loop_header
              %s446 = sphi 0, %s450
              %p447 = scmp.ge.s32.totalorder %s446, 1
              %s451 = sphi %s438, %s438
              %s452 = sphi %s440, %s440
            $region113: #{bottleneck_pallas.1} parent=109 // loop_header_branch
              %449 = sbr.rel (%p447) target = $region117
            $region114: #{bottleneck_pallas.1} parent=109 // loop_body
              %v453 = vld [vmem:[%s451] sm:$0xff]
              %454 = vst [vmem:[%s452] sm:$0xff] %v453
              %v455 = vld [vmem:[%s451 + $0x8] sm:$0xff]
              %456 = vst [vmem:[%s452 + $0x8] sm:$0xff] %v455
            $region115: #{bottleneck_pallas.1} parent=109 // loop_footer
              %s450 = sadd.s32 1, %s446
            $region116: #{bottleneck_pallas.1} parent=109 // loop_footer_branch
              %445 = sbr.rel target = $region112
            $region117: #{bottleneck_pallas.1} parent=109 // loop_exit
              _
          $region110: #{bottleneck_pallas.1} parent=105 // pred_fallthru
            _
          // Predicated region
          $region118: #{bottleneck_pallas.1} parent=105 // pred_check
            _
          $region119: #{bottleneck_pallas.1} parent=105 // pred_check_branch
            %458 = sbr.rel target = $region121
          $region120: #{bottleneck_pallas.1} parent=105 // pred_region
            _
          $region121: #{bottleneck_pallas.1} parent=105 // pred_fallthru
            _
          // Predicated region
          $region122: #{bottleneck_pallas.1} parent=105 // pred_check
            _
          $region123: #{bottleneck_pallas.1} parent=105 // pred_check_branch
            %461 = sbr.rel (0) target = $region125
          $region124: #{bottleneck_pallas.1} parent=105 // pred_region
            %462 = vsyncadd %s442, 256
          $region125: #{bottleneck_pallas.1} parent=105 // pred_fallthru
            _
        $region106: #{bottleneck_pallas.1} parent=59 // pred_fallthru
          _
      $region60: #{bottleneck_pallas.1} parent=55 // pred_fallthru
        _
      %s463 = smul.u32 %s337, 3
      %s464 = scalar_lea.sflag [#allocation3], %s463
      %s465 = smul.u32 8, 16
      %s466 = smul.u32 %s465, 1
      %s467 = sshll.u32 %s466, 4
      %468 = dma.done %s464, %s467
      %p469 = scmp.gt.s32.totalorder %s26, 0
      // Predicated region
      $region126: #{bottleneck_pallas.1} parent=55 // pred_check
        %p470 = pneg %p469
      $region127: #{bottleneck_pallas.1} parent=55 // pred_check_branch
        %472 = sbr.rel (%p470) target = $region129
      $region128: #{bottleneck_pallas.1} parent=55 // pred_region
        %s473 = sadd.s32 1, %s463
        %s474 = scalar_lea.sflag [#allocation3], %s473
        %s475 = smul.u32 1, 16
        %s476 = smul.u32 %s475, 1
        %s477 = sshll.u32 %s476, 4
        %478 = dma.done %s474, %s477
      $region129: #{bottleneck_pallas.1} parent=55 // pred_fallthru
        _
      %p479 = scmp.lt.s32.totalorder %s26, 1
      // Predicated region
      $region130: #{bottleneck_pallas.1} parent=55 // pred_check
        %p480 = pneg %p479
      $region131: #{bottleneck_pallas.1} parent=55 // pred_check_branch
        %482 = sbr.rel (%p480) target = $region133
      $region132: #{bottleneck_pallas.1} parent=55 // pred_region
        %s483 = sadd.s32 2, %s463
        %s484 = scalar_lea.sflag [#allocation3], %s483
        %s485 = smul.u32 1, 16
        %s486 = smul.u32 %s485, 1
        %s487 = sshll.u32 %s486, 4
        %488 = dma.done %s484, %s487
      $region133: #{bottleneck_pallas.1} parent=55 // pred_fallthru
        _
      // Predicated region
      $region134: #{bottleneck_pallas.1} parent=55 // pred_check
        %p489 = pneg %p338
      $region135: #{bottleneck_pallas.1} parent=55 // pred_check_branch
        %491 = sbr.rel (%p489) target = $region137
      $region136: #{bottleneck_pallas.1} parent=55 // pred_region
        %492 = vst [vmem:[#allocation2 + $0x10] sm:$0xff] 0.0
        %493 = vst [vmem:[#allocation2 + $0x28] sm:$0xff] 0.0
        %494 = vst [vmem:[#allocation2 + $0x40] sm:$0xff] 0.0
        %495 = vst [vmem:[#allocation2 + $0x58] sm:$0xff] 0.0
        %496 = vst [vmem:[#allocation2 + $0x70] sm:$0xff] 0.0
        %497 = vst [vmem:[#allocation2 + $0x88] sm:$0xff] 0.0
        %498 = vst [vmem:[#allocation2 + $0xa0] sm:$0xff] 0.0
        %499 = vst [vmem:[#allocation2 + $0xb8] sm:$0xff] 0.0
        %500 = vst [vmem:[#allocation2 + $0xd0] sm:$0xff] 0.0
        %501 = vst [vmem:[#allocation2 + $0xe8] sm:$0xff] 0.0
        %502 = vst [vmem:[#allocation2 + $0x100] sm:$0xff] 0.0
        %503 = vst [vmem:[#allocation2 + $0x118] sm:$0xff] 0.0
        %504 = vst [vmem:[#allocation2 + $0x130] sm:$0xff] 0.0
        %505 = vst [vmem:[#allocation2 + $0x148] sm:$0xff] 0.0
        %506 = vst [vmem:[#allocation2 + $0x160] sm:$0xff] 0.0
        %507 = vst [vmem:[#allocation2 + $0x178] sm:$0xff] 0.0
        %508 = vst [vmem:[#allocation2 + $0x190] sm:$0xff] 0.0
        %509 = vst [vmem:[#allocation2 + $0x1a8] sm:$0xff] 0.0
        %510 = vst [vmem:[#allocation2 + $0x1c0] sm:$0xff] 0.0
        %511 = vst [vmem:[#allocation2 + $0x1d8] sm:$0xff] 0.0
        %512 = vst [vmem:[#allocation2] sm:$0xff] 0.0
        %513 = vst [vmem:[#allocation2 + $0x8] sm:$0xff] 0.0
        %514 = vst [vmem:[#allocation2 + $0x10] sm:$0xff] 0.0
      $region137: #{bottleneck_pallas.1} parent=55 // pred_fallthru
        _
      %p515 = scmp.eq.s32.totalorder %s26, 1
      // Predicated region
      $region138: #{bottleneck_pallas.1} parent=55 // pred_check
        %p516 = pneg %p515
      $region139: #{bottleneck_pallas.1} parent=55 // pred_check_branch
        %518 = sbr.rel (%p516) target = $region141
      $region140: #{bottleneck_pallas.1} parent=55 // pred_region
        %s519 = scalar_lea.vmem [#allocation2], 456
        %520 = vst [vmem:[%s519] sm:$0xff] 0.0
        %521 = vst [vmem:[%s519 + $0x8] sm:$0xff] 0.0
        %522 = vst [vmem:[%s519 + $0x10] sm:$0xff] 0.0
      $region141: #{bottleneck_pallas.1} parent=55 // pred_fallthru
        _
      %s523 = sadd.s32 %s26, 1
      %p524 = scmp.lt.s32.totalorder %s523, 2
      // Predicated region
      $region142: #{bottleneck_pallas.1} parent=55 // pred_check
        %p525 = pneg %p524
      $region143: #{bottleneck_pallas.1} parent=55 // pred_check_branch
        %527 = sbr.rel (%p525) target = $region145
      $region144: #{bottleneck_pallas.1} parent=55 // pred_region
        %s528 = ssub.s32 1, %s337
        %s529 = smul.u32 %s523, 8
        %s530 = smul.u32 %s529, 16
        %s531 = smul.u32 %s25, 256
        %s532 = sadd.s32 %s530, %s531
        %s533 = scalar_lea.vmem %s0, %s532
        %s534 = smul.u32 %s528, 240
        %s535 = sadd.s32 24, %s534
        %s536 = scalar_lea.vmem [#allocation2], %s535
        %s537 = smul.u32 %s528, 3
        %s538 = scalar_lea.sflag [#allocation3], %s537
        // Predicated region
        $region146: #{bottleneck_pallas.1} parent=144 // pred_check
          _
        $region147: #{bottleneck_pallas.1} parent=144 // pred_check_branch
          %540 = sbr.rel (0) target = $region149
        $region148: #{bottleneck_pallas.1} parent=144 // pred_region
          loop: start=0, step=1, limit=1
          $region150: #{bottleneck_pallas.1} parent=148 // loop_pre_header
            _
          $region151: #{bottleneck_pallas.1} parent=148 // loop_header
            %s542 = sphi 0, %s546
            %p543 = scmp.ge.s32.totalorder %s542, 1
            %s547 = sphi %s533, %s533
            %s548 = sphi %s536, %s536
          $region152: #{bottleneck_pallas.1} parent=148 // loop_header_branch
            %545 = sbr.rel (%p543) target = $region156
          $region153: #{bottleneck_pallas.1} parent=148 // loop_body
            %v549 = vld [vmem:[%s547] sm:$0xff]
            %550 = vst [vmem:[%s548] sm:$0xff] %v549
            %v551 = vld [vmem:[%s547 + $0x8] sm:$0xff]
            %552 = vst [vmem:[%s548 + $0x8] sm:$0xff] %v551
            %v553 = vld [vmem:[%s547 + $0x10] sm:$0xff]
            %554 = vst [vmem:[%s548 + $0x18] sm:$0xff] %v553
            %v555 = vld [vmem:[%s547 + $0x18] sm:$0xff]
            %556 = vst [vmem:[%s548 + $0x20] sm:$0xff] %v555
            %v557 = vld [vmem:[%s547 + $0x20] sm:$0xff]
            %558 = vst [vmem:[%s548 + $0x30] sm:$0xff] %v557
            %v559 = vld [vmem:[%s547 + $0x28] sm:$0xff]
            %560 = vst [vmem:[%s548 + $0x38] sm:$0xff] %v559
            %v561 = vld [vmem:[%s547 + $0x30] sm:$0xff]
            %562 = vst [vmem:[%s548 + $0x48] sm:$0xff] %v561
            %v563 = vld [vmem:[%s547 + $0x38] sm:$0xff]
            %564 = vst [vmem:[%s548 + $0x50] sm:$0xff] %v563
            %v565 = vld [vmem:[%s547 + $0x40] sm:$0xff]
            %566 = vst [vmem:[%s548 + $0x60] sm:$0xff] %v565
            %v567 = vld [vmem:[%s547 + $0x48] sm:$0xff]
            %568 = vst [vmem:[%s548 + $0x68] sm:$0xff] %v567
            %v569 = vld [vmem:[%s547 + $0x50] sm:$0xff]
            %570 = vst [vmem:[%s548 + $0x78] sm:$0xff] %v569
            %v571 = vld [vmem:[%s547 + $0x58] sm:$0xff]
            %572 = vst [vmem:[%s548 + $0x80] sm:$0xff] %v571
            %v573 = vld [vmem:[%s547 + $0x60] sm:$0xff]
            %574 = vst [vmem:[%s548 + $0x90] sm:$0xff] %v573
            %v575 = vld [vmem:[%s547 + $0x68] sm:$0xff]
            %576 = vst [vmem:[%s548 + $0x98] sm:$0xff] %v575
            %v577 = vld [vmem:[%s547 + $0x70] sm:$0xff]
            %578 = vst [vmem:[%s548 + $0xa8] sm:$0xff] %v577
            %v579 = vld [vmem:[%s547 + $0x78] sm:$0xff]
            %580 = vst [vmem:[%s548 + $0xb0] sm:$0xff] %v579
          $region154: #{bottleneck_pallas.1} parent=148 // loop_footer
            %s546 = sadd.s32 1, %s542
          $region155: #{bottleneck_pallas.1} parent=148 // loop_footer_branch
            %541 = sbr.rel target = $region151
          $region156: #{bottleneck_pallas.1} parent=148 // loop_exit
            _
        $region149: #{bottleneck_pallas.1} parent=144 // pred_fallthru
          _
        // Predicated region
        $region157: #{bottleneck_pallas.1} parent=144 // pred_check
          _
        $region158: #{bottleneck_pallas.1} parent=144 // pred_check_branch
          %582 = sbr.rel target = $region160
        $region159: #{bottleneck_pallas.1} parent=144 // pred_region
          _
        $region160: #{bottleneck_pallas.1} parent=144 // pred_fallthru
          _
        // Predicated region
        $region161: #{bottleneck_pallas.1} parent=144 // pred_check
          _
        $region162: #{bottleneck_pallas.1} parent=144 // pred_check_branch
          %585 = sbr.rel (0) target = $region164
        $region163: #{bottleneck_pallas.1} parent=144 // pred_region
          %586 = vsyncadd %s538, 2048
        $region164: #{bottleneck_pallas.1} parent=144 // pred_fallthru
          _
        %p587 = scmp.gt.s32.totalorder %s523, 0
        // Predicated region
        $region165: #{bottleneck_pallas.1} parent=144 // pred_check
          %p588 = pneg %p587
        $region166: #{bottleneck_pallas.1} parent=144 // pred_check_branch
          %590 = sbr.rel (%p588) target = $region168
        $region167: #{bottleneck_pallas.1} parent=144 // pred_region
          %s591 = ssub.s32 %s529, 1
          %s592 = smul.u32 %s591, 16
          %s593 = sadd.s32 %s592, %s531
          %s594 = scalar_lea.vmem %s0, %s593
          %s595 = scalar_lea.vmem [#allocation2], %s534
          %s596 = sadd.s32 1, %s537
          %s597 = scalar_lea.sflag [#allocation3], %s596
          // Predicated region
          $region169: #{bottleneck_pallas.1} parent=167 // pred_check
            _
          $region170: #{bottleneck_pallas.1} parent=167 // pred_check_branch
            %599 = sbr.rel (0) target = $region172
          $region171: #{bottleneck_pallas.1} parent=167 // pred_region
            loop: start=0, step=1, limit=1
            $region173: #{bottleneck_pallas.1} parent=171 // loop_pre_header
              _
            $region174: #{bottleneck_pallas.1} parent=171 // loop_header
              %s601 = sphi 0, %s605
              %p602 = scmp.ge.s32.totalorder %s601, 1
              %s606 = sphi %s594, %s594
              %s607 = sphi %s595, %s595
            $region175: #{bottleneck_pallas.1} parent=171 // loop_header_branch
              %604 = sbr.rel (%p602) target = $region179
            $region176: #{bottleneck_pallas.1} parent=171 // loop_body
              %v608 = vld [vmem:[%s606] sm:$0xff]
              %609 = vst [vmem:[%s607] sm:$0xff] %v608
              %v610 = vld [vmem:[%s606 + $0x8] sm:$0xff]
              %611 = vst [vmem:[%s607 + $0x8] sm:$0xff] %v610
            $region177: #{bottleneck_pallas.1} parent=171 // loop_footer
              %s605 = sadd.s32 1, %s601
            $region178: #{bottleneck_pallas.1} parent=171 // loop_footer_branch
              %600 = sbr.rel target = $region174
            $region179: #{bottleneck_pallas.1} parent=171 // loop_exit
              _
          $region172: #{bottleneck_pallas.1} parent=167 // pred_fallthru
            _
          // Predicated region
          $region180: #{bottleneck_pallas.1} parent=167 // pred_check
            _
          $region181: #{bottleneck_pallas.1} parent=167 // pred_check_branch
            %613 = sbr.rel target = $region183
          $region182: #{bottleneck_pallas.1} parent=167 // pred_region
            _
          $region183: #{bottleneck_pallas.1} parent=167 // pred_fallthru
            _
          // Predicated region
          $region184: #{bottleneck_pallas.1} parent=167 // pred_check
            _
          $region185: #{bottleneck_pallas.1} parent=167 // pred_check_branch
            %616 = sbr.rel (0) target = $region187
          $region186: #{bottleneck_pallas.1} parent=167 // pred_region
            %617 = vsyncadd %s597, 256
          $region187: #{bottleneck_pallas.1} parent=167 // pred_fallthru
            _
        $region168: #{bottleneck_pallas.1} parent=144 // pred_fallthru
          _
        %p618 = scmp.lt.s32.totalorder %s523, 1
        // Predicated region
        $region188: #{bottleneck_pallas.1} parent=144 // pred_check
          %p619 = pneg %p618
        $region189: #{bottleneck_pallas.1} parent=144 // pred_check_branch
          %621 = sbr.rel (%p619) target = $region191
        $region190: #{bottleneck_pallas.1} parent=144 // pred_region
          %s622 = sadd.s32 %s529, 8
          %s623 = smul.u32 %s622, 16
          %s624 = sadd.s32 %s623, %s531
          %s625 = scalar_lea.vmem %s0, %s624
          %s626 = sadd.s32 216, %s534
          %s627 = scalar_lea.vmem [#allocation2], %s626
          %s628 = sadd.s32 2, %s537
          %s629 = scalar_lea.sflag [#allocation3], %s628
          // Predicated region
          $region192: #{bottleneck_pallas.1} parent=190 // pred_check
            _
          $region193: #{bottleneck_pallas.1} parent=190 // pred_check_branch
            %631 = sbr.rel (0) target = $region195
          $region194: #{bottleneck_pallas.1} parent=190 // pred_region
            loop: start=0, step=1, limit=1
            $region196: #{bottleneck_pallas.1} parent=194 // loop_pre_header
              _
            $region197: #{bottleneck_pallas.1} parent=194 // loop_header
              %s633 = sphi 0, %s637
              %p634 = scmp.ge.s32.totalorder %s633, 1
              %s638 = sphi %s625, %s625
              %s639 = sphi %s627, %s627
            $region198: #{bottleneck_pallas.1} parent=194 // loop_header_branch
              %636 = sbr.rel (%p634) target = $region202
            $region199: #{bottleneck_pallas.1} parent=194 // loop_body
              %v640 = vld [vmem:[%s638] sm:$0xff]
              %641 = vst [vmem:[%s639] sm:$0xff] %v640
              %v642 = vld [vmem:[%s638 + $0x8] sm:$0xff]
              %643 = vst [vmem:[%s639 + $0x8] sm:$0xff] %v642
            $region200: #{bottleneck_pallas.1} parent=194 // loop_footer
              %s637 = sadd.s32 1, %s633
            $region201: #{bottleneck_pallas.1} parent=194 // loop_footer_branch
              %632 = sbr.rel target = $region197
            $region202: #{bottleneck_pallas.1} parent=194 // loop_exit
              _
          $region195: #{bottleneck_pallas.1} parent=190 // pred_fallthru
            _
          // Predicated region
          $region203: #{bottleneck_pallas.1} parent=190 // pred_check
            _
          $region204: #{bottleneck_pallas.1} parent=190 // pred_check_branch
            %645 = sbr.rel target = $region206
          $region205: #{bottleneck_pallas.1} parent=190 // pred_region
            _
          $region206: #{bottleneck_pallas.1} parent=190 // pred_fallthru
            _
          // Predicated region
          $region207: #{bottleneck_pallas.1} parent=190 // pred_check
            _
          $region208: #{bottleneck_pallas.1} parent=190 // pred_check_branch
            %648 = sbr.rel (0) target = $region210
          $region209: #{bottleneck_pallas.1} parent=190 // pred_region
            %649 = vsyncadd %s629, 256
          $region210: #{bottleneck_pallas.1} parent=190 // pred_fallthru
            _
        $region191: #{bottleneck_pallas.1} parent=144 // pred_fallthru
          _
      $region145: #{bottleneck_pallas.1} parent=55 // pred_fallthru
        _
      %650 = vst [vmem:[#allocation4] sm:$0xff] 0.0
      %651 = vst [vmem:[#allocation4 + $0xf8] sm:$0xff] 0.0
      %s652 = smul.u32 %s337, 240
      %s653 = scalar_lea.vmem [#allocation2], %s652
      %v654 = vld [vmem:[%s653] sm:$0xff]
      %v655 = vld [vmem:[%s653 + $0x8] sm:$0xff]
      %v656 = vld [vmem:[%s653 + $0x10] sm:$0xff]
      %v657 = vld [vmem:[%s653 + $0x18] sm:$0xff]
      %v658 = vld [vmem:[%s653 + $0x20] sm:$0xff]
      %v659 = vld [vmem:[%s653 + $0x28] sm:$0xff]
      %v660 = vld [vmem:[%s653 + $0x30] sm:$0xff]
      %v661 = vld [vmem:[%s653 + $0x38] sm:$0xff]
      %v662 = vld [vmem:[%s653 + $0x40] sm:$0xff]
      %v663 = vld [vmem:[%s653 + $0x48] sm:$0xff]
      %v664 = vld [vmem:[%s653 + $0x50] sm:$0xff]
      %v665 = vld [vmem:[%s653 + $0x58] sm:$0xff]
      %v666 = vld [vmem:[%s653 + $0x60] sm:$0xff]
      %v667 = vld [vmem:[%s653 + $0x68] sm:$0xff]
      %v668 = vld [vmem:[%s653 + $0x70] sm:$0xff]
      %v669 = vld [vmem:[%s653 + $0x78] sm:$0xff]
      %v670 = vld [vmem:[%s653 + $0x80] sm:$0xff]
      %v671 = vld [vmem:[%s653 + $0x88] sm:$0xff]
      %v672 = vld [vmem:[%s653 + $0x90] sm:$0xff]
      %v673 = vld [vmem:[%s653 + $0x98] sm:$0xff]
      %v674 = vld [vmem:[%s653 + $0xa0] sm:$0xff]
      %v675 = vld [vmem:[%s653 + $0xa8] sm:$0xff]
      %v676 = vld [vmem:[%s653 + $0xb0] sm:$0xff]
      %v677 = vld [vmem:[%s653 + $0xb8] sm:$0xff]
      %v678 = vld [vmem:[%s653 + $0xc0] sm:$0xff]
      %v679 = vld [vmem:[%s653 + $0xc8] sm:$0xff]
      %v680 = vld [vmem:[%s653 + $0xd0] sm:$0xff]
      %v681 = vld [vmem:[%s653 + $0xd8] sm:$0xff]
      %v682 = vld [vmem:[%s653 + $0xe0] sm:$0xff]
      %v683 = vld [vmem:[%s653 + $0xe8] sm:$0xff]
      %v684 = vld [vmem:[%s1] sm:$0xff]
      %v685 = vld [vmem:[%s1 + $0x8] sm:$0xff]
      %v686 = vld [vmem:[%s1 + $0x10] sm:$0xff]
      %v687 = vld [vmem:[%s1 + $0x18] sm:$0xff]
      %v688 = vld [vmem:[%s1 + $0x20] sm:$0xff]
      %v689 = vld [vmem:[%s1 + $0x28] sm:$0xff]
      %v690 = vld [vmem:[%s1 + $0x30] sm:$0xff]
      %v691 = vld [vmem:[%s1 + $0x38] sm:$0xff]
      %v692 = vld [vmem:[%s1 + $0x40] sm:$0xff]
      %v693 = vld [vmem:[%s1 + $0x48] sm:$0xff]
      %v694 = vld [vmem:[%s1 + $0x50] sm:$0xff]
      %v695 = vld [vmem:[%s1 + $0x58] sm:$0xff]
      %v696 = vld [vmem:[%s1 + $0x60] sm:$0xff]
      %v697 = vld [vmem:[%s1 + $0x68] sm:$0xff]
      %v698 = vld [vmem:[%s1 + $0x70] sm:$0xff]
      %v699 = vld [vmem:[%s1 + $0x78] sm:$0xff]
      %700 = vmatpush.msra.mxu0 %v699
      %701 = vmatpush.msra.mxu0 %v698
      %702 = vmatpush.msra.mxu0 %v697
      %703 = vmatpush.msra.mxu0 %v696
      %704 = vmatpush.msra.mxu0 %v695
      %705 = vmatpush.msra.mxu0 %v694
      %706 = vmatpush.msra.mxu0 %v693
      %707 = vmatpush.msra.mxu0 %v692
      %708 = vmatpush.msra.mxu0 %v691
      %709 = vmatpush.msra.mxu0 %v690
      %710 = vmatpush.msra.mxu0 %v689
      %711 = vmatpush.msra.mxu0 %v688
      %712 = vmatpush.msra.mxu0 %v687
      %713 = vmatpush.msra.mxu0 %v686
      %714 = vmatpush.msra.mxu0 %v685
      %715 = vmatpush.msra.mxu0 %v684
      %716 = vmatmul.f32.gmra.mxu0 %v654
      %v717 = vpop.f32.mrf.mxu0
      %v718 = vadd.f32 0.0, %v717
      %719 = vmatmul.f32.gmra.mxu0 %v655
      %v720 = vpop.f32.mrf.mxu0
      %v721 = vadd.f32 0.0, %v720
      %722 = vmatmul.f32.gmra.mxu0 %v656
      %v723 = vpop.f32.mrf.mxu0
      %v724 = vadd.f32 0.0, %v723
      %725 = vmatmul.f32.gmra.mxu0 %v657
      %v726 = vpop.f32.mrf.mxu0
      %v727 = vadd.f32 0.0, %v726
      %728 = vmatmul.f32.gmra.mxu0 %v658
      %v729 = vpop.f32.mrf.mxu0
      %v730 = vadd.f32 0.0, %v729
      %731 = vmatmul.f32.gmra.mxu0 %v659
      %v732 = vpop.f32.mrf.mxu0
      %v733 = vadd.f32 0.0, %v732
      %734 = vmatmul.f32.gmra.mxu0 %v660
      %v735 = vpop.f32.mrf.mxu0
      %v736 = vadd.f32 0.0, %v735
      %737 = vmatmul.f32.gmra.mxu0 %v661
      %v738 = vpop.f32.mrf.mxu0
      %v739 = vadd.f32 0.0, %v738
      %740 = vmatmul.f32.gmra.mxu0 %v662
      %v741 = vpop.f32.mrf.mxu0
      %v742 = vadd.f32 0.0, %v741
      %743 = vmatmul.f32.gmra.mxu0 %v663
      %v744 = vpop.f32.mrf.mxu0
      %v745 = vadd.f32 0.0, %v744
      %746 = vmatmul.f32.gmra.mxu0 %v664
      %v747 = vpop.f32.mrf.mxu0
      %v748 = vadd.f32 0.0, %v747
      %749 = vmatmul.f32.gmra.mxu0 %v665
      %v750 = vpop.f32.mrf.mxu0
      %v751 = vadd.f32 0.0, %v750
      %752 = vmatmul.f32.gmra.mxu0 %v666
      %v753 = vpop.f32.mrf.mxu0
      %v754 = vadd.f32 0.0, %v753
      %755 = vmatmul.f32.gmra.mxu0 %v667
      %v756 = vpop.f32.mrf.mxu0
      %v757 = vadd.f32 0.0, %v756
      %758 = vmatmul.f32.gmra.mxu0 %v668
      %v759 = vpop.f32.mrf.mxu0
      %v760 = vadd.f32 0.0, %v759
      %761 = vmatmul.f32.gmra.mxu0 %v669
      %v762 = vpop.f32.mrf.mxu0
      %v763 = vadd.f32 0.0, %v762
      %764 = vmatmul.f32.gmra.mxu0 %v670
      %v765 = vpop.f32.mrf.mxu0
      %v766 = vadd.f32 0.0, %v765
      %767 = vmatmul.f32.gmra.mxu0 %v671
      %v768 = vpop.f32.mrf.mxu0
      %v769 = vadd.f32 0.0, %v768
      %770 = vmatmul.f32.gmra.mxu0 %v672
      %v771 = vpop.f32.mrf.mxu0
      %v772 = vadd.f32 0.0, %v771
      %773 = vmatmul.f32.gmra.mxu0 %v673
      %v774 = vpop.f32.mrf.mxu0
      %v775 = vadd.f32 0.0, %v774
      %776 = vmatmul.f32.gmra.mxu0 %v674
      %v777 = vpop.f32.mrf.mxu0
      %v778 = vadd.f32 0.0, %v777
      %779 = vmatmul.f32.gmra.mxu0 %v675
      %v780 = vpop.f32.mrf.mxu0
      %v781 = vadd.f32 0.0, %v780
      %782 = vmatmul.f32.gmra.mxu0 %v676
      %v783 = vpop.f32.mrf.mxu0
      %v784 = vadd.f32 0.0, %v783
      %785 = vmatmul.f32.gmra.mxu0 %v677
      %v786 = vpop.f32.mrf.mxu0
      %v787 = vadd.f32 0.0, %v786
      %788 = vmatmul.f32.gmra.mxu0 %v678
      %v789 = vpop.f32.mrf.mxu0
      %v790 = vadd.f32 0.0, %v789
      %791 = vmatmul.f32.gmra.mxu0 %v679
      %v792 = vpop.f32.mrf.mxu0
      %v793 = vadd.f32 0.0, %v792
      %794 = vmatmul.f32.gmra.mxu0 %v680
      %v795 = vpop.f32.mrf.mxu0
      %v796 = vadd.f32 0.0, %v795
      %797 = vmatmul.f32.gmra.mxu0 %v681
      %v798 = vpop.f32.mrf.mxu0
      %v799 = vadd.f32 0.0, %v798
      %800 = vmatmul.f32.gmra.mxu0 %v682
      %v801 = vpop.f32.mrf.mxu0
      %v802 = vadd.f32 0.0, %v801
      %803 = vmatmul.f32.gmra.mxu0 %v683
      %v804 = vpop.f32.mrf.mxu0
      %v805 = vadd.f32 0.0, %v804
      %806 = vdwg.mxu0
      %v807 = vld [vmem:[%s2] sm:$0x1]
      %v809 = vperm.slane %v807, 0
      %v811 = vmul.f32 %v718, %v809
      %v812 = vmul.f32 %v721, %v809
      %v813 = vmul.f32 %v724, %v809
      %v814 = vmul.f32 %v727, %v809
      %v815 = vmul.f32 %v730, %v809
      %v816 = vmul.f32 %v733, %v809
      %v817 = vmul.f32 %v736, %v809
      %v818 = vmul.f32 %v739, %v809
      %v819 = vmul.f32 %v742, %v809
      %v820 = vmul.f32 %v745, %v809
      %v821 = vmul.f32 %v748, %v809
      %v822 = vmul.f32 %v751, %v809
      %v823 = vmul.f32 %v754, %v809
      %v824 = vmul.f32 %v757, %v809
      %v825 = vmul.f32 %v760, %v809
      %v826 = vmul.f32 %v763, %v809
      %v827 = vmul.f32 %v766, %v809
      %v828 = vmul.f32 %v769, %v809
      %v829 = vmul.f32 %v772, %v809
      %v830 = vmul.f32 %v775, %v809
      %v831 = vmul.f32 %v778, %v809
      %v832 = vmul.f32 %v781, %v809
      %v833 = vmul.f32 %v784, %v809
      %v834 = vmul.f32 %v787, %v809
      %v835 = vmul.f32 %v790, %v809
      %v836 = vmul.f32 %v793, %v809
      %v837 = vmul.f32 %v796, %v809
      %v838 = vmul.f32 %v799, %v809
      %v839 = vmul.f32 %v802, %v809
      %v840 = vmul.f32 %v805, %v809
      %v841 = vld [vmem:[%s3] sm:$0x1]
      %v843 = vperm.slane %v841, 0
      %v845 = vadd.f32 %v811, %v843
      %v846 = vadd.f32 %v812, %v843
      %v847 = vadd.f32 %v813, %v843
      %v848 = vadd.f32 %v814, %v843
      %v849 = vadd.f32 %v815, %v843
      %v850 = vadd.f32 %v816, %v843
      %v851 = vadd.f32 %v817, %v843
      %v852 = vadd.f32 %v818, %v843
      %v853 = vadd.f32 %v819, %v843
      %v854 = vadd.f32 %v820, %v843
      %v855 = vadd.f32 %v821, %v843
      %v856 = vadd.f32 %v822, %v843
      %v857 = vadd.f32 %v823, %v843
      %v858 = vadd.f32 %v824, %v843
      %v859 = vadd.f32 %v825, %v843
      %v860 = vadd.f32 %v826, %v843
      %v861 = vadd.f32 %v827, %v843
      %v862 = vadd.f32 %v828, %v843
      %v863 = vadd.f32 %v829, %v843
      %v864 = vadd.f32 %v830, %v843
      %v865 = vadd.f32 %v831, %v843
      %v866 = vadd.f32 %v832, %v843
      %v867 = vadd.f32 %v833, %v843
      %v868 = vadd.f32 %v834, %v843
      %v869 = vadd.f32 %v835, %v843
      %v870 = vadd.f32 %v836, %v843
      %v871 = vadd.f32 %v837, %v843
      %v872 = vadd.f32 %v838, %v843
      %v873 = vadd.f32 %v839, %v843
      %v874 = vadd.f32 %v840, %v843
      %v875 = vmax.f32 %v845, 0.0
      %v876 = vmax.f32 %v846, 0.0
      %v877 = vmax.f32 %v847, 0.0
      %v878 = vmax.f32 %v848, 0.0
      %v879 = vmax.f32 %v849, 0.0
      %v880 = vmax.f32 %v850, 0.0
      %v881 = vmax.f32 %v851, 0.0
      %v882 = vmax.f32 %v852, 0.0
      %v883 = vmax.f32 %v853, 0.0
      %v884 = vmax.f32 %v854, 0.0
      %v885 = vmax.f32 %v855, 0.0
      %v886 = vmax.f32 %v856, 0.0
      %v887 = vmax.f32 %v857, 0.0
      %v888 = vmax.f32 %v858, 0.0
      %v889 = vmax.f32 %v859, 0.0
      %v890 = vmax.f32 %v860, 0.0
      %v891 = vmax.f32 %v861, 0.0
      %v892 = vmax.f32 %v862, 0.0
      %v893 = vmax.f32 %v863, 0.0
      %v894 = vmax.f32 %v864, 0.0
      %v895 = vmax.f32 %v865, 0.0
      %v896 = vmax.f32 %v866, 0.0
      %v897 = vmax.f32 %v867, 0.0
      %v898 = vmax.f32 %v868, 0.0
      %v899 = vmax.f32 %v869, 0.0
      %v900 = vmax.f32 %v870, 0.0
      %v901 = vmax.f32 %v871, 0.0
      %v902 = vmax.f32 %v872, 0.0
      %v903 = vmax.f32 %v873, 0.0
      %v904 = vmax.f32 %v874, 0.0
      %v905 = vlaneseq
      %v906 = vshrl.u32 %v905, 7
      %v907 = vadd.s32 %v906, 8
      %v908 = vadd.s32 %v906, 16
      %vm909 = vcmp.lt.s32.totalorder %v906, 16
      %vm910 = vcmp.lt.s32.totalorder %v907, 16
      %vm911 = vcmp.lt.s32.totalorder %v908, 16
      %v912 = vsel %vm909, 1, 0
      %v913 = vsel %vm910, 1, 0
      %v914 = vsel %vm911, 1, 0
      %vm915 = vcmp.eq.s32.totalorder %v912, 1
      %vm916 = vcmp.eq.s32.totalorder %v913, 1
      %vm917 = vcmp.eq.s32.totalorder %v914, 1
      %v918 = vsel %vm915, %v875, 0.0
      %v919 = vsel %vm916, %v876, 0.0
      %v920 = vsel %vm917, %v877, 0.0
      %v921 = vsel %vm915, %v878, 0.0
      %v922 = vsel %vm916, %v879, 0.0
      %v923 = vsel %vm917, %v880, 0.0
      %v924 = vsel %vm915, %v881, 0.0
      %v925 = vsel %vm916, %v882, 0.0
      %v926 = vsel %vm917, %v883, 0.0
      %v927 = vsel %vm915, %v884, 0.0
      %v928 = vsel %vm916, %v885, 0.0
      %v929 = vsel %vm917, %v886, 0.0
      %v930 = vsel %vm915, %v887, 0.0
      %v931 = vsel %vm916, %v888, 0.0
      %v932 = vsel %vm917, %v889, 0.0
      %v933 = vsel %vm915, %v890, 0.0
      %v934 = vsel %vm916, %v891, 0.0
      %v935 = vsel %vm917, %v892, 0.0
      %v936 = vsel %vm915, %v893, 0.0
      %v937 = vsel %vm916, %v894, 0.0
      %v938 = vsel %vm917, %v895, 0.0
      %v939 = vsel %vm915, %v896, 0.0
      %v940 = vsel %vm916, %v897, 0.0
      %v941 = vsel %vm917, %v898, 0.0
      %v942 = vsel %vm915, %v899, 0.0
      %v943 = vsel %vm916, %v900, 0.0
      %v944 = vsel %vm917, %v901, 0.0
      %v945 = vsel %vm915, %v902, 0.0
      %v946 = vsel %vm916, %v903, 0.0
      %v947 = vsel %vm917, %v904, 0.0
      %948 = vst [vmem:[#allocation4 + $0x8] sm:$0xff] %v918
      %949 = vst [vmem:[#allocation4 + $0x10] sm:$0xff] %v919
      %950 = vst [vmem:[#allocation4 + $0x18] sm:$0xff] %v920
      %951 = vst [vmem:[#allocation4 + $0x20] sm:$0xff] %v921
      %952 = vst [vmem:[#allocation4 + $0x28] sm:$0xff] %v922
      %953 = vst [vmem:[#allocation4 + $0x30] sm:$0xff] %v923
      %954 = vst [vmem:[#allocation4 + $0x38] sm:$0xff] %v924
      %955 = vst [vmem:[#allocation4 + $0x40] sm:$0xff] %v925
      %956 = vst [vmem:[#allocation4 + $0x48] sm:$0xff] %v926
      %957 = vst [vmem:[#allocation4 + $0x50] sm:$0xff] %v927
      %958 = vst [vmem:[#allocation4 + $0x58] sm:$0xff] %v928
      %959 = vst [vmem:[#allocation4 + $0x60] sm:$0xff] %v929
      %960 = vst [vmem:[#allocation4 + $0x68] sm:$0xff] %v930
      %961 = vst [vmem:[#allocation4 + $0x70] sm:$0xff] %v931
      %962 = vst [vmem:[#allocation4 + $0x78] sm:$0xff] %v932
      %963 = vst [vmem:[#allocation4 + $0x80] sm:$0xff] %v933
      %964 = vst [vmem:[#allocation4 + $0x88] sm:$0xff] %v934
      %965 = vst [vmem:[#allocation4 + $0x90] sm:$0xff] %v935
      %966 = vst [vmem:[#allocation4 + $0x98] sm:$0xff] %v936
      %967 = vst [vmem:[#allocation4 + $0xa0] sm:$0xff] %v937
      %968 = vst [vmem:[#allocation4 + $0xa8] sm:$0xff] %v938
      %969 = vst [vmem:[#allocation4 + $0xb0] sm:$0xff] %v939
      %970 = vst [vmem:[#allocation4 + $0xb8] sm:$0xff] %v940
      %971 = vst [vmem:[#allocation4 + $0xc0] sm:$0xff] %v941
      %972 = vst [vmem:[#allocation4 + $0xc8] sm:$0xff] %v942
      %973 = vst [vmem:[#allocation4 + $0xd0] sm:$0xff] %v943
      %974 = vst [vmem:[#allocation4 + $0xd8] sm:$0xff] %v944
      %975 = vst [vmem:[#allocation4 + $0xe0] sm:$0xff] %v945
      %976 = vst [vmem:[#allocation4 + $0xe8] sm:$0xff] %v946
      %977 = vst [vmem:[#allocation4 + $0xf0] sm:$0xff] %v947
      // Predicated region
      $region211: #{bottleneck_pallas.1} parent=55 // pred_check
        %p978 = pneg %p338
      $region212: #{bottleneck_pallas.1} parent=55 // pred_check_branch
        %980 = sbr.rel (%p978) target = $region214
      $region213: #{bottleneck_pallas.1} parent=55 // pred_region
        %981 = vst [vmem:[#allocation4 + $0x8] sm:$0xff] 0.0
        %982 = vst [vmem:[#allocation4 + $0x10] sm:$0xff] 0.0
        %983 = vst [vmem:[#allocation4 + $0x18] sm:$0xff] 0.0
      $region214: #{bottleneck_pallas.1} parent=55 // pred_fallthru
        _
      // Predicated region
      $region215: #{bottleneck_pallas.1} parent=55 // pred_check
        %p984 = pneg %p515
      $region216: #{bottleneck_pallas.1} parent=55 // pred_check_branch
        %986 = sbr.rel (%p984) target = $region218
      $region217: #{bottleneck_pallas.1} parent=55 // pred_region
        %987 = vst [vmem:[#allocation4 + $0xe0] sm:$0xff] 0.0
        %988 = vst [vmem:[#allocation4 + $0xe8] sm:$0xff] 0.0
        %989 = vst [vmem:[#allocation4 + $0xf0] sm:$0xff] 0.0
      $region218: #{bottleneck_pallas.1} parent=55 // pred_fallthru
        _
      %v990 = vld [vmem:[#allocation4 + $0x7] sm:$0xff]
      %v991 = vld [vmem:[#allocation4 + $0xf] sm:$0xff]
      %v992 = vld [vmem:[#allocation4 + $0x17] sm:$0xff]
      %v993 = vld [vmem:[#allocation4 + $0x1f] sm:$0xff]
      %v994 = vld [vmem:[#allocation4 + $0x27] sm:$0xff]
      %v995 = vld [vmem:[#allocation4 + $0x2f] sm:$0xff]
      %v996 = vld [vmem:[#allocation4 + $0x37] sm:$0xff]
      %v997 = vld [vmem:[#allocation4 + $0x3f] sm:$0xff]
      %v998 = vld [vmem:[#allocation4 + $0x47] sm:$0xff]
      %v999 = vld [vmem:[#allocation4 + $0x4f] sm:$0xff]
      %v1000 = vld [vmem:[#allocation4 + $0x57] sm:$0xff]
      %v1001 = vld [vmem:[#allocation4 + $0x5f] sm:$0xff]
      %v1002 = vld [vmem:[#allocation4 + $0x67] sm:$0xff]
      %v1003 = vld [vmem:[#allocation4 + $0x6f] sm:$0xff]
      %v1004 = vld [vmem:[#allocation4 + $0x77] sm:$0xff]
      %v1005 = vld [vmem:[#allocation4 + $0x7f] sm:$0xff]
      %v1006 = vld [vmem:[#allocation4 + $0x87] sm:$0xff]
      %v1007 = vld [vmem:[#allocation4 + $0x8f] sm:$0xff]
      %v1008 = vld [vmem:[#allocation4 + $0x97] sm:$0xff]
      %v1009 = vld [vmem:[#allocation4 + $0x9f] sm:$0xff]
      %v1010 = vld [vmem:[#allocation4 + $0xa7] sm:$0xff]
      %v1011 = vld [vmem:[#allocation4 + $0xaf] sm:$0xff]
      %v1012 = vld [vmem:[#allocation4 + $0xb7] sm:$0xff]
      %v1013 = vld [vmem:[#allocation4 + $0xbf] sm:$0xff]
      %v1014 = vld [vmem:[%s4] sm:$0xff]
      %v1015 = vld [vmem:[%s4 + $0x8] sm:$0xff]
      %v1016 = vld [vmem:[%s4 + $0x10] sm:$0xff]
      %v1017 = vld [vmem:[%s4 + $0x18] sm:$0xff]
      %v1018 = vld [vmem:[%s4 + $0x20] sm:$0xff]
      %v1019 = vld [vmem:[%s4 + $0x28] sm:$0xff]
      %v1020 = vld [vmem:[%s4 + $0x30] sm:$0xff]
      %v1021 = vld [vmem:[%s4 + $0x38] sm:$0xff]
      %v1022 = vld [vmem:[%s4 + $0x40] sm:$0xff]
      %v1023 = vld [vmem:[%s4 + $0x48] sm:$0xff]
      %v1024 = vld [vmem:[%s4 + $0x50] sm:$0xff]
      %v1025 = vld [vmem:[%s4 + $0x58] sm:$0xff]
      %v1026 = vld [vmem:[%s4 + $0x60] sm:$0xff]
      %v1027 = vld [vmem:[%s4 + $0x68] sm:$0xff]
      %v1028 = vld [vmem:[%s4 + $0x70] sm:$0xff]
      %v1029 = vld [vmem:[%s4 + $0x78] sm:$0xff]
      %v1030 = vld [vmem:[#allocation4 + $0x8] sm:$0xff]
      %v1031 = vld [vmem:[#allocation4 + $0x10] sm:$0xff]
      %v1032 = vld [vmem:[#allocation4 + $0x18] sm:$0xff]
      %v1033 = vld [vmem:[#allocation4 + $0x20] sm:$0xff]
      %v1034 = vld [vmem:[#allocation4 + $0x28] sm:$0xff]
      %v1035 = vld [vmem:[#allocation4 + $0x30] sm:$0xff]
      %v1036 = vld [vmem:[#allocation4 + $0x38] sm:$0xff]
      %v1037 = vld [vmem:[#allocation4 + $0x40] sm:$0xff]
      %v1038 = vld [vmem:[#allocation4 + $0x48] sm:$0xff]
      %v1039 = vld [vmem:[#allocation4 + $0x50] sm:$0xff]
      %v1040 = vld [vmem:[#allocation4 + $0x58] sm:$0xff]
      %v1041 = vld [vmem:[#allocation4 + $0x60] sm:$0xff]
      %v1042 = vld [vmem:[#allocation4 + $0x68] sm:$0xff]
      %v1043 = vld [vmem:[#allocation4 + $0x70] sm:$0xff]
      %v1044 = vld [vmem:[#allocation4 + $0x78] sm:$0xff]
      %v1045 = vld [vmem:[#allocation4 + $0x80] sm:$0xff]
      %v1046 = vld [vmem:[#allocation4 + $0x88] sm:$0xff]
      %v1047 = vld [vmem:[#allocation4 + $0x90] sm:$0xff]
      %v1048 = vld [vmem:[#allocation4 + $0x98] sm:$0xff]
      %v1049 = vld [vmem:[#allocation4 + $0xa0] sm:$0xff]
      %v1050 = vld [vmem:[#allocation4 + $0xa8] sm:$0xff]
      %v1051 = vld [vmem:[#allocation4 + $0xb0] sm:$0xff]
      %v1052 = vld [vmem:[#allocation4 + $0xb8] sm:$0xff]
      %v1053 = vld [vmem:[#allocation4 + $0xc0] sm:$0xff]
      %s1054 = scalar_lea.vmem %s4, 128
      %v1055 = vld [vmem:[%s1054] sm:$0xff]
      %v1056 = vld [vmem:[%s1054 + $0x8] sm:$0xff]
      %v1057 = vld [vmem:[%s1054 + $0x10] sm:$0xff]
      %v1058 = vld [vmem:[%s1054 + $0x18] sm:$0xff]
      %v1059 = vld [vmem:[%s1054 + $0x20] sm:$0xff]
      %v1060 = vld [vmem:[%s1054 + $0x28] sm:$0xff]
      %v1061 = vld [vmem:[%s1054 + $0x30] sm:$0xff]
      %v1062 = vld [vmem:[%s1054 + $0x38] sm:$0xff]
      %v1063 = vld [vmem:[%s1054 + $0x40] sm:$0xff]
      %v1064 = vld [vmem:[%s1054 + $0x48] sm:$0xff]
      %v1065 = vld [vmem:[%s1054 + $0x50] sm:$0xff]
      %v1066 = vld [vmem:[%s1054 + $0x58] sm:$0xff]
      %v1067 = vld [vmem:[%s1054 + $0x60] sm:$0xff]
      %v1068 = vld [vmem:[%s1054 + $0x68] sm:$0xff]
      %v1069 = vld [vmem:[%s1054 + $0x70] sm:$0xff]
      %v1070 = vld [vmem:[%s1054 + $0x78] sm:$0xff]
      %1071 = vmatpush.msra.mxu0 %v1070
      %1072 = vmatpush.msra.mxu0 %v1069
      %1073 = vmatpush.msra.mxu0 %v1068
      %1074 = vmatpush.msra.mxu0 %v1067
      %1075 = vmatpush.msra.mxu0 %v1066
      %1076 = vmatpush.msra.mxu0 %v1065
      %1077 = vmatpush.msra.mxu0 %v1064
      %1078 = vmatpush.msra.mxu0 %v1063
      %1079 = vmatpush.msra.mxu0 %v1062
      %1080 = vmatpush.msra.mxu0 %v1061
      %1081 = vmatpush.msra.mxu0 %v1060
      %1082 = vmatpush.msra.mxu0 %v1059
      %1083 = vmatpush.msra.mxu0 %v1058
      %1084 = vmatpush.msra.mxu0 %v1057
      %1085 = vmatpush.msra.mxu0 %v1056
      %1086 = vmatpush.msra.mxu0 %v1055
      %1087 = vmatmul.f32.gmra.mxu0 %v1030
      %v1088 = vpop.f32.mrf.mxu0
      %v1089 = vadd.f32 0.0, %v1088
      %1090 = vmatmul.f32.gmra.mxu0 %v1031
      %v1091 = vpop.f32.mrf.mxu0
      %v1092 = vadd.f32 0.0, %v1091
      %1093 = vmatmul.f32.gmra.mxu0 %v1032
      %v1094 = vpop.f32.mrf.mxu0
      %1095 = vmatmul.f32.gmra.mxu0 %v1033
      %v1096 = vpop.f32.mrf.mxu0
      %v1097 = vadd.f32 0.0, %v1096
      %1098 = vmatmul.f32.gmra.mxu0 %v1034
      %v1099 = vpop.f32.mrf.mxu0
      %v1100 = vadd.f32 0.0, %v1099
      %1101 = vmatmul.f32.gmra.mxu0 %v1035
      %v1102 = vpop.f32.mrf.mxu0
      %1103 = vmatmul.f32.gmra.mxu0 %v1036
      %v1104 = vpop.f32.mrf.mxu0
      %v1105 = vadd.f32 0.0, %v1104
      %1106 = vmatmul.f32.gmra.mxu0 %v1037
      %v1107 = vpop.f32.mrf.mxu0
      %v1108 = vadd.f32 0.0, %v1107
      %1109 = vmatmul.f32.gmra.mxu0 %v1038
      %v1110 = vpop.f32.mrf.mxu0
      %1111 = vmatmul.f32.gmra.mxu0 %v1039
      %v1112 = vpop.f32.mrf.mxu0
      %v1113 = vadd.f32 0.0, %v1112
      %1114 = vmatmul.f32.gmra.mxu0 %v1040
      %v1115 = vpop.f32.mrf.mxu0
      %v1116 = vadd.f32 0.0, %v1115
      %1117 = vmatmul.f32.gmra.mxu0 %v1041
      %v1118 = vpop.f32.mrf.mxu0
      %1119 = vmatmul.f32.gmra.mxu0 %v1042
      %v1120 = vpop.f32.mrf.mxu0
      %v1121 = vadd.f32 0.0, %v1120
      %1122 = vmatmul.f32.gmra.mxu0 %v1043
      %v1123 = vpop.f32.mrf.mxu0
      %v1124 = vadd.f32 0.0, %v1123
      %1125 = vmatmul.f32.gmra.mxu0 %v1044
      %v1126 = vpop.f32.mrf.mxu0
      %1127 = vmatmul.f32.gmra.mxu0 %v1045
      %v1128 = vpop.f32.mrf.mxu0
      %v1129 = vadd.f32 0.0, %v1128
      %1130 = vmatmul.f32.gmra.mxu0 %v1046
      %v1131 = vpop.f32.mrf.mxu0
      %v1132 = vadd.f32 0.0, %v1131
      %1133 = vmatmul.f32.gmra.mxu0 %v1047
      %v1134 = vpop.f32.mrf.mxu0
      %1135 = vmatmul.f32.gmra.mxu0 %v1048
      %v1136 = vpop.f32.mrf.mxu0
      %v1137 = vadd.f32 0.0, %v1136
      %1138 = vmatmul.f32.gmra.mxu0 %v1049
      %v1139 = vpop.f32.mrf.mxu0
      %v1140 = vadd.f32 0.0, %v1139
      %1141 = vmatmul.f32.gmra.mxu0 %v1050
      %v1142 = vpop.f32.mrf.mxu0
      %1143 = vmatmul.f32.gmra.mxu0 %v1051
      %v1144 = vpop.f32.mrf.mxu0
      %v1145 = vadd.f32 0.0, %v1144
      %1146 = vmatmul.f32.gmra.mxu0 %v1052
      %v1147 = vpop.f32.mrf.mxu0
      %v1148 = vadd.f32 0.0, %v1147
      %1149 = vmatmul.f32.gmra.mxu0 %v1053
      %v1150 = vpop.f32.mrf.mxu0
      %1151 = vdwg.mxu0
      %1152 = vmatpush.msra.mxu0 %v1029
      %1153 = vmatpush.msra.mxu0 %v1028
      %1154 = vmatpush.msra.mxu0 %v1027
      %1155 = vmatpush.msra.mxu0 %v1026
      %1156 = vmatpush.msra.mxu0 %v1025
      %1157 = vmatpush.msra.mxu0 %v1024
      %1158 = vmatpush.msra.mxu0 %v1023
      %1159 = vmatpush.msra.mxu0 %v1022
      %1160 = vmatpush.msra.mxu0 %v1021
      %1161 = vmatpush.msra.mxu0 %v1020
      %1162 = vmatpush.msra.mxu0 %v1019
      %1163 = vmatpush.msra.mxu0 %v1018
      %1164 = vmatpush.msra.mxu0 %v1017
      %1165 = vmatpush.msra.mxu0 %v1016
      %1166 = vmatpush.msra.mxu0 %v1015
      %1167 = vmatpush.msra.mxu0 %v1014
      %1168 = vmatmul.f32.gmra.mxu0 %v990
      %v1169 = vpop.f32.mrf.mxu0
      %v1170 = vadd.f32 %v1089, %v1169
      %1171 = vmatmul.f32.gmra.mxu0 %v991
      %v1172 = vpop.f32.mrf.mxu0
      %v1173 = vadd.f32 %v1092, %v1172
      %1174 = vmatmul.f32.gmra.mxu0 %v992
      %v1175 = vpop.f32.mrf.mxu0
      %1176 = vmatmul.f32.gmra.mxu0 %v993
      %v1177 = vpop.f32.mrf.mxu0
      %v1178 = vadd.f32 %v1097, %v1177
      %1179 = vmatmul.f32.gmra.mxu0 %v994
      %v1180 = vpop.f32.mrf.mxu0
      %v1181 = vadd.f32 %v1100, %v1180
      %1182 = vmatmul.f32.gmra.mxu0 %v995
      %v1183 = vpop.f32.mrf.mxu0
      %1184 = vmatmul.f32.gmra.mxu0 %v996
      %v1185 = vpop.f32.mrf.mxu0
      %v1186 = vadd.f32 %v1105, %v1185
      %1187 = vmatmul.f32.gmra.mxu0 %v997
      %v1188 = vpop.f32.mrf.mxu0
      %v1189 = vadd.f32 %v1108, %v1188
      %1190 = vmatmul.f32.gmra.mxu0 %v998
      %v1191 = vpop.f32.mrf.mxu0
      %1192 = vmatmul.f32.gmra.mxu0 %v999
      %v1193 = vpop.f32.mrf.mxu0
      %v1194 = vadd.f32 %v1113, %v1193
      %1195 = vmatmul.f32.gmra.mxu0 %v1000
      %v1196 = vpop.f32.mrf.mxu0
      %v1197 = vadd.f32 %v1116, %v1196
      %1198 = vmatmul.f32.gmra.mxu0 %v1001
      %v1199 = vpop.f32.mrf.mxu0
      %1200 = vmatmul.f32.gmra.mxu0 %v1002
      %v1201 = vpop.f32.mrf.mxu0
      %v1202 = vadd.f32 %v1121, %v1201
      %1203 = vmatmul.f32.gmra.mxu0 %v1003
      %v1204 = vpop.f32.mrf.mxu0
      %v1205 = vadd.f32 %v1124, %v1204
      %1206 = vmatmul.f32.gmra.mxu0 %v1004
      %v1207 = vpop.f32.mrf.mxu0
      %1208 = vmatmul.f32.gmra.mxu0 %v1005
      %v1209 = vpop.f32.mrf.mxu0
      %v1210 = vadd.f32 %v1129, %v1209
      %1211 = vmatmul.f32.gmra.mxu0 %v1006
      %v1212 = vpop.f32.mrf.mxu0
      %v1213 = vadd.f32 %v1132, %v1212
      %1214 = vmatmul.f32.gmra.mxu0 %v1007
      %v1215 = vpop.f32.mrf.mxu0
      %1216 = vmatmul.f32.gmra.mxu0 %v1008
      %v1217 = vpop.f32.mrf.mxu0
      %v1218 = vadd.f32 %v1137, %v1217
      %1219 = vmatmul.f32.gmra.mxu0 %v1009
      %v1220 = vpop.f32.mrf.mxu0
      %v1221 = vadd.f32 %v1140, %v1220
      %1222 = vmatmul.f32.gmra.mxu0 %v1010
      %v1223 = vpop.f32.mrf.mxu0
      %1224 = vmatmul.f32.gmra.mxu0 %v1011
      %v1225 = vpop.f32.mrf.mxu0
      %v1226 = vadd.f32 %v1145, %v1225
      %1227 = vmatmul.f32.gmra.mxu0 %v1012
      %v1228 = vpop.f32.mrf.mxu0
      %v1229 = vadd.f32 %v1148, %v1228
      %1230 = vmatmul.f32.gmra.mxu0 %v1013
      %v1231 = vpop.f32.mrf.mxu0
      %1232 = vdwg.mxu0
      %v1233 = vld [vmem:[#allocation4 + $0x9] sm:$0xff]
      %v1234 = vld [vmem:[#allocation4 + $0x11] sm:$0xff]
      %v1235 = vld [vmem:[#allocation4 + $0x19] sm:$0xff]
      %v1236 = vld [vmem:[#allocation4 + $0x21] sm:$0xff]
      %v1237 = vld [vmem:[#allocation4 + $0x29] sm:$0xff]
      %v1238 = vld [vmem:[#allocation4 + $0x31] sm:$0xff]
      %v1239 = vld [vmem:[#allocation4 + $0x39] sm:$0xff]
      %v1240 = vld [vmem:[#allocation4 + $0x41] sm:$0xff]
      %v1241 = vld [vmem:[#allocation4 + $0x49] sm:$0xff]
      %v1242 = vld [vmem:[#allocation4 + $0x51] sm:$0xff]
      %v1243 = vld [vmem:[#allocation4 + $0x59] sm:$0xff]
      %v1244 = vld [vmem:[#allocation4 + $0x61] sm:$0xff]
      %v1245 = vld [vmem:[#allocation4 + $0x69] sm:$0xff]
      %v1246 = vld [vmem:[#allocation4 + $0x71] sm:$0xff]
      %v1247 = vld [vmem:[#allocation4 + $0x79] sm:$0xff]
      %v1248 = vld [vmem:[#allocation4 + $0x81] sm:$0xff]
      %v1249 = vld [vmem:[#allocation4 + $0x89] sm:$0xff]
      %v1250 = vld [vmem:[#allocation4 + $0x91] sm:$0xff]
      %v1251 = vld [vmem:[#allocation4 + $0x99] sm:$0xff]
      %v1252 = vld [vmem:[#allocation4 + $0xa1] sm:$0xff]
      %v1253 = vld [vmem:[#allocation4 + $0xa9] sm:$0xff]
      %v1254 = vld [vmem:[#allocation4 + $0xb1] sm:$0xff]
      %v1255 = vld [vmem:[#allocation4 + $0xb9] sm:$0xff]
      %v1256 = vld [vmem:[#allocation4 + $0xc1] sm:$0xff]
      %s1257 = scalar_lea.vmem %s4, 256
      %v1258 = vld [vmem:[%s1257] sm:$0xff]
      %v1259 = vld [vmem:[%s1257 + $0x8] sm:$0xff]
      %v1260 = vld [vmem:[%s1257 + $0x10] sm:$0xff]
      %v1261 = vld [vmem:[%s1257 + $0x18] sm:$0xff]
      %v1262 = vld [vmem:[%s1257 + $0x20] sm:$0xff]
      %v1263 = vld [vmem:[%s1257 + $0x28] sm:$0xff]
      %v1264 = vld [vmem:[%s1257 + $0x30] sm:$0xff]
      %v1265 = vld [vmem:[%s1257 + $0x38] sm:$0xff]
      %v1266 = vld [vmem:[%s1257 + $0x40] sm:$0xff]
      %v1267 = vld [vmem:[%s1257 + $0x48] sm:$0xff]
      %v1268 = vld [vmem:[%s1257 + $0x50] sm:$0xff]
      %v1269 = vld [vmem:[%s1257 + $0x58] sm:$0xff]
      %v1270 = vld [vmem:[%s1257 + $0x60] sm:$0xff]
      %v1271 = vld [vmem:[%s1257 + $0x68] sm:$0xff]
      %v1272 = vld [vmem:[%s1257 + $0x70] sm:$0xff]
      %v1273 = vld [vmem:[%s1257 + $0x78] sm:$0xff]
      %1274 = vmatpush.msra.mxu0 %v1273
      %1275 = vmatpush.msra.mxu0 %v1272
      %1276 = vmatpush.msra.mxu0 %v1271
      %1277 = vmatpush.msra.mxu0 %v1270
      %1278 = vmatpush.msra.mxu0 %v1269
      %1279 = vmatpush.msra.mxu0 %v1268
      %1280 = vmatpush.msra.mxu0 %v1267
      %1281 = vmatpush.msra.mxu0 %v1266
      %1282 = vmatpush.msra.mxu0 %v1265
      %1283 = vmatpush.msra.mxu0 %v1264
      %1284 = vmatpush.msra.mxu0 %v1263
      %1285 = vmatpush.msra.mxu0 %v1262
      %1286 = vmatpush.msra.mxu0 %v1261
      %1287 = vmatpush.msra.mxu0 %v1260
      %1288 = vmatpush.msra.mxu0 %v1259
      %1289 = vmatpush.msra.mxu0 %v1258
      %1290 = vmatmul.f32.gmra.mxu0 %v1233
      %v1291 = vpop.f32.mrf.mxu0
      %v1292 = vadd.f32 0.0, %v1291
      %1293 = vmatmul.f32.gmra.mxu0 %v1234
      %v1294 = vpop.f32.mrf.mxu0
      %v1295 = vadd.f32 0.0, %v1294
      %1296 = vmatmul.f32.gmra.mxu0 %v1235
      %v1297 = vpop.f32.mrf.mxu0
      %1298 = vmatmul.f32.gmra.mxu0 %v1236
      %v1299 = vpop.f32.mrf.mxu0
      %v1300 = vadd.f32 0.0, %v1299
      %1301 = vmatmul.f32.gmra.mxu0 %v1237
      %v1302 = vpop.f32.mrf.mxu0
      %v1303 = vadd.f32 0.0, %v1302
      %1304 = vmatmul.f32.gmra.mxu0 %v1238
      %v1305 = vpop.f32.mrf.mxu0
      %1306 = vmatmul.f32.gmra.mxu0 %v1239
      %v1307 = vpop.f32.mrf.mxu0
      %v1308 = vadd.f32 0.0, %v1307
      %1309 = vmatmul.f32.gmra.mxu0 %v1240
      %v1310 = vpop.f32.mrf.mxu0
      %v1311 = vadd.f32 0.0, %v1310
      %1312 = vmatmul.f32.gmra.mxu0 %v1241
      %v1313 = vpop.f32.mrf.mxu0
      %1314 = vmatmul.f32.gmra.mxu0 %v1242
      %v1315 = vpop.f32.mrf.mxu0
      %v1316 = vadd.f32 0.0, %v1315
      %1317 = vmatmul.f32.gmra.mxu0 %v1243
      %v1318 = vpop.f32.mrf.mxu0
      %v1319 = vadd.f32 0.0, %v1318
      %1320 = vmatmul.f32.gmra.mxu0 %v1244
      %v1321 = vpop.f32.mrf.mxu0
      %1322 = vmatmul.f32.gmra.mxu0 %v1245
      %v1323 = vpop.f32.mrf.mxu0
      %v1324 = vadd.f32 0.0, %v1323
      %1325 = vmatmul.f32.gmra.mxu0 %v1246
      %v1326 = vpop.f32.mrf.mxu0
      %v1327 = vadd.f32 0.0, %v1326
      %1328 = vmatmul.f32.gmra.mxu0 %v1247
      %v1329 = vpop.f32.mrf.mxu0
      %1330 = vmatmul.f32.gmra.mxu0 %v1248
      %v1331 = vpop.f32.mrf.mxu0
      %v1332 = vadd.f32 0.0, %v1331
      %1333 = vmatmul.f32.gmra.mxu0 %v1249
      %v1334 = vpop.f32.mrf.mxu0
      %v1335 = vadd.f32 0.0, %v1334
      %1336 = vmatmul.f32.gmra.mxu0 %v1250
      %v1337 = vpop.f32.mrf.mxu0
      %1338 = vmatmul.f32.gmra.mxu0 %v1251
      %v1339 = vpop.f32.mrf.mxu0
      %v1340 = vadd.f32 0.0, %v1339
      %1341 = vmatmul.f32.gmra.mxu0 %v1252
      %v1342 = vpop.f32.mrf.mxu0
      %v1343 = vadd.f32 0.0, %v1342
      %1344 = vmatmul.f32.gmra.mxu0 %v1253
      %v1345 = vpop.f32.mrf.mxu0
      %1346 = vmatmul.f32.gmra.mxu0 %v1254
      %v1347 = vpop.f32.mrf.mxu0
      %v1348 = vadd.f32 0.0, %v1347
      %1349 = vmatmul.f32.gmra.mxu0 %v1255
      %v1350 = vpop.f32.mrf.mxu0
      %v1351 = vadd.f32 0.0, %v1350
      %1352 = vmatmul.f32.gmra.mxu0 %v1256
      %v1353 = vpop.f32.mrf.mxu0
      %1354 = vdwg.mxu0
      %v1355 = vadd.f32 %v1170, %v1292
      %v1356 = vadd.f32 %v1173, %v1295
      %v1357 = vadd.f32 %v1178, %v1300
      %v1358 = vadd.f32 %v1181, %v1303
      %v1359 = vadd.f32 %v1186, %v1308
      %v1360 = vadd.f32 %v1189, %v1311
      %v1361 = vadd.f32 %v1194, %v1316
      %v1362 = vadd.f32 %v1197, %v1319
      %v1363 = vadd.f32 %v1202, %v1324
      %v1364 = vadd.f32 %v1205, %v1327
      %v1365 = vadd.f32 %v1210, %v1332
      %v1366 = vadd.f32 %v1213, %v1335
      %v1367 = vadd.f32 %v1218, %v1340
      %v1368 = vadd.f32 %v1221, %v1343
      %v1369 = vadd.f32 %v1226, %v1348
      %v1370 = vadd.f32 %v1229, %v1351
      %v1371 = vld [vmem:[#allocation4 + $0x1f] sm:$0xff]
      %v1372 = vld [vmem:[#allocation4 + $0x27] sm:$0xff]
      %v1373 = vld [vmem:[#allocation4 + $0x2f] sm:$0xff]
      %v1374 = vld [vmem:[#allocation4 + $0x37] sm:$0xff]
      %v1375 = vld [vmem:[#allocation4 + $0x3f] sm:$0xff]
      %v1376 = vld [vmem:[#allocation4 + $0x47] sm:$0xff]
      %v1377 = vld [vmem:[#allocation4 + $0x4f] sm:$0xff]
      %v1378 = vld [vmem:[#allocation4 + $0x57] sm:$0xff]
      %v1379 = vld [vmem:[#allocation4 + $0x5f] sm:$0xff]
      %v1380 = vld [vmem:[#allocation4 + $0x67] sm:$0xff]
      %v1381 = vld [vmem:[#allocation4 + $0x6f] sm:$0xff]
      %v1382 = vld [vmem:[#allocation4 + $0x77] sm:$0xff]
      %v1383 = vld [vmem:[#allocation4 + $0x7f] sm:$0xff]
      %v1384 = vld [vmem:[#allocation4 + $0x87] sm:$0xff]
      %v1385 = vld [vmem:[#allocation4 + $0x8f] sm:$0xff]
      %v1386 = vld [vmem:[#allocation4 + $0x97] sm:$0xff]
      %v1387 = vld [vmem:[#allocation4 + $0x9f] sm:$0xff]
      %v1388 = vld [vmem:[#allocation4 + $0xa7] sm:$0xff]
      %v1389 = vld [vmem:[#allocation4 + $0xaf] sm:$0xff]
      %v1390 = vld [vmem:[#allocation4 + $0xb7] sm:$0xff]
      %v1391 = vld [vmem:[#allocation4 + $0xbf] sm:$0xff]
      %v1392 = vld [vmem:[#allocation4 + $0xc7] sm:$0xff]
      %v1393 = vld [vmem:[#allocation4 + $0xcf] sm:$0xff]
      %v1394 = vld [vmem:[#allocation4 + $0xd7] sm:$0xff]
      %s1395 = scalar_lea.vmem %s4, 384
      %v1396 = vld [vmem:[%s1395] sm:$0xff]
      %v1397 = vld [vmem:[%s1395 + $0x8] sm:$0xff]
      %v1398 = vld [vmem:[%s1395 + $0x10] sm:$0xff]
      %v1399 = vld [vmem:[%s1395 + $0x18] sm:$0xff]
      %v1400 = vld [vmem:[%s1395 + $0x20] sm:$0xff]
      %v1401 = vld [vmem:[%s1395 + $0x28] sm:$0xff]
      %v1402 = vld [vmem:[%s1395 + $0x30] sm:$0xff]
      %v1403 = vld [vmem:[%s1395 + $0x38] sm:$0xff]
      %v1404 = vld [vmem:[%s1395 + $0x40] sm:$0xff]
      %v1405 = vld [vmem:[%s1395 + $0x48] sm:$0xff]
      %v1406 = vld [vmem:[%s1395 + $0x50] sm:$0xff]
      %v1407 = vld [vmem:[%s1395 + $0x58] sm:$0xff]
      %v1408 = vld [vmem:[%s1395 + $0x60] sm:$0xff]
      %v1409 = vld [vmem:[%s1395 + $0x68] sm:$0xff]
      %v1410 = vld [vmem:[%s1395 + $0x70] sm:$0xff]
      %v1411 = vld [vmem:[%s1395 + $0x78] sm:$0xff]
      %1412 = vmatpush.msra.mxu0 %v1411
      %1413 = vmatpush.msra.mxu0 %v1410
      %1414 = vmatpush.msra.mxu0 %v1409
      %1415 = vmatpush.msra.mxu0 %v1408
      %1416 = vmatpush.msra.mxu0 %v1407
      %1417 = vmatpush.msra.mxu0 %v1406
      %1418 = vmatpush.msra.mxu0 %v1405
      %1419 = vmatpush.msra.mxu0 %v1404
      %1420 = vmatpush.msra.mxu0 %v1403
      %1421 = vmatpush.msra.mxu0 %v1402
      %1422 = vmatpush.msra.mxu0 %v1401
      %1423 = vmatpush.msra.mxu0 %v1400
      %1424 = vmatpush.msra.mxu0 %v1399
      %1425 = vmatpush.msra.mxu0 %v1398
      %1426 = vmatpush.msra.mxu0 %v1397
      %1427 = vmatpush.msra.mxu0 %v1396
      %1428 = vmatmul.f32.gmra.mxu0 %v1371
      %v1429 = vpop.f32.mrf.mxu0
      %v1430 = vadd.f32 0.0, %v1429
      %1431 = vmatmul.f32.gmra.mxu0 %v1372
      %v1432 = vpop.f32.mrf.mxu0
      %v1433 = vadd.f32 0.0, %v1432
      %1434 = vmatmul.f32.gmra.mxu0 %v1373
      %v1435 = vpop.f32.mrf.mxu0
      %1436 = vmatmul.f32.gmra.mxu0 %v1374
      %v1437 = vpop.f32.mrf.mxu0
      %v1438 = vadd.f32 0.0, %v1437
      %1439 = vmatmul.f32.gmra.mxu0 %v1375
      %v1440 = vpop.f32.mrf.mxu0
      %v1441 = vadd.f32 0.0, %v1440
      %1442 = vmatmul.f32.gmra.mxu0 %v1376
      %v1443 = vpop.f32.mrf.mxu0
      %1444 = vmatmul.f32.gmra.mxu0 %v1377
      %v1445 = vpop.f32.mrf.mxu0
      %v1446 = vadd.f32 0.0, %v1445
      %1447 = vmatmul.f32.gmra.mxu0 %v1378
      %v1448 = vpop.f32.mrf.mxu0
      %v1449 = vadd.f32 0.0, %v1448
      %1450 = vmatmul.f32.gmra.mxu0 %v1379
      %v1451 = vpop.f32.mrf.mxu0
      %1452 = vmatmul.f32.gmra.mxu0 %v1380
      %v1453 = vpop.f32.mrf.mxu0
      %v1454 = vadd.f32 0.0, %v1453
      %1455 = vmatmul.f32.gmra.mxu0 %v1381
      %v1456 = vpop.f32.mrf.mxu0
      %v1457 = vadd.f32 0.0, %v1456
      %1458 = vmatmul.f32.gmra.mxu0 %v1382
      %v1459 = vpop.f32.mrf.mxu0
      %1460 = vmatmul.f32.gmra.mxu0 %v1383
      %v1461 = vpop.f32.mrf.mxu0
      %v1462 = vadd.f32 0.0, %v1461
      %1463 = vmatmul.f32.gmra.mxu0 %v1384
      %v1464 = vpop.f32.mrf.mxu0
      %v1465 = vadd.f32 0.0, %v1464
      %1466 = vmatmul.f32.gmra.mxu0 %v1385
      %v1467 = vpop.f32.mrf.mxu0
      %1468 = vmatmul.f32.gmra.mxu0 %v1386
      %v1469 = vpop.f32.mrf.mxu0
      %v1470 = vadd.f32 0.0, %v1469
      %1471 = vmatmul.f32.gmra.mxu0 %v1387
      %v1472 = vpop.f32.mrf.mxu0
      %v1473 = vadd.f32 0.0, %v1472
      %1474 = vmatmul.f32.gmra.mxu0 %v1388
      %v1475 = vpop.f32.mrf.mxu0
      %1476 = vmatmul.f32.gmra.mxu0 %v1389
      %v1477 = vpop.f32.mrf.mxu0
      %v1478 = vadd.f32 0.0, %v1477
      %1479 = vmatmul.f32.gmra.mxu0 %v1390
      %v1480 = vpop.f32.mrf.mxu0
      %v1481 = vadd.f32 0.0, %v1480
      %1482 = vmatmul.f32.gmra.mxu0 %v1391
      %v1483 = vpop.f32.mrf.mxu0
      %1484 = vmatmul.f32.gmra.mxu0 %v1392
      %v1485 = vpop.f32.mrf.mxu0
      %v1486 = vadd.f32 0.0, %v1485
      %1487 = vmatmul.f32.gmra.mxu0 %v1393
      %v1488 = vpop.f32.mrf.mxu0
      %v1489 = vadd.f32 0.0, %v1488
      %1490 = vmatmul.f32.gmra.mxu0 %v1394
      %v1491 = vpop.f32.mrf.mxu0
      %1492 = vdwg.mxu0
      %v1493 = vadd.f32 %v1355, %v1430
      %v1494 = vadd.f32 %v1356, %v1433
      %v1495 = vadd.f32 %v1357, %v1438
      %v1496 = vadd.f32 %v1358, %v1441
      %v1497 = vadd.f32 %v1359, %v1446
      %v1498 = vadd.f32 %v1360, %v1449
      %v1499 = vadd.f32 %v1361, %v1454
      %v1500 = vadd.f32 %v1362, %v1457
      %v1501 = vadd.f32 %v1363, %v1462
      %v1502 = vadd.f32 %v1364, %v1465
      %v1503 = vadd.f32 %v1365, %v1470
      %v1504 = vadd.f32 %v1366, %v1473
      %v1505 = vadd.f32 %v1367, %v1478
      %v1506 = vadd.f32 %v1368, %v1481
      %v1507 = vadd.f32 %v1369, %v1486
      %v1508 = vadd.f32 %v1370, %v1489
      %v1509 = vld [vmem:[#allocation4 + $0x20] sm:$0xff]
      %v1510 = vld [vmem:[#allocation4 + $0x28] sm:$0xff]
      %v1511 = vld [vmem:[#allocation4 + $0x30] sm:$0xff]
      %v1512 = vld [vmem:[#allocation4 + $0x38] sm:$0xff]
      %v1513 = vld [vmem:[#allocation4 + $0x40] sm:$0xff]
      %v1514 = vld [vmem:[#allocation4 + $0x48] sm:$0xff]
      %v1515 = vld [vmem:[#allocation4 + $0x50] sm:$0xff]
      %v1516 = vld [vmem:[#allocation4 + $0x58] sm:$0xff]
      %v1517 = vld [vmem:[#allocation4 + $0x60] sm:$0xff]
      %v1518 = vld [vmem:[#allocation4 + $0x68] sm:$0xff]
      %v1519 = vld [vmem:[#allocation4 + $0x70] sm:$0xff]
      %v1520 = vld [vmem:[#allocation4 + $0x78] sm:$0xff]
      %v1521 = vld [vmem:[#allocation4 + $0x80] sm:$0xff]
      %v1522 = vld [vmem:[#allocation4 + $0x88] sm:$0xff]
      %v1523 = vld [vmem:[#allocation4 + $0x90] sm:$0xff]
      %v1524 = vld [vmem:[#allocation4 + $0x98] sm:$0xff]
      %v1525 = vld [vmem:[#allocation4 + $0xa0] sm:$0xff]
      %v1526 = vld [vmem:[#allocation4 + $0xa8] sm:$0xff]
      %v1527 = vld [vmem:[#allocation4 + $0xb0] sm:$0xff]
      %v1528 = vld [vmem:[#allocation4 + $0xb8] sm:$0xff]
      %v1529 = vld [vmem:[#allocation4 + $0xc0] sm:$0xff]
      %v1530 = vld [vmem:[#allocation4 + $0xc8] sm:$0xff]
      %v1531 = vld [vmem:[#allocation4 + $0xd0] sm:$0xff]
      %v1532 = vld [vmem:[#allocation4 + $0xd8] sm:$0xff]
      %s1533 = scalar_lea.vmem %s4, 512
      %v1534 = vld [vmem:[%s1533] sm:$0xff]
      %v1535 = vld [vmem:[%s1533 + $0x8] sm:$0xff]
      %v1536 = vld [vmem:[%s1533 + $0x10] sm:$0xff]
      %v1537 = vld [vmem:[%s1533 + $0x18] sm:$0xff]
      %v1538 = vld [vmem:[%s1533 + $0x20] sm:$0xff]
      %v1539 = vld [vmem:[%s1533 + $0x28] sm:$0xff]
      %v1540 = vld [vmem:[%s1533 + $0x30] sm:$0xff]
      %v1541 = vld [vmem:[%s1533 + $0x38] sm:$0xff]
      %v1542 = vld [vmem:[%s1533 + $0x40] sm:$0xff]
      %v1543 = vld [vmem:[%s1533 + $0x48] sm:$0xff]
      %v1544 = vld [vmem:[%s1533 + $0x50] sm:$0xff]
      %v1545 = vld [vmem:[%s1533 + $0x58] sm:$0xff]
      %v1546 = vld [vmem:[%s1533 + $0x60] sm:$0xff]
      %v1547 = vld [vmem:[%s1533 + $0x68] sm:$0xff]
      %v1548 = vld [vmem:[%s1533 + $0x70] sm:$0xff]
      %v1549 = vld [vmem:[%s1533 + $0x78] sm:$0xff]
      %1550 = vmatpush.msra.mxu0 %v1549
      %1551 = vmatpush.msra.mxu0 %v1548
      %1552 = vmatpush.msra.mxu0 %v1547
      %1553 = vmatpush.msra.mxu0 %v1546
      %1554 = vmatpush.msra.mxu0 %v1545
      %1555 = vmatpush.msra.mxu0 %v1544
      %1556 = vmatpush.msra.mxu0 %v1543
      %1557 = vmatpush.msra.mxu0 %v1542
      %1558 = vmatpush.msra.mxu0 %v1541
      %1559 = vmatpush.msra.mxu0 %v1540
      %1560 = vmatpush.msra.mxu0 %v1539
      %1561 = vmatpush.msra.mxu0 %v1538
      %1562 = vmatpush.msra.mxu0 %v1537
      %1563 = vmatpush.msra.mxu0 %v1536
      %1564 = vmatpush.msra.mxu0 %v1535
      %1565 = vmatpush.msra.mxu0 %v1534
      %1566 = vmatmul.f32.gmra.mxu0 %v1509
      %v1567 = vpop.f32.mrf.mxu0
      %v1568 = vadd.f32 0.0, %v1567
      %1569 = vmatmul.f32.gmra.mxu0 %v1510
      %v1570 = vpop.f32.mrf.mxu0
      %v1571 = vadd.f32 0.0, %v1570
      %1572 = vmatmul.f32.gmra.mxu0 %v1511
      %v1573 = vpop.f32.mrf.mxu0
      %1574 = vmatmul.f32.gmra.mxu0 %v1512
      %v1575 = vpop.f32.mrf.mxu0
      %v1576 = vadd.f32 0.0, %v1575
      %1577 = vmatmul.f32.gmra.mxu0 %v1513
      %v1578 = vpop.f32.mrf.mxu0
      %v1579 = vadd.f32 0.0, %v1578
      %1580 = vmatmul.f32.gmra.mxu0 %v1514
      %v1581 = vpop.f32.mrf.mxu0
      %1582 = vmatmul.f32.gmra.mxu0 %v1515
      %v1583 = vpop.f32.mrf.mxu0
      %v1584 = vadd.f32 0.0, %v1583
      %1585 = vmatmul.f32.gmra.mxu0 %v1516
      %v1586 = vpop.f32.mrf.mxu0
      %v1587 = vadd.f32 0.0, %v1586
      %1588 = vmatmul.f32.gmra.mxu0 %v1517
      %v1589 = vpop.f32.mrf.mxu0
      %1590 = vmatmul.f32.gmra.mxu0 %v1518
      %v1591 = vpop.f32.mrf.mxu0
      %v1592 = vadd.f32 0.0, %v1591
      %1593 = vmatmul.f32.gmra.mxu0 %v1519
      %v1594 = vpop.f32.mrf.mxu0
      %v1595 = vadd.f32 0.0, %v1594
      %1596 = vmatmul.f32.gmra.mxu0 %v1520
      %v1597 = vpop.f32.mrf.mxu0
      %1598 = vmatmul.f32.gmra.mxu0 %v1521
      %v1599 = vpop.f32.mrf.mxu0
      %v1600 = vadd.f32 0.0, %v1599
      %1601 = vmatmul.f32.gmra.mxu0 %v1522
      %v1602 = vpop.f32.mrf.mxu0
      %v1603 = vadd.f32 0.0, %v1602
      %1604 = vmatmul.f32.gmra.mxu0 %v1523
      %v1605 = vpop.f32.mrf.mxu0
      %1606 = vmatmul.f32.gmra.mxu0 %v1524
      %v1607 = vpop.f32.mrf.mxu0
      %v1608 = vadd.f32 0.0, %v1607
      %1609 = vmatmul.f32.gmra.mxu0 %v1525
      %v1610 = vpop.f32.mrf.mxu0
      %v1611 = vadd.f32 0.0, %v1610
      %1612 = vmatmul.f32.gmra.mxu0 %v1526
      %v1613 = vpop.f32.mrf.mxu0
      %1614 = vmatmul.f32.gmra.mxu0 %v1527
      %v1615 = vpop.f32.mrf.mxu0
      %v1616 = vadd.f32 0.0, %v1615
      %1617 = vmatmul.f32.gmra.mxu0 %v1528
      %v1618 = vpop.f32.mrf.mxu0
      %v1619 = vadd.f32 0.0, %v1618
      %1620 = vmatmul.f32.gmra.mxu0 %v1529
      %v1621 = vpop.f32.mrf.mxu0
      %1622 = vmatmul.f32.gmra.mxu0 %v1530
      %v1623 = vpop.f32.mrf.mxu0
      %v1624 = vadd.f32 0.0, %v1623
      %1625 = vmatmul.f32.gmra.mxu0 %v1531
      %v1626 = vpop.f32.mrf.mxu0
      %v1627 = vadd.f32 0.0, %v1626
      %1628 = vmatmul.f32.gmra.mxu0 %v1532
      %v1629 = vpop.f32.mrf.mxu0
      %1630 = vdwg.mxu0
      %v1631 = vadd.f32 %v1493, %v1568
      %v1632 = vadd.f32 %v1494, %v1571
      %v1633 = vadd.f32 %v1495, %v1576
      %v1634 = vadd.f32 %v1496, %v1579
      %v1635 = vadd.f32 %v1497, %v1584
      %v1636 = vadd.f32 %v1498, %v1587
      %v1637 = vadd.f32 %v1499, %v1592
      %v1638 = vadd.f32 %v1500, %v1595
      %v1639 = vadd.f32 %v1501, %v1600
      %v1640 = vadd.f32 %v1502, %v1603
      %v1641 = vadd.f32 %v1503, %v1608
      %v1642 = vadd.f32 %v1504, %v1611
      %v1643 = vadd.f32 %v1505, %v1616
      %v1644 = vadd.f32 %v1506, %v1619
      %v1645 = vadd.f32 %v1507, %v1624
      %v1646 = vadd.f32 %v1508, %v1627
      %v1647 = vld [vmem:[#allocation4 + $0x21] sm:$0xff]
      %v1648 = vld [vmem:[#allocation4 + $0x29] sm:$0xff]
      %v1649 = vld [vmem:[#allocation4 + $0x31] sm:$0xff]
      %v1650 = vld [vmem:[#allocation4 + $0x39] sm:$0xff]
      %v1651 = vld [vmem:[#allocation4 + $0x41] sm:$0xff]
      %v1652 = vld [vmem:[#allocation4 + $0x49] sm:$0xff]
      %v1653 = vld [vmem:[#allocation4 + $0x51] sm:$0xff]
      %v1654 = vld [vmem:[#allocation4 + $0x59] sm:$0xff]
      %v1655 = vld [vmem:[#allocation4 + $0x61] sm:$0xff]
      %v1656 = vld [vmem:[#allocation4 + $0x69] sm:$0xff]
      %v1657 = vld [vmem:[#allocation4 + $0x71] sm:$0xff]
      %v1658 = vld [vmem:[#allocation4 + $0x79] sm:$0xff]
      %v1659 = vld [vmem:[#allocation4 + $0x81] sm:$0xff]
      %v1660 = vld [vmem:[#allocation4 + $0x89] sm:$0xff]
      %v1661 = vld [vmem:[#allocation4 + $0x91] sm:$0xff]
      %v1662 = vld [vmem:[#allocation4 + $0x99] sm:$0xff]
      %v1663 = vld [vmem:[#allocation4 + $0xa1] sm:$0xff]
      %v1664 = vld [vmem:[#allocation4 + $0xa9] sm:$0xff]
      %v1665 = vld [vmem:[#allocation4 + $0xb1] sm:$0xff]
      %v1666 = vld [vmem:[#allocation4 + $0xb9] sm:$0xff]
      %v1667 = vld [vmem:[#allocation4 + $0xc1] sm:$0xff]
      %v1668 = vld [vmem:[#allocation4 + $0xc9] sm:$0xff]
      %v1669 = vld [vmem:[#allocation4 + $0xd1] sm:$0xff]
      %v1670 = vld [vmem:[#allocation4 + $0xd9] sm:$0xff]
      %s1671 = scalar_lea.vmem %s4, 640
      %v1672 = vld [vmem:[%s1671] sm:$0xff]
      %v1673 = vld [vmem:[%s1671 + $0x8] sm:$0xff]
      %v1674 = vld [vmem:[%s1671 + $0x10] sm:$0xff]
      %v1675 = vld [vmem:[%s1671 + $0x18] sm:$0xff]
      %v1676 = vld [vmem:[%s1671 + $0x20] sm:$0xff]
      %v1677 = vld [vmem:[%s1671 + $0x28] sm:$0xff]
      %v1678 = vld [vmem:[%s1671 + $0x30] sm:$0xff]
      %v1679 = vld [vmem:[%s1671 + $0x38] sm:$0xff]
      %v1680 = vld [vmem:[%s1671 + $0x40] sm:$0xff]
      %v1681 = vld [vmem:[%s1671 + $0x48] sm:$0xff]
      %v1682 = vld [vmem:[%s1671 + $0x50] sm:$0xff]
      %v1683 = vld [vmem:[%s1671 + $0x58] sm:$0xff]
      %v1684 = vld [vmem:[%s1671 + $0x60] sm:$0xff]
      %v1685 = vld [vmem:[%s1671 + $0x68] sm:$0xff]
      %v1686 = vld [vmem:[%s1671 + $0x70] sm:$0xff]
      %v1687 = vld [vmem:[%s1671 + $0x78] sm:$0xff]
      %1688 = vmatpush.msra.mxu0 %v1687
      %1689 = vmatpush.msra.mxu0 %v1686
      %1690 = vmatpush.msra.mxu0 %v1685
      %1691 = vmatpush.msra.mxu0 %v1684
      %1692 = vmatpush.msra.mxu0 %v1683
      %1693 = vmatpush.msra.mxu0 %v1682
      %1694 = vmatpush.msra.mxu0 %v1681
      %1695 = vmatpush.msra.mxu0 %v1680
      %1696 = vmatpush.msra.mxu0 %v1679
      %1697 = vmatpush.msra.mxu0 %v1678
      %1698 = vmatpush.msra.mxu0 %v1677
      %1699 = vmatpush.msra.mxu0 %v1676
      %1700 = vmatpush.msra.mxu0 %v1675
      %1701 = vmatpush.msra.mxu0 %v1674
      %1702 = vmatpush.msra.mxu0 %v1673
      %1703 = vmatpush.msra.mxu0 %v1672
      %1704 = vmatmul.f32.gmra.mxu0 %v1647
      %v1705 = vpop.f32.mrf.mxu0
      %v1706 = vadd.f32 0.0, %v1705
      %1707 = vmatmul.f32.gmra.mxu0 %v1648
      %v1708 = vpop.f32.mrf.mxu0
      %v1709 = vadd.f32 0.0, %v1708
      %1710 = vmatmul.f32.gmra.mxu0 %v1649
      %v1711 = vpop.f32.mrf.mxu0
      %1712 = vmatmul.f32.gmra.mxu0 %v1650
      %v1713 = vpop.f32.mrf.mxu0
      %v1714 = vadd.f32 0.0, %v1713
      %1715 = vmatmul.f32.gmra.mxu0 %v1651
      %v1716 = vpop.f32.mrf.mxu0
      %v1717 = vadd.f32 0.0, %v1716
      %1718 = vmatmul.f32.gmra.mxu0 %v1652
      %v1719 = vpop.f32.mrf.mxu0
      %1720 = vmatmul.f32.gmra.mxu0 %v1653
      %v1721 = vpop.f32.mrf.mxu0
      %v1722 = vadd.f32 0.0, %v1721
      %1723 = vmatmul.f32.gmra.mxu0 %v1654
      %v1724 = vpop.f32.mrf.mxu0
      %v1725 = vadd.f32 0.0, %v1724
      %1726 = vmatmul.f32.gmra.mxu0 %v1655
      %v1727 = vpop.f32.mrf.mxu0
      %1728 = vmatmul.f32.gmra.mxu0 %v1656
      %v1729 = vpop.f32.mrf.mxu0
      %v1730 = vadd.f32 0.0, %v1729
      %1731 = vmatmul.f32.gmra.mxu0 %v1657
      %v1732 = vpop.f32.mrf.mxu0
      %v1733 = vadd.f32 0.0, %v1732
      %1734 = vmatmul.f32.gmra.mxu0 %v1658
      %v1735 = vpop.f32.mrf.mxu0
      %1736 = vmatmul.f32.gmra.mxu0 %v1659
      %v1737 = vpop.f32.mrf.mxu0
      %v1738 = vadd.f32 0.0, %v1737
      %1739 = vmatmul.f32.gmra.mxu0 %v1660
      %v1740 = vpop.f32.mrf.mxu0
      %v1741 = vadd.f32 0.0, %v1740
      %1742 = vmatmul.f32.gmra.mxu0 %v1661
      %v1743 = vpop.f32.mrf.mxu0
      %1744 = vmatmul.f32.gmra.mxu0 %v1662
      %v1745 = vpop.f32.mrf.mxu0
      %v1746 = vadd.f32 0.0, %v1745
      %1747 = vmatmul.f32.gmra.mxu0 %v1663
      %v1748 = vpop.f32.mrf.mxu0
      %v1749 = vadd.f32 0.0, %v1748
      %1750 = vmatmul.f32.gmra.mxu0 %v1664
      %v1751 = vpop.f32.mrf.mxu0
      %1752 = vmatmul.f32.gmra.mxu0 %v1665
      %v1753 = vpop.f32.mrf.mxu0
      %v1754 = vadd.f32 0.0, %v1753
      %1755 = vmatmul.f32.gmra.mxu0 %v1666
      %v1756 = vpop.f32.mrf.mxu0
      %v1757 = vadd.f32 0.0, %v1756
      %1758 = vmatmul.f32.gmra.mxu0 %v1667
      %v1759 = vpop.f32.mrf.mxu0
      %1760 = vmatmul.f32.gmra.mxu0 %v1668
      %v1761 = vpop.f32.mrf.mxu0
      %v1762 = vadd.f32 0.0, %v1761
      %1763 = vmatmul.f32.gmra.mxu0 %v1669
      %v1764 = vpop.f32.mrf.mxu0
      %v1765 = vadd.f32 0.0, %v1764
      %1766 = vmatmul.f32.gmra.mxu0 %v1670
      %v1767 = vpop.f32.mrf.mxu0
      %1768 = vdwg.mxu0
      %v1769 = vadd.f32 %v1631, %v1706
      %v1770 = vadd.f32 %v1632, %v1709
      %v1771 = vadd.f32 %v1633, %v1714
      %v1772 = vadd.f32 %v1634, %v1717
      %v1773 = vadd.f32 %v1635, %v1722
      %v1774 = vadd.f32 %v1636, %v1725
      %v1775 = vadd.f32 %v1637, %v1730
      %v1776 = vadd.f32 %v1638, %v1733
      %v1777 = vadd.f32 %v1639, %v1738
      %v1778 = vadd.f32 %v1640, %v1741
      %v1779 = vadd.f32 %v1641, %v1746
      %v1780 = vadd.f32 %v1642, %v1749
      %v1781 = vadd.f32 %v1643, %v1754
      %v1782 = vadd.f32 %v1644, %v1757
      %v1783 = vadd.f32 %v1645, %v1762
      %v1784 = vadd.f32 %v1646, %v1765
      %v1785 = vld [vmem:[#allocation4 + $0x37] sm:$0xff]
      %v1786 = vld [vmem:[#allocation4 + $0x3f] sm:$0xff]
      %v1787 = vld [vmem:[#allocation4 + $0x47] sm:$0xff]
      %v1788 = vld [vmem:[#allocation4 + $0x4f] sm:$0xff]
      %v1789 = vld [vmem:[#allocation4 + $0x57] sm:$0xff]
      %v1790 = vld [vmem:[#allocation4 + $0x5f] sm:$0xff]
      %v1791 = vld [vmem:[#allocation4 + $0x67] sm:$0xff]
      %v1792 = vld [vmem:[#allocation4 + $0x6f] sm:$0xff]
      %v1793 = vld [vmem:[#allocation4 + $0x77] sm:$0xff]
      %v1794 = vld [vmem:[#allocation4 + $0x7f] sm:$0xff]
      %v1795 = vld [vmem:[#allocation4 + $0x87] sm:$0xff]
      %v1796 = vld [vmem:[#allocation4 + $0x8f] sm:$0xff]
      %v1797 = vld [vmem:[#allocation4 + $0x97] sm:$0xff]
      %v1798 = vld [vmem:[#allocation4 + $0x9f] sm:$0xff]
      %v1799 = vld [vmem:[#allocation4 + $0xa7] sm:$0xff]
      %v1800 = vld [vmem:[#allocation4 + $0xaf] sm:$0xff]
      %v1801 = vld [vmem:[#allocation4 + $0xb7] sm:$0xff]
      %v1802 = vld [vmem:[#allocation4 + $0xbf] sm:$0xff]
      %v1803 = vld [vmem:[#allocation4 + $0xc7] sm:$0xff]
      %v1804 = vld [vmem:[#allocation4 + $0xcf] sm:$0xff]
      %v1805 = vld [vmem:[#allocation4 + $0xd7] sm:$0xff]
      %v1806 = vld [vmem:[#allocation4 + $0xdf] sm:$0xff]
      %v1807 = vld [vmem:[#allocation4 + $0xe7] sm:$0xff]
      %v1808 = vld [vmem:[#allocation4 + $0xef] sm:$0xff]
      %s1809 = scalar_lea.vmem %s4, 768
      %v1810 = vld [vmem:[%s1809] sm:$0xff]
      %v1811 = vld [vmem:[%s1809 + $0x8] sm:$0xff]
      %v1812 = vld [vmem:[%s1809 + $0x10] sm:$0xff]
      %v1813 = vld [vmem:[%s1809 + $0x18] sm:$0xff]
      %v1814 = vld [vmem:[%s1809 + $0x20] sm:$0xff]
      %v1815 = vld [vmem:[%s1809 + $0x28] sm:$0xff]
      %v1816 = vld [vmem:[%s1809 + $0x30] sm:$0xff]
      %v1817 = vld [vmem:[%s1809 + $0x38] sm:$0xff]
      %v1818 = vld [vmem:[%s1809 + $0x40] sm:$0xff]
      %v1819 = vld [vmem:[%s1809 + $0x48] sm:$0xff]
      %v1820 = vld [vmem:[%s1809 + $0x50] sm:$0xff]
      %v1821 = vld [vmem:[%s1809 + $0x58] sm:$0xff]
      %v1822 = vld [vmem:[%s1809 + $0x60] sm:$0xff]
      %v1823 = vld [vmem:[%s1809 + $0x68] sm:$0xff]
      %v1824 = vld [vmem:[%s1809 + $0x70] sm:$0xff]
      %v1825 = vld [vmem:[%s1809 + $0x78] sm:$0xff]
      %1826 = vmatpush.msra.mxu0 %v1825
      %1827 = vmatpush.msra.mxu0 %v1824
      %1828 = vmatpush.msra.mxu0 %v1823
      %1829 = vmatpush.msra.mxu0 %v1822
      %1830 = vmatpush.msra.mxu0 %v1821
      %1831 = vmatpush.msra.mxu0 %v1820
      %1832 = vmatpush.msra.mxu0 %v1819
      %1833 = vmatpush.msra.mxu0 %v1818
      %1834 = vmatpush.msra.mxu0 %v1817
      %1835 = vmatpush.msra.mxu0 %v1816
      %1836 = vmatpush.msra.mxu0 %v1815
      %1837 = vmatpush.msra.mxu0 %v1814
      %1838 = vmatpush.msra.mxu0 %v1813
      %1839 = vmatpush.msra.mxu0 %v1812
      %1840 = vmatpush.msra.mxu0 %v1811
      %1841 = vmatpush.msra.mxu0 %v1810
      %1842 = vmatmul.f32.gmra.mxu0 %v1785
      %v1843 = vpop.f32.mrf.mxu0
      %v1844 = vadd.f32 0.0, %v1843
      %1845 = vmatmul.f32.gmra.mxu0 %v1786
      %v1846 = vpop.f32.mrf.mxu0
      %v1847 = vadd.f32 0.0, %v1846
      %1848 = vmatmul.f32.gmra.mxu0 %v1787
      %v1849 = vpop.f32.mrf.mxu0
      %1850 = vmatmul.f32.gmra.mxu0 %v1788
      %v1851 = vpop.f32.mrf.mxu0
      %v1852 = vadd.f32 0.0, %v1851
      %1853 = vmatmul.f32.gmra.mxu0 %v1789
      %v1854 = vpop.f32.mrf.mxu0
      %v1855 = vadd.f32 0.0, %v1854
      %1856 = vmatmul.f32.gmra.mxu0 %v1790
      %v1857 = vpop.f32.mrf.mxu0
      %1858 = vmatmul.f32.gmra.mxu0 %v1791
      %v1859 = vpop.f32.mrf.mxu0
      %v1860 = vadd.f32 0.0, %v1859
      %1861 = vmatmul.f32.gmra.mxu0 %v1792
      %v1862 = vpop.f32.mrf.mxu0
      %v1863 = vadd.f32 0.0, %v1862
      %1864 = vmatmul.f32.gmra.mxu0 %v1793
      %v1865 = vpop.f32.mrf.mxu0
      %1866 = vmatmul.f32.gmra.mxu0 %v1794
      %v1867 = vpop.f32.mrf.mxu0
      %v1868 = vadd.f32 0.0, %v1867
      %1869 = vmatmul.f32.gmra.mxu0 %v1795
      %v1870 = vpop.f32.mrf.mxu0
      %v1871 = vadd.f32 0.0, %v1870
      %1872 = vmatmul.f32.gmra.mxu0 %v1796
      %v1873 = vpop.f32.mrf.mxu0
      %1874 = vmatmul.f32.gmra.mxu0 %v1797
      %v1875 = vpop.f32.mrf.mxu0
      %v1876 = vadd.f32 0.0, %v1875
      %1877 = vmatmul.f32.gmra.mxu0 %v1798
      %v1878 = vpop.f32.mrf.mxu0
      %v1879 = vadd.f32 0.0, %v1878
      %1880 = vmatmul.f32.gmra.mxu0 %v1799
      %v1881 = vpop.f32.mrf.mxu0
      %1882 = vmatmul.f32.gmra.mxu0 %v1800
      %v1883 = vpop.f32.mrf.mxu0
      %v1884 = vadd.f32 0.0, %v1883
      %1885 = vmatmul.f32.gmra.mxu0 %v1801
      %v1886 = vpop.f32.mrf.mxu0
      %v1887 = vadd.f32 0.0, %v1886
      %1888 = vmatmul.f32.gmra.mxu0 %v1802
      %v1889 = vpop.f32.mrf.mxu0
      %1890 = vmatmul.f32.gmra.mxu0 %v1803
      %v1891 = vpop.f32.mrf.mxu0
      %v1892 = vadd.f32 0.0, %v1891
      %1893 = vmatmul.f32.gmra.mxu0 %v1804
      %v1894 = vpop.f32.mrf.mxu0
      %v1895 = vadd.f32 0.0, %v1894
      %1896 = vmatmul.f32.gmra.mxu0 %v1805
      %v1897 = vpop.f32.mrf.mxu0
      %1898 = vmatmul.f32.gmra.mxu0 %v1806
      %v1899 = vpop.f32.mrf.mxu0
      %v1900 = vadd.f32 0.0, %v1899
      %1901 = vmatmul.f32.gmra.mxu0 %v1807
      %v1902 = vpop.f32.mrf.mxu0
      %v1903 = vadd.f32 0.0, %v1902
      %1904 = vmatmul.f32.gmra.mxu0 %v1808
      %v1905 = vpop.f32.mrf.mxu0
      %1906 = vdwg.mxu0
      %v1907 = vadd.f32 %v1769, %v1844
      %v1908 = vadd.f32 %v1770, %v1847
      %v1909 = vadd.f32 %v1771, %v1852
      %v1910 = vadd.f32 %v1772, %v1855
      %v1911 = vadd.f32 %v1773, %v1860
      %v1912 = vadd.f32 %v1774, %v1863
      %v1913 = vadd.f32 %v1775, %v1868
      %v1914 = vadd.f32 %v1776, %v1871
      %v1915 = vadd.f32 %v1777, %v1876
      %v1916 = vadd.f32 %v1778, %v1879
      %v1917 = vadd.f32 %v1779, %v1884
      %v1918 = vadd.f32 %v1780, %v1887
      %v1919 = vadd.f32 %v1781, %v1892
      %v1920 = vadd.f32 %v1782, %v1895
      %v1921 = vadd.f32 %v1783, %v1900
      %v1922 = vadd.f32 %v1784, %v1903
      %v1923 = vld [vmem:[#allocation4 + $0x38] sm:$0xff]
      %v1924 = vld [vmem:[#allocation4 + $0x40] sm:$0xff]
      %v1925 = vld [vmem:[#allocation4 + $0x48] sm:$0xff]
      %v1926 = vld [vmem:[#allocation4 + $0x50] sm:$0xff]
      %v1927 = vld [vmem:[#allocation4 + $0x58] sm:$0xff]
      %v1928 = vld [vmem:[#allocation4 + $0x60] sm:$0xff]
      %v1929 = vld [vmem:[#allocation4 + $0x68] sm:$0xff]
      %v1930 = vld [vmem:[#allocation4 + $0x70] sm:$0xff]
      %v1931 = vld [vmem:[#allocation4 + $0x78] sm:$0xff]
      %v1932 = vld [vmem:[#allocation4 + $0x80] sm:$0xff]
      %v1933 = vld [vmem:[#allocation4 + $0x88] sm:$0xff]
      %v1934 = vld [vmem:[#allocation4 + $0x90] sm:$0xff]
      %v1935 = vld [vmem:[#allocation4 + $0x98] sm:$0xff]
      %v1936 = vld [vmem:[#allocation4 + $0xa0] sm:$0xff]
      %v1937 = vld [vmem:[#allocation4 + $0xa8] sm:$0xff]
      %v1938 = vld [vmem:[#allocation4 + $0xb0] sm:$0xff]
      %v1939 = vld [vmem:[#allocation4 + $0xb8] sm:$0xff]
      %v1940 = vld [vmem:[#allocation4 + $0xc0] sm:$0xff]
      %v1941 = vld [vmem:[#allocation4 + $0xc8] sm:$0xff]
      %v1942 = vld [vmem:[#allocation4 + $0xd0] sm:$0xff]
      %v1943 = vld [vmem:[#allocation4 + $0xd8] sm:$0xff]
      %v1944 = vld [vmem:[#allocation4 + $0xe0] sm:$0xff]
      %v1945 = vld [vmem:[#allocation4 + $0xe8] sm:$0xff]
      %v1946 = vld [vmem:[#allocation4 + $0xf0] sm:$0xff]
      %s1947 = scalar_lea.vmem %s4, 896
      %v1948 = vld [vmem:[%s1947] sm:$0xff]
      %v1949 = vld [vmem:[%s1947 + $0x8] sm:$0xff]
      %v1950 = vld [vmem:[%s1947 + $0x10] sm:$0xff]
      %v1951 = vld [vmem:[%s1947 + $0x18] sm:$0xff]
      %v1952 = vld [vmem:[%s1947 + $0x20] sm:$0xff]
      %v1953 = vld [vmem:[%s1947 + $0x28] sm:$0xff]
      %v1954 = vld [vmem:[%s1947 + $0x30] sm:$0xff]
      %v1955 = vld [vmem:[%s1947 + $0x38] sm:$0xff]
      %v1956 = vld [vmem:[%s1947 + $0x40] sm:$0xff]
      %v1957 = vld [vmem:[%s1947 + $0x48] sm:$0xff]
      %v1958 = vld [vmem:[%s1947 + $0x50] sm:$0xff]
      %v1959 = vld [vmem:[%s1947 + $0x58] sm:$0xff]
      %v1960 = vld [vmem:[%s1947 + $0x60] sm:$0xff]
      %v1961 = vld [vmem:[%s1947 + $0x68] sm:$0xff]
      %v1962 = vld [vmem:[%s1947 + $0x70] sm:$0xff]
      %v1963 = vld [vmem:[%s1947 + $0x78] sm:$0xff]
      %1964 = vmatpush.msra.mxu0 %v1963
      %1965 = vmatpush.msra.mxu0 %v1962
      %1966 = vmatpush.msra.mxu0 %v1961
      %1967 = vmatpush.msra.mxu0 %v1960
      %1968 = vmatpush.msra.mxu0 %v1959
      %1969 = vmatpush.msra.mxu0 %v1958
      %1970 = vmatpush.msra.mxu0 %v1957
      %1971 = vmatpush.msra.mxu0 %v1956
      %1972 = vmatpush.msra.mxu0 %v1955
      %1973 = vmatpush.msra.mxu0 %v1954
      %1974 = vmatpush.msra.mxu0 %v1953
      %1975 = vmatpush.msra.mxu0 %v1952
      %1976 = vmatpush.msra.mxu0 %v1951
      %1977 = vmatpush.msra.mxu0 %v1950
      %1978 = vmatpush.msra.mxu0 %v1949
      %1979 = vmatpush.msra.mxu0 %v1948
      %1980 = vmatmul.f32.gmra.mxu0 %v1923
      %v1981 = vpop.f32.mrf.mxu0
      %v1982 = vadd.f32 0.0, %v1981
      %1983 = vmatmul.f32.gmra.mxu0 %v1924
      %v1984 = vpop.f32.mrf.mxu0
      %v1985 = vadd.f32 0.0, %v1984
      %1986 = vmatmul.f32.gmra.mxu0 %v1925
      %v1987 = vpop.f32.mrf.mxu0
      %1988 = vmatmul.f32.gmra.mxu0 %v1926
      %v1989 = vpop.f32.mrf.mxu0
      %v1990 = vadd.f32 0.0, %v1989
      %1991 = vmatmul.f32.gmra.mxu0 %v1927
      %v1992 = vpop.f32.mrf.mxu0
      %v1993 = vadd.f32 0.0, %v1992
      %1994 = vmatmul.f32.gmra.mxu0 %v1928
      %v1995 = vpop.f32.mrf.mxu0
      %1996 = vmatmul.f32.gmra.mxu0 %v1929
      %v1997 = vpop.f32.mrf.mxu0
      %v1998 = vadd.f32 0.0, %v1997
      %1999 = vmatmul.f32.gmra.mxu0 %v1930
      %v2000 = vpop.f32.mrf.mxu0
      %v2001 = vadd.f32 0.0, %v2000
      %2002 = vmatmul.f32.gmra.mxu0 %v1931
      %v2003 = vpop.f32.mrf.mxu0
      %2004 = vmatmul.f32.gmra.mxu0 %v1932
      %v2005 = vpop.f32.mrf.mxu0
      %v2006 = vadd.f32 0.0, %v2005
      %2007 = vmatmul.f32.gmra.mxu0 %v1933
      %v2008 = vpop.f32.mrf.mxu0
      %v2009 = vadd.f32 0.0, %v2008
      %2010 = vmatmul.f32.gmra.mxu0 %v1934
      %v2011 = vpop.f32.mrf.mxu0
      %2012 = vmatmul.f32.gmra.mxu0 %v1935
      %v2013 = vpop.f32.mrf.mxu0
      %v2014 = vadd.f32 0.0, %v2013
      %2015 = vmatmul.f32.gmra.mxu0 %v1936
      %v2016 = vpop.f32.mrf.mxu0
      %v2017 = vadd.f32 0.0, %v2016
      %2018 = vmatmul.f32.gmra.mxu0 %v1937
      %v2019 = vpop.f32.mrf.mxu0
      %2020 = vmatmul.f32.gmra.mxu0 %v1938
      %v2021 = vpop.f32.mrf.mxu0
      %v2022 = vadd.f32 0.0, %v2021
      %2023 = vmatmul.f32.gmra.mxu0 %v1939
      %v2024 = vpop.f32.mrf.mxu0
      %v2025 = vadd.f32 0.0, %v2024
      %2026 = vmatmul.f32.gmra.mxu0 %v1940
      %v2027 = vpop.f32.mrf.mxu0
      %2028 = vmatmul.f32.gmra.mxu0 %v1941
      %v2029 = vpop.f32.mrf.mxu0
      %v2030 = vadd.f32 0.0, %v2029
      %2031 = vmatmul.f32.gmra.mxu0 %v1942
      %v2032 = vpop.f32.mrf.mxu0
      %v2033 = vadd.f32 0.0, %v2032
      %2034 = vmatmul.f32.gmra.mxu0 %v1943
      %v2035 = vpop.f32.mrf.mxu0
      %2036 = vmatmul.f32.gmra.mxu0 %v1944
      %v2037 = vpop.f32.mrf.mxu0
      %v2038 = vadd.f32 0.0, %v2037
      %2039 = vmatmul.f32.gmra.mxu0 %v1945
      %v2040 = vpop.f32.mrf.mxu0
      %v2041 = vadd.f32 0.0, %v2040
      %2042 = vmatmul.f32.gmra.mxu0 %v1946
      %v2043 = vpop.f32.mrf.mxu0
      %2044 = vdwg.mxu0
      %v2045 = vadd.f32 %v1907, %v1982
      %v2046 = vadd.f32 %v1908, %v1985
      %v2047 = vadd.f32 %v1909, %v1990
      %v2048 = vadd.f32 %v1910, %v1993
      %v2049 = vadd.f32 %v1911, %v1998
      %v2050 = vadd.f32 %v1912, %v2001
      %v2051 = vadd.f32 %v1913, %v2006
      %v2052 = vadd.f32 %v1914, %v2009
      %v2053 = vadd.f32 %v1915, %v2014
      %v2054 = vadd.f32 %v1916, %v2017
      %v2055 = vadd.f32 %v1917, %v2022
      %v2056 = vadd.f32 %v1918, %v2025
      %v2057 = vadd.f32 %v1919, %v2030
      %v2058 = vadd.f32 %v1920, %v2033
      %v2059 = vadd.f32 %v1921, %v2038
      %v2060 = vadd.f32 %v1922, %v2041
      %v2061 = vld [vmem:[#allocation4 + $0x39] sm:$0xff]
      %v2062 = vld [vmem:[#allocation4 + $0x41] sm:$0xff]
      %v2063 = vld [vmem:[#allocation4 + $0x49] sm:$0xff]
      %v2064 = vld [vmem:[#allocation4 + $0x51] sm:$0xff]
      %v2065 = vld [vmem:[#allocation4 + $0x59] sm:$0xff]
      %v2066 = vld [vmem:[#allocation4 + $0x61] sm:$0xff]
      %v2067 = vld [vmem:[#allocation4 + $0x69] sm:$0xff]
      %v2068 = vld [vmem:[#allocation4 + $0x71] sm:$0xff]
      %v2069 = vld [vmem:[#allocation4 + $0x79] sm:$0xff]
      %v2070 = vld [vmem:[#allocation4 + $0x81] sm:$0xff]
      %v2071 = vld [vmem:[#allocation4 + $0x89] sm:$0xff]
      %v2072 = vld [vmem:[#allocation4 + $0x91] sm:$0xff]
      %v2073 = vld [vmem:[#allocation4 + $0x99] sm:$0xff]
      %v2074 = vld [vmem:[#allocation4 + $0xa1] sm:$0xff]
      %v2075 = vld [vmem:[#allocation4 + $0xa9] sm:$0xff]
      %v2076 = vld [vmem:[#allocation4 + $0xb1] sm:$0xff]
      %v2077 = vld [vmem:[#allocation4 + $0xb9] sm:$0xff]
      %v2078 = vld [vmem:[#allocation4 + $0xc1] sm:$0xff]
      %v2079 = vld [vmem:[#allocation4 + $0xc9] sm:$0xff]
      %v2080 = vld [vmem:[#allocation4 + $0xd1] sm:$0xff]
      %v2081 = vld [vmem:[#allocation4 + $0xd9] sm:$0xff]
      %v2082 = vld [vmem:[#allocation4 + $0xe1] sm:$0xff]
      %v2083 = vld [vmem:[#allocation4 + $0xe9] sm:$0xff]
      %v2084 = vld [vmem:[#allocation4 + $0xf1] sm:$0xff]
      %s2085 = scalar_lea.vmem %s4, 1024
      %v2086 = vld [vmem:[%s2085] sm:$0xff]
      %v2087 = vld [vmem:[%s2085 + $0x8] sm:$0xff]
      %v2088 = vld [vmem:[%s2085 + $0x10] sm:$0xff]
      %v2089 = vld [vmem:[%s2085 + $0x18] sm:$0xff]
      %v2090 = vld [vmem:[%s2085 + $0x20] sm:$0xff]
      %v2091 = vld [vmem:[%s2085 + $0x28] sm:$0xff]
      %v2092 = vld [vmem:[%s2085 + $0x30] sm:$0xff]
      %v2093 = vld [vmem:[%s2085 + $0x38] sm:$0xff]
      %v2094 = vld [vmem:[%s2085 + $0x40] sm:$0xff]
      %v2095 = vld [vmem:[%s2085 + $0x48] sm:$0xff]
      %v2096 = vld [vmem:[%s2085 + $0x50] sm:$0xff]
      %v2097 = vld [vmem:[%s2085 + $0x58] sm:$0xff]
      %v2098 = vld [vmem:[%s2085 + $0x60] sm:$0xff]
      %v2099 = vld [vmem:[%s2085 + $0x68] sm:$0xff]
      %v2100 = vld [vmem:[%s2085 + $0x70] sm:$0xff]
      %v2101 = vld [vmem:[%s2085 + $0x78] sm:$0xff]
      %2102 = vmatpush.msra.mxu0 %v2101
      %2103 = vmatpush.msra.mxu0 %v2100
      %2104 = vmatpush.msra.mxu0 %v2099
      %2105 = vmatpush.msra.mxu0 %v2098
      %2106 = vmatpush.msra.mxu0 %v2097
      %2107 = vmatpush.msra.mxu0 %v2096
      %2108 = vmatpush.msra.mxu0 %v2095
      %2109 = vmatpush.msra.mxu0 %v2094
      %2110 = vmatpush.msra.mxu0 %v2093
      %2111 = vmatpush.msra.mxu0 %v2092
      %2112 = vmatpush.msra.mxu0 %v2091
      %2113 = vmatpush.msra.mxu0 %v2090
      %2114 = vmatpush.msra.mxu0 %v2089
      %2115 = vmatpush.msra.mxu0 %v2088
      %2116 = vmatpush.msra.mxu0 %v2087
      %2117 = vmatpush.msra.mxu0 %v2086
      %2118 = vmatmul.f32.gmra.mxu0 %v2061
      %v2119 = vpop.f32.mrf.mxu0
      %v2120 = vadd.f32 0.0, %v2119
      %2121 = vmatmul.f32.gmra.mxu0 %v2062
      %v2122 = vpop.f32.mrf.mxu0
      %v2123 = vadd.f32 0.0, %v2122
      %2124 = vmatmul.f32.gmra.mxu0 %v2063
      %v2125 = vpop.f32.mrf.mxu0
      %2126 = vmatmul.f32.gmra.mxu0 %v2064
      %v2127 = vpop.f32.mrf.mxu0
      %v2128 = vadd.f32 0.0, %v2127
      %2129 = vmatmul.f32.gmra.mxu0 %v2065
      %v2130 = vpop.f32.mrf.mxu0
      %v2131 = vadd.f32 0.0, %v2130
      %2132 = vmatmul.f32.gmra.mxu0 %v2066
      %v2133 = vpop.f32.mrf.mxu0
      %2134 = vmatmul.f32.gmra.mxu0 %v2067
      %v2135 = vpop.f32.mrf.mxu0
      %v2136 = vadd.f32 0.0, %v2135
      %2137 = vmatmul.f32.gmra.mxu0 %v2068
      %v2138 = vpop.f32.mrf.mxu0
      %v2139 = vadd.f32 0.0, %v2138
      %2140 = vmatmul.f32.gmra.mxu0 %v2069
      %v2141 = vpop.f32.mrf.mxu0
      %2142 = vmatmul.f32.gmra.mxu0 %v2070
      %v2143 = vpop.f32.mrf.mxu0
      %v2144 = vadd.f32 0.0, %v2143
      %2145 = vmatmul.f32.gmra.mxu0 %v2071
      %v2146 = vpop.f32.mrf.mxu0
      %v2147 = vadd.f32 0.0, %v2146
      %2148 = vmatmul.f32.gmra.mxu0 %v2072
      %v2149 = vpop.f32.mrf.mxu0
      %2150 = vmatmul.f32.gmra.mxu0 %v2073
      %v2151 = vpop.f32.mrf.mxu0
      %v2152 = vadd.f32 0.0, %v2151
      %2153 = vmatmul.f32.gmra.mxu0 %v2074
      %v2154 = vpop.f32.mrf.mxu0
      %v2155 = vadd.f32 0.0, %v2154
      %2156 = vmatmul.f32.gmra.mxu0 %v2075
      %v2157 = vpop.f32.mrf.mxu0
      %2158 = vmatmul.f32.gmra.mxu0 %v2076
      %v2159 = vpop.f32.mrf.mxu0
      %v2160 = vadd.f32 0.0, %v2159
      %2161 = vmatmul.f32.gmra.mxu0 %v2077
      %v2162 = vpop.f32.mrf.mxu0
      %v2163 = vadd.f32 0.0, %v2162
      %2164 = vmatmul.f32.gmra.mxu0 %v2078
      %v2165 = vpop.f32.mrf.mxu0
      %2166 = vmatmul.f32.gmra.mxu0 %v2079
      %v2167 = vpop.f32.mrf.mxu0
      %v2168 = vadd.f32 0.0, %v2167
      %2169 = vmatmul.f32.gmra.mxu0 %v2080
      %v2170 = vpop.f32.mrf.mxu0
      %v2171 = vadd.f32 0.0, %v2170
      %2172 = vmatmul.f32.gmra.mxu0 %v2081
      %v2173 = vpop.f32.mrf.mxu0
      %2174 = vmatmul.f32.gmra.mxu0 %v2082
      %v2175 = vpop.f32.mrf.mxu0
      %v2176 = vadd.f32 0.0, %v2175
      %2177 = vmatmul.f32.gmra.mxu0 %v2083
      %v2178 = vpop.f32.mrf.mxu0
      %v2179 = vadd.f32 0.0, %v2178
      %2180 = vmatmul.f32.gmra.mxu0 %v2084
      %v2181 = vpop.f32.mrf.mxu0
      %2182 = vdwg.mxu0
      %v2183 = vadd.f32 %v2045, %v2120
      %v2184 = vadd.f32 %v2046, %v2123
      %v2185 = vadd.f32 %v2047, %v2128
      %v2186 = vadd.f32 %v2048, %v2131
      %v2187 = vadd.f32 %v2049, %v2136
      %v2188 = vadd.f32 %v2050, %v2139
      %v2189 = vadd.f32 %v2051, %v2144
      %v2190 = vadd.f32 %v2052, %v2147
      %v2191 = vadd.f32 %v2053, %v2152
      %v2192 = vadd.f32 %v2054, %v2155
      %v2193 = vadd.f32 %v2055, %v2160
      %v2194 = vadd.f32 %v2056, %v2163
      %v2195 = vadd.f32 %v2057, %v2168
      %v2196 = vadd.f32 %v2058, %v2171
      %v2197 = vadd.f32 %v2059, %v2176
      %v2198 = vadd.f32 %v2060, %v2179
      %v2199 = vld [vmem:[%s5] sm:$0x1]
      %v2201 = vperm.slane %v2199, 0
      %v2203 = vmul.f32 %v2183, %v2201
      %v2204 = vmul.f32 %v2184, %v2201
      %v2205 = vmul.f32 %v2185, %v2201
      %v2206 = vmul.f32 %v2186, %v2201
      %v2207 = vmul.f32 %v2187, %v2201
      %v2208 = vmul.f32 %v2188, %v2201
      %v2209 = vmul.f32 %v2189, %v2201
      %v2210 = vmul.f32 %v2190, %v2201
      %v2211 = vmul.f32 %v2191, %v2201
      %v2212 = vmul.f32 %v2192, %v2201
      %v2213 = vmul.f32 %v2193, %v2201
      %v2214 = vmul.f32 %v2194, %v2201
      %v2215 = vmul.f32 %v2195, %v2201
      %v2216 = vmul.f32 %v2196, %v2201
      %v2217 = vmul.f32 %v2197, %v2201
      %v2218 = vmul.f32 %v2198, %v2201
      %v2219 = vld [vmem:[%s6] sm:$0x1]
      %v2221 = vperm.slane %v2219, 0
      %v2223 = vadd.f32 %v2203, %v2221
      %v2224 = vadd.f32 %v2204, %v2221
      %v2225 = vadd.f32 %v2205, %v2221
      %v2226 = vadd.f32 %v2206, %v2221
      %v2227 = vadd.f32 %v2207, %v2221
      %v2228 = vadd.f32 %v2208, %v2221
      %v2229 = vadd.f32 %v2209, %v2221
      %v2230 = vadd.f32 %v2210, %v2221
      %v2231 = vadd.f32 %v2211, %v2221
      %v2232 = vadd.f32 %v2212, %v2221
      %v2233 = vadd.f32 %v2213, %v2221
      %v2234 = vadd.f32 %v2214, %v2221
      %v2235 = vadd.f32 %v2215, %v2221
      %v2236 = vadd.f32 %v2216, %v2221
      %v2237 = vadd.f32 %v2217, %v2221
      %v2238 = vadd.f32 %v2218, %v2221
      %v2239 = vmax.f32 %v2223, 0.0
      %v2240 = vmax.f32 %v2224, 0.0
      %v2241 = vmax.f32 %v2225, 0.0
      %v2242 = vmax.f32 %v2226, 0.0
      %v2243 = vmax.f32 %v2227, 0.0
      %v2244 = vmax.f32 %v2228, 0.0
      %v2245 = vmax.f32 %v2229, 0.0
      %v2246 = vmax.f32 %v2230, 0.0
      %v2247 = vmax.f32 %v2231, 0.0
      %v2248 = vmax.f32 %v2232, 0.0
      %v2249 = vmax.f32 %v2233, 0.0
      %v2250 = vmax.f32 %v2234, 0.0
      %v2251 = vmax.f32 %v2235, 0.0
      %v2252 = vmax.f32 %v2236, 0.0
      %v2253 = vmax.f32 %v2237, 0.0
      %v2254 = vmax.f32 %v2238, 0.0
      %v2255 = vld [vmem:[%s7] sm:$0xff]
      %v2256 = vld [vmem:[%s7 + $0x8] sm:$0xff]
      %v2257 = vld [vmem:[%s7 + $0x10] sm:$0xff]
      %v2258 = vld [vmem:[%s7 + $0x18] sm:$0xff]
      %v2259 = vld [vmem:[%s7 + $0x20] sm:$0xff]
      %v2260 = vld [vmem:[%s7 + $0x28] sm:$0xff]
      %v2261 = vld [vmem:[%s7 + $0x30] sm:$0xff]
      %v2262 = vld [vmem:[%s7 + $0x38] sm:$0xff]
      %v2263 = vld [vmem:[%s7 + $0x40] sm:$0xff]
      %v2264 = vld [vmem:[%s7 + $0x48] sm:$0xff]
      %v2265 = vld [vmem:[%s7 + $0x50] sm:$0xff]
      %v2266 = vld [vmem:[%s7 + $0x58] sm:$0xff]
      %v2267 = vld [vmem:[%s7 + $0x60] sm:$0xff]
      %v2268 = vld [vmem:[%s7 + $0x68] sm:$0xff]
      %v2269 = vld [vmem:[%s7 + $0x70] sm:$0xff]
      %v2270 = vld [vmem:[%s7 + $0x78] sm:$0xff]
      %2271 = vmatpush.msra.mxu0 %v2270
      %2272 = vmatpush.msra.mxu0 %v2269
      %2273 = vmatpush.msra.mxu0 %v2268
      %2274 = vmatpush.msra.mxu0 %v2267
      %2275 = vmatpush.msra.mxu0 %v2266
      %2276 = vmatpush.msra.mxu0 %v2265
      %2277 = vmatpush.msra.mxu0 %v2264
      %2278 = vmatpush.msra.mxu0 %v2263
      %2279 = vmatpush.msra.mxu0 %v2262
      %2280 = vmatpush.msra.mxu0 %v2261
      %2281 = vmatpush.msra.mxu0 %v2260
      %2282 = vmatpush.msra.mxu0 %v2259
      %2283 = vmatpush.msra.mxu0 %v2258
      %2284 = vmatpush.msra.mxu0 %v2257
      %2285 = vmatpush.msra.mxu0 %v2256
      %2286 = vmatpush.msra.mxu0 %v2255
      %2287 = vmatmul.f32.gmra.mxu0 %v2239
      %v2288 = vpop.f32.mrf.mxu0
      %v2289 = vadd.f32 0.0, %v2288
      %2290 = vmatmul.f32.gmra.mxu0 %v2240
      %v2291 = vpop.f32.mrf.mxu0
      %v2292 = vadd.f32 0.0, %v2291
      %2293 = vmatmul.f32.gmra.mxu0 %v2241
      %v2294 = vpop.f32.mrf.mxu0
      %v2295 = vadd.f32 0.0, %v2294
      %2296 = vmatmul.f32.gmra.mxu0 %v2242
      %v2297 = vpop.f32.mrf.mxu0
      %v2298 = vadd.f32 0.0, %v2297
      %2299 = vmatmul.f32.gmra.mxu0 %v2243
      %v2300 = vpop.f32.mrf.mxu0
      %v2301 = vadd.f32 0.0, %v2300
      %2302 = vmatmul.f32.gmra.mxu0 %v2244
      %v2303 = vpop.f32.mrf.mxu0
      %v2304 = vadd.f32 0.0, %v2303
      %2305 = vmatmul.f32.gmra.mxu0 %v2245
      %v2306 = vpop.f32.mrf.mxu0
      %v2307 = vadd.f32 0.0, %v2306
      %2308 = vmatmul.f32.gmra.mxu0 %v2246
      %v2309 = vpop.f32.mrf.mxu0
      %v2310 = vadd.f32 0.0, %v2309
      %2311 = vmatmul.f32.gmra.mxu0 %v2247
      %v2312 = vpop.f32.mrf.mxu0
      %v2313 = vadd.f32 0.0, %v2312
      %2314 = vmatmul.f32.gmra.mxu0 %v2248
      %v2315 = vpop.f32.mrf.mxu0
      %v2316 = vadd.f32 0.0, %v2315
      %2317 = vmatmul.f32.gmra.mxu0 %v2249
      %v2318 = vpop.f32.mrf.mxu0
      %v2319 = vadd.f32 0.0, %v2318
      %2320 = vmatmul.f32.gmra.mxu0 %v2250
      %v2321 = vpop.f32.mrf.mxu0
      %v2322 = vadd.f32 0.0, %v2321
      %2323 = vmatmul.f32.gmra.mxu0 %v2251
      %v2324 = vpop.f32.mrf.mxu0
      %v2325 = vadd.f32 0.0, %v2324
      %2326 = vmatmul.f32.gmra.mxu0 %v2252
      %v2327 = vpop.f32.mrf.mxu0
      %v2328 = vadd.f32 0.0, %v2327
      %2329 = vmatmul.f32.gmra.mxu0 %v2253
      %v2330 = vpop.f32.mrf.mxu0
      %v2331 = vadd.f32 0.0, %v2330
      %2332 = vmatmul.f32.gmra.mxu0 %v2254
      %v2333 = vpop.f32.mrf.mxu0
      %v2334 = vadd.f32 0.0, %v2333
      %2335 = vdwg.mxu0
      %s2336 = scalar_lea.vmem %s653, 24 [#allocation2]
      %v2337 = vld [vmem:[%s2336] sm:$0xff]
      %v2338 = vld [vmem:[%s2336 + $0x8] sm:$0xff]
      %v2339 = vld [vmem:[%s2336 + $0x18] sm:$0xff]
      %v2340 = vld [vmem:[%s2336 + $0x20] sm:$0xff]
      %v2341 = vld [vmem:[%s2336 + $0x30] sm:$0xff]
      %v2342 = vld [vmem:[%s2336 + $0x38] sm:$0xff]
      %v2343 = vld [vmem:[%s2336 + $0x48] sm:$0xff]
      %v2344 = vld [vmem:[%s2336 + $0x50] sm:$0xff]
      %v2345 = vld [vmem:[%s2336 + $0x60] sm:$0xff]
      %v2346 = vld [vmem:[%s2336 + $0x68] sm:$0xff]
      %v2347 = vld [vmem:[%s2336 + $0x78] sm:$0xff]
      %v2348 = vld [vmem:[%s2336 + $0x80] sm:$0xff]
      %v2349 = vld [vmem:[%s2336 + $0x90] sm:$0xff]
      %v2350 = vld [vmem:[%s2336 + $0x98] sm:$0xff]
      %v2351 = vld [vmem:[%s2336 + $0xa8] sm:$0xff]
      %v2352 = vld [vmem:[%s2336 + $0xb0] sm:$0xff]
      %v2353 = vld [vmem:[%s8] sm:$0x1]
      %v2355 = vperm.slane %v2353, 0
      %v2357 = vmul.f32 %v2289, %v2355
      %v2358 = vmul.f32 %v2292, %v2355
      %v2359 = vmul.f32 %v2295, %v2355
      %v2360 = vmul.f32 %v2298, %v2355
      %v2361 = vmul.f32 %v2301, %v2355
      %v2362 = vmul.f32 %v2304, %v2355
      %v2363 = vmul.f32 %v2307, %v2355
      %v2364 = vmul.f32 %v2310, %v2355
      %v2365 = vmul.f32 %v2313, %v2355
      %v2366 = vmul.f32 %v2316, %v2355
      %v2367 = vmul.f32 %v2319, %v2355
      %v2368 = vmul.f32 %v2322, %v2355
      %v2369 = vmul.f32 %v2325, %v2355
      %v2370 = vmul.f32 %v2328, %v2355
      %v2371 = vmul.f32 %v2331, %v2355
      %v2372 = vmul.f32 %v2334, %v2355
      %v2373 = vld [vmem:[%s9] sm:$0x1]
      %v2375 = vperm.slane %v2373, 0
      %v2377 = vadd.f32 %v2357, %v2375
      %v2378 = vadd.f32 %v2358, %v2375
      %v2379 = vadd.f32 %v2359, %v2375
      %v2380 = vadd.f32 %v2360, %v2375
      %v2381 = vadd.f32 %v2361, %v2375
      %v2382 = vadd.f32 %v2362, %v2375
      %v2383 = vadd.f32 %v2363, %v2375
      %v2384 = vadd.f32 %v2364, %v2375
      %v2385 = vadd.f32 %v2365, %v2375
      %v2386 = vadd.f32 %v2366, %v2375
      %v2387 = vadd.f32 %v2367, %v2375
      %v2388 = vadd.f32 %v2368, %v2375
      %v2389 = vadd.f32 %v2369, %v2375
      %v2390 = vadd.f32 %v2370, %v2375
      %v2391 = vadd.f32 %v2371, %v2375
      %v2392 = vadd.f32 %v2372, %v2375
      %v2393 = vadd.f32 %v2377, %v2337
      %v2394 = vadd.f32 %v2378, %v2338
      %v2395 = vadd.f32 %v2379, %v2339
      %v2396 = vadd.f32 %v2380, %v2340
      %v2397 = vadd.f32 %v2381, %v2341
      %v2398 = vadd.f32 %v2382, %v2342
      %v2399 = vadd.f32 %v2383, %v2343
      %v2400 = vadd.f32 %v2384, %v2344
      %v2401 = vadd.f32 %v2385, %v2345
      %v2402 = vadd.f32 %v2386, %v2346
      %v2403 = vadd.f32 %v2387, %v2347
      %v2404 = vadd.f32 %v2388, %v2348
      %v2405 = vadd.f32 %v2389, %v2349
      %v2406 = vadd.f32 %v2390, %v2350
      %v2407 = vadd.f32 %v2391, %v2351
      %v2408 = vadd.f32 %v2392, %v2352
      %v2409 = vmax.f32 %v2393, 0.0
      %v2410 = vmax.f32 %v2394, 0.0
      %v2411 = vmax.f32 %v2395, 0.0
      %v2412 = vmax.f32 %v2396, 0.0
      %v2413 = vmax.f32 %v2397, 0.0
      %v2414 = vmax.f32 %v2398, 0.0
      %v2415 = vmax.f32 %v2399, 0.0
      %v2416 = vmax.f32 %v2400, 0.0
      %v2417 = vmax.f32 %v2401, 0.0
      %v2418 = vmax.f32 %v2402, 0.0
      %v2419 = vmax.f32 %v2403, 0.0
      %v2420 = vmax.f32 %v2404, 0.0
      %v2421 = vmax.f32 %v2405, 0.0
      %v2422 = vmax.f32 %v2406, 0.0
      %v2423 = vmax.f32 %v2407, 0.0
      %v2424 = vmax.f32 %v2408, 0.0
      %2425 = vst [vmem:[%s333] sm:$0xff] %v2409
      %2426 = vst [vmem:[%s333 + $0x8] sm:$0xff] %v2410
      %2427 = vst [vmem:[%s333 + $0x10] sm:$0xff] %v2411
      %2428 = vst [vmem:[%s333 + $0x18] sm:$0xff] %v2412
      %2429 = vst [vmem:[%s333 + $0x20] sm:$0xff] %v2413
      %2430 = vst [vmem:[%s333 + $0x28] sm:$0xff] %v2414
      %2431 = vst [vmem:[%s333 + $0x30] sm:$0xff] %v2415
      %2432 = vst [vmem:[%s333 + $0x38] sm:$0xff] %v2416
      %2433 = vst [vmem:[%s333 + $0x40] sm:$0xff] %v2417
      %2434 = vst [vmem:[%s333 + $0x48] sm:$0xff] %v2418
      %2435 = vst [vmem:[%s333 + $0x50] sm:$0xff] %v2419
      %2436 = vst [vmem:[%s333 + $0x58] sm:$0xff] %v2420
      %2437 = vst [vmem:[%s333 + $0x60] sm:$0xff] %v2421
      %2438 = vst [vmem:[%s333 + $0x68] sm:$0xff] %v2422
      %2439 = vst [vmem:[%s333 + $0x70] sm:$0xff] %v2423
      %2440 = vst [vmem:[%s333 + $0x78] sm:$0xff] %v2424
      %s2441 = smul.u32 %s25, 2
      %s2442 = sadd.s32 %s2441, %s26
      %s2443 = smul.u32 16, %s2442
      %p2444 = scmp.lt.s32.totalorder %s2443, 63
      %s2445 = scalar_select %p2444, %s2443, 63
      %s2446 = smul.addr %s2445, 8
      %s2447 = scalar_lea.vmem %s10, %s2446
      // Predicated region
      $region219: #{bottleneck_pallas.1} parent=55 // pred_check
        %p2448 = pneg %p244
      $region220: #{bottleneck_pallas.1} parent=55 // pred_check_branch
        %2450 = sbr.rel (%p2448) target = $region222
      $region221: #{bottleneck_pallas.1} parent=55 // pred_region
        %s2451 = smul.u32 %s25, 2
        %s2452 = sadd.s32 %s2451, %s26
        %s2453 = smul.u32 16, %s2452
      $region222: #{bottleneck_pallas.1} parent=55 // pred_fallthru
        _
    $region56: #{bottleneck_pallas.1} parent=5 // pred_fallthru
      _
    %p2454 = scmp.le.s32.totalorder 2, %s16
    // Predicated region
    $region223: #{bottleneck_pallas.1} parent=5 // pred_check
      %p2455 = pneg %p2454
    $region224: #{bottleneck_pallas.1} parent=5 // pred_check_branch
      %2457 = sbr.rel (%p2455) target = $region226
    $region225: #{bottleneck_pallas.1} parent=5 // pred_region
      %s2458 = ssub.s32 %s16, 2
      // Predicated region
      $region227: #{bottleneck_pallas.1} parent=225 // pred_check
        %p2459 = pneg %p250
      $region228: #{bottleneck_pallas.1} parent=225 // pred_check_branch
        %2461 = sbr.rel (%p2459) target = $region230
      $region229: #{bottleneck_pallas.1} parent=225 // pred_region
        %s2462 = smul.u32 %s27, 2
        %s2463 = sadd.s32 %s2462, %s28
        %s2464 = smul.u32 16, %s2463
        %p2465 = scmp.lt.s32.totalorder %s2464, 63
        %s2466 = scalar_select %p2465, %s2464, 63
        %s2467 = smul.addr %s2466, 8
        %s2468 = scalar_lea.vmem %s10, %s2467
      $region230: #{bottleneck_pallas.1} parent=225 // pred_fallthru
        _
    $region226: #{bottleneck_pallas.1} parent=5 // pred_fallthru
      _
  $region6: #{bottleneck_pallas.1} parent=0 // loop_footer
    %s20 = sadd.s32 1, %s16
  $region7: #{bottleneck_pallas.1} parent=0 // loop_footer_branch
    %15 = sbr.rel target = $region3
  $region8: #{bottleneck_pallas.1} parent=0 // loop_exit
    _
  %2469 = vsyncmov [#allocation3]
  %s2470 = vpop.sfrf %2469
  %p2471 = scmp.eq.s32.totalorder %s2470, 0
  %p2472 = pneg %p2471
  %2474 = shalt.err (%p2472)
  %s2475 = scalar_lea.sflag [#allocation3], 1
  %2476 = vsyncmov %s2475
  %s2477 = vpop.sfrf %2476
  %p2478 = scmp.eq.s32.totalorder %s2477, 0
  %p2479 = pneg %p2478
  %2481 = shalt.err (%p2479)
  %s2482 = scalar_lea.sflag [#allocation3], 2
  %2483 = vsyncmov %s2482
  %s2484 = vpop.sfrf %2483
  %p2485 = scmp.eq.s32.totalorder %s2484, 0
  %p2486 = pneg %p2485
  %2488 = shalt.err (%p2486)
  %s2489 = scalar_lea.sflag [#allocation3], 3
  %2490 = vsyncmov %s2489
  %s2491 = vpop.sfrf %2490
  %p2492 = scmp.eq.s32.totalorder %s2491, 0
  %p2493 = pneg %p2492
  %2495 = shalt.err (%p2493)
  %s2496 = scalar_lea.sflag [#allocation3], 4
  %2497 = vsyncmov %s2496
  %s2498 = vpop.sfrf %2497
  %p2499 = scmp.eq.s32.totalorder %s2498, 0
  %p2500 = pneg %p2499
  %2502 = shalt.err (%p2500)
  %s2503 = scalar_lea.sflag [#allocation3], 5
  %2504 = vsyncmov %s2503
  %s2505 = vpop.sfrf %2504
  %p2506 = scmp.eq.s32.totalorder %s2505, 0
  %p2507 = pneg %p2506
  %2509 = shalt.err (%p2507)

</llo_original>
